<compile_context>
chip_gen: v7x
topology: tpu7x:2x2x1
jax: 0.10.0
libtpu: 0.0.40
codegen_flags: <defaults>
</compile_context>

<pallas_src>
import functools

import jax
import jax.numpy as jnp
from jax.experimental import pallas as pl
from jax.experimental.pallas import tpu as pltpu

N_WINDOW = 25          # 5x5 MaxPool window elements
N_FEAT = 3264          # flattened pooled features (fc1 fan-in)
OUT_PAD = 128          # lane-dense padded width of the final layer (true width 3)


def net_kernel(xw_ref, w1_ref, b1_ref, w2_ref, b2_ref, w3_ref, b3_ref,
               w4_ref, b4_ref, out_ref):
    # MaxPool2d(5): the 25 window elements sit on the leading axis, so the
    # reduction is 24 elementwise vmax ops on the VPU and the (bt, 3264)
    # result is already in matmul layout.
    m = xw_ref[0]
    for k in range(1, N_WINDOW):
        m = jnp.maximum(m, xw_ref[k])                        # (bt, 3264) f32

    # fc1 + ReLU: bf16 weights (halves the dominant HBM load), f32 accumulation.
    h = jnp.dot(m.astype(jnp.bfloat16), w1_ref[...],
                preferred_element_type=jnp.float32)
    h = jnp.maximum(h + b1_ref[...], 0.0)                    # (bt, 300)
    # fc2 + ReLU
    h = jnp.dot(h, w2_ref[...], preferred_element_type=jnp.float32)
    h = jnp.maximum(h + b2_ref[...], 0.0)                    # (bt, 30)
    # fc3 + ReLU
    h = jnp.dot(h, w3_ref[...], preferred_element_type=jnp.float32)
    h = jnp.maximum(h + b3_ref[...], 0.0)                    # (bt, 10)
    # fc4 (no activation): weights zero-padded to 128 lanes -> unmasked store.
    out = jnp.dot(h, w4_ref[...], preferred_element_type=jnp.float32)
    out_ref[...] = out + b4_ref[...]                         # (bt, 128)


def _round_up(a, m):
    return (a + m - 1) // m * m


def net_forward(x, params, *, batch_tile=32):
    n, H, W = x.shape
    PH, PW = H // 5, W // 5
    assert PH * 5 == H and PW * 5 == W and PH * PW == N_FEAT, \
        "MaxPool2d(5) output must flatten to 3264 features"

    w1, b1, w2, b2, w3, b3, w4, b4 = params

    # Batch tile: multiple of 8 sublanes. ~32 rows (≈10 MiB of xw, ≈25 MiB with
    # double buffering + resident weights) fits v7x's 64 MiB VMEM; raise
    # batch_tile to 64-128 on v5e/v6e (128 MiB VMEM) for bigger batches.
    bt = _round_up(min(batch_tile, _round_up(n, 8)), 8)
    n_pad = _round_up(n, bt)

    # Layout glue: put the 25 pooling-window elements on the LEADING axis so the
    # in-kernel max is a VPU reduce over axis 0 and the 3264 features stay on
    # lanes.  (n,H,W) -> (n,PH,5,PW,5) -> (5,5,n,PH,PW) -> (25, n, 3264)
    # Padded batch rows are whole rows of zeros: they never contaminate real
    # rows and are sliced off below.
    # TODO(synk): the transpose still materializes xw in HBM once; folding it
    # into the pallas_call input (allow_input_fusion / custom DMA gather) would
    # cut activation HBM traffic further.
    xp = x if n_pad == n else jnp.pad(x, ((0, n_pad - n), (0, 0), (0, 0)))
    xw = (xp.reshape(n_pad, PH, 5, PW, 5)
            .transpose(2, 4, 0, 1, 3)
            .reshape(N_WINDOW, n_pad, N_FEAT))

    # Lane-dense final layer: pad fc4's 3 output columns to 128 with zeros.
    w4p = jnp.pad(w4, ((0, 0), (0, OUT_PAD - w4.shape[1])))
    b4p = jnp.pad(b4, ((0, 0), (0, OUT_PAD - b4.shape[1])))

    weight_args = (w1, b1, w2, b2, w3, b3, w4p, b4p)

    def const_spec(a):
        # Constant block index -> DMA'd once, resident across all grid steps.
        return pl.BlockSpec(a.shape, lambda i: (0, 0))

    # VMEM budget: double-buffered xw/out tiles + resident weights + headroom.
    xw_block_bytes = N_WINDOW * bt * N_FEAT * 4
    out_block_bytes = bt * OUT_PAD * 4
    weight_bytes = sum(int(a.size) * a.dtype.itemsize for a in weight_args)
    vmem_limit = 2 * (xw_block_bytes + out_block_bytes) + 2 * weight_bytes + (4 << 20)

    cost = pl.CostEstimate(
        flops=2 * n_pad * (N_FEAT * 300 + 300 * 30 + 30 * 10 + 10 * OUT_PAD),
        transcendentals=0,
        bytes_accessed=int(xw.size) * 4 + weight_bytes + n_pad * OUT_PAD * 4,
    )

    out = pl.pallas_call(
        net_kernel,
        out_shape=jax.ShapeDtypeStruct((n_pad, OUT_PAD), jnp.float32),
        grid=(n_pad // bt,),
        in_specs=[pl.BlockSpec((N_WINDOW, bt, N_FEAT), lambda i: (0, i, 0))]
                 + [const_spec(a) for a in weight_args],
        out_specs=pl.BlockSpec((bt, OUT_PAD), lambda i: (i, 0)),
        compiler_params=pltpu.CompilerParams(
            dimension_semantics=("parallel",),   # shard batch across TCs (v7x)
            vmem_limit_bytes=int(vmem_limit),
        ),
        cost_estimate=cost,
    )(xw, *weight_args)

    return out[:n, :3]


def init_params(key):
    """torch.nn.Linear-style init (uniform +/- 1/sqrt(fan_in)).  Weights are
    stored as (in, out) so the kernel computes x @ W + b.  fc1's weight is
    stored in bfloat16 (it is ~95% of parameter bytes); the rest stays f32."""
    dims = [(N_FEAT, 300), (300, 30), (30, 10), (10, 3)]
    params = []
    for li, (fin, fout) in enumerate(dims):
        key, kw, kb = jax.random.split(key, 3)
        bound = 1.0 / (fin ** 0.5)
        w = jax.random.uniform(kw, (fin, fout), jnp.float32, -bound, bound)
        b = jax.random.uniform(kb, (1, fout), jnp.float32, -bound, bound)
        if li == 0:
            w = w.astype(jnp.bfloat16)
        params += [w, b]
    return params


def reference_forward(x, params):
    """Pure-JAX reference.  Mirrors the kernel numerics: fc1 is a bf16 x bf16
    matmul with f32 accumulation (w1 is stored in bf16); fc2-fc4 are f32."""
    n, H, W = x.shape
    PH, PW = H // 5, W // 5
    pooled = x.reshape(n, PH, 5, PW, 5).max(axis=(2, 4)).reshape(n, PH * PW)
    w1, b1, w2, b2, w3, b3, w4, b4 = params
    h = jnp.dot(pooled.astype(jnp.bfloat16), w1,
                preferred_element_type=jnp.float32) + b1
    h = jnp.maximum(h, 0.0)
    h = jnp.maximum(jnp.dot(h, w2, preferred_element_type=jnp.float32) + b2, 0.0)
    h = jnp.maximum(jnp.dot(h, w3, preferred_element_type=jnp.float32) + b3, 0.0)
    return jnp.dot(h, w4, preferred_element_type=jnp.float32) + b4


if __name__ == "__main__":
    key = jax.random.PRNGKey(0)
    kx, kp = jax.random.split(key)

    n, H, W = 2, 240, 340          # (H//5)*(W//5) = 48*68 = 3264
    x = jax.random.normal(kx, (n, H, W), jnp.float32)
    params = init_params(kp)

    fwd = jax.jit(functools.partial(net_forward, batch_tile=32))
    out = jax.block_until_ready(fwd(x, params))

    ref = reference_forward(x, params)
    assert out.shape == (n, 3)
    assert jnp.allclose(out, ref, atol=1e-3, rtol=1e-3), \
        float(jnp.max(jnp.abs(out - ref)))
    print("KERNEL_OK")
</pallas_src>

<mosaic_0001>
module attributes {stable_mosaic.version = 11 : i64} {
  func.func @net_kernel(%arg0: i32, %arg1: memref<25x8x3264xf32, #tpu.memory_space<vmem>>, %arg2: memref<3264x300xbf16, #tpu.memory_space<vmem>>, %arg3: memref<1x300xf32, #tpu.memory_space<vmem>>, %arg4: memref<300x30xf32, #tpu.memory_space<vmem>>, %arg5: memref<1x30xf32, #tpu.memory_space<vmem>>, %arg6: memref<30x10xf32, #tpu.memory_space<vmem>>, %arg7: memref<1x10xf32, #tpu.memory_space<vmem>>, %arg8: memref<10x128xf32, #tpu.memory_space<vmem>>, %arg9: memref<1x128xf32, #tpu.memory_space<vmem>>, %arg10: memref<8x128xf32, #tpu.memory_space<vmem>>) attributes {dimension_semantics = [#tpu.dimension_semantics<parallel>], iteration_bounds = array<i64: 1>, scalar_prefetch = 0 : i64, scratch_operands = 0 : i64, tpu.core_type = #tpu.core_type<tc>, window_params = [{transform_indices = @transform_0, window_bounds = array<i64: 25, 8, 3264>}, {pipeline_mode = #tpu.pipeline_mode<synchronous>, transform_indices = @transform_1, window_bounds = array<i64: 3264, 300>}, {pipeline_mode = #tpu.pipeline_mode<synchronous>, transform_indices = @transform_2, window_bounds = array<i64: 1, 300>}, {pipeline_mode = #tpu.pipeline_mode<synchronous>, transform_indices = @transform_3, window_bounds = array<i64: 300, 30>}, {pipeline_mode = #tpu.pipeline_mode<synchronous>, transform_indices = @transform_4, window_bounds = array<i64: 1, 30>}, {pipeline_mode = #tpu.pipeline_mode<synchronous>, transform_indices = @transform_5, window_bounds = array<i64: 30, 10>}, {pipeline_mode = #tpu.pipeline_mode<synchronous>, transform_indices = @transform_6, window_bounds = array<i64: 1, 10>}, {pipeline_mode = #tpu.pipeline_mode<synchronous>, transform_indices = @transform_7, window_bounds = array<i64: 10, 128>}, {pipeline_mode = #tpu.pipeline_mode<synchronous>, transform_indices = @transform_8, window_bounds = array<i64: 1, 128>}, {transform_indices = @transform_9, window_bounds = array<i64: 8, 128>}]} {
    %c0 = arith.constant 0 : index
    %c0_0 = arith.constant 0 : index
    %c0_1 = arith.constant 0 : index
    %0 = vector.load %arg1[%c0, %c0_0, %c0_1] : memref<25x8x3264xf32, #tpu.memory_space<vmem>>, vector<1x8x3264xf32>
    %1 = vector.shape_cast %0 : vector<1x8x3264xf32> to vector<8x3264xf32>
    %c1 = arith.constant 1 : index
    %c0_2 = arith.constant 0 : index
    %c0_3 = arith.constant 0 : index
    %2 = vector.load %arg1[%c1, %c0_2, %c0_3] : memref<25x8x3264xf32, #tpu.memory_space<vmem>>, vector<1x8x3264xf32>
    %3 = vector.shape_cast %2 : vector<1x8x3264xf32> to vector<8x3264xf32>
    %4 = arith.maximumf %1, %3 : vector<8x3264xf32>
    %c2 = arith.constant 2 : index
    %c0_4 = arith.constant 0 : index
    %c0_5 = arith.constant 0 : index
    %5 = vector.load %arg1[%c2, %c0_4, %c0_5] : memref<25x8x3264xf32, #tpu.memory_space<vmem>>, vector<1x8x3264xf32>
    %6 = vector.shape_cast %5 : vector<1x8x3264xf32> to vector<8x3264xf32>
    %7 = arith.maximumf %4, %6 : vector<8x3264xf32>
    %c3 = arith.constant 3 : index
    %c0_6 = arith.constant 0 : index
    %c0_7 = arith.constant 0 : index
    %8 = vector.load %arg1[%c3, %c0_6, %c0_7] : memref<25x8x3264xf32, #tpu.memory_space<vmem>>, vector<1x8x3264xf32>
    %9 = vector.shape_cast %8 : vector<1x8x3264xf32> to vector<8x3264xf32>
    %10 = arith.maximumf %7, %9 : vector<8x3264xf32>
    %c4 = arith.constant 4 : index
    %c0_8 = arith.constant 0 : index
    %c0_9 = arith.constant 0 : index
    %11 = vector.load %arg1[%c4, %c0_8, %c0_9] : memref<25x8x3264xf32, #tpu.memory_space<vmem>>, vector<1x8x3264xf32>
    %12 = vector.shape_cast %11 : vector<1x8x3264xf32> to vector<8x3264xf32>
    %13 = arith.maximumf %10, %12 : vector<8x3264xf32>
    %c5 = arith.constant 5 : index
    %c0_10 = arith.constant 0 : index
    %c0_11 = arith.constant 0 : index
    %14 = vector.load %arg1[%c5, %c0_10, %c0_11] : memref<25x8x3264xf32, #tpu.memory_space<vmem>>, vector<1x8x3264xf32>
    %15 = vector.shape_cast %14 : vector<1x8x3264xf32> to vector<8x3264xf32>
    %16 = arith.maximumf %13, %15 : vector<8x3264xf32>
    %c6 = arith.constant 6 : index
    %c0_12 = arith.constant 0 : index
    %c0_13 = arith.constant 0 : index
    %17 = vector.load %arg1[%c6, %c0_12, %c0_13] : memref<25x8x3264xf32, #tpu.memory_space<vmem>>, vector<1x8x3264xf32>
    %18 = vector.shape_cast %17 : vector<1x8x3264xf32> to vector<8x3264xf32>
    %19 = arith.maximumf %16, %18 : vector<8x3264xf32>
    %c7 = arith.constant 7 : index
    %c0_14 = arith.constant 0 : index
    %c0_15 = arith.constant 0 : index
    %20 = vector.load %arg1[%c7, %c0_14, %c0_15] : memref<25x8x3264xf32, #tpu.memory_space<vmem>>, vector<1x8x3264xf32>
    %21 = vector.shape_cast %20 : vector<1x8x3264xf32> to vector<8x3264xf32>
    %22 = arith.maximumf %19, %21 : vector<8x3264xf32>
    %c8 = arith.constant 8 : index
    %c0_16 = arith.constant 0 : index
    %c0_17 = arith.constant 0 : index
    %23 = vector.load %arg1[%c8, %c0_16, %c0_17] : memref<25x8x3264xf32, #tpu.memory_space<vmem>>, vector<1x8x3264xf32>
    %24 = vector.shape_cast %23 : vector<1x8x3264xf32> to vector<8x3264xf32>
    %25 = arith.maximumf %22, %24 : vector<8x3264xf32>
    %c9 = arith.constant 9 : index
    %c0_18 = arith.constant 0 : index
    %c0_19 = arith.constant 0 : index
    %26 = vector.load %arg1[%c9, %c0_18, %c0_19] : memref<25x8x3264xf32, #tpu.memory_space<vmem>>, vector<1x8x3264xf32>
    %27 = vector.shape_cast %26 : vector<1x8x3264xf32> to vector<8x3264xf32>
    %28 = arith.maximumf %25, %27 : vector<8x3264xf32>
    %c10 = arith.constant 10 : index
    %c0_20 = arith.constant 0 : index
    %c0_21 = arith.constant 0 : index
    %29 = vector.load %arg1[%c10, %c0_20, %c0_21] : memref<25x8x3264xf32, #tpu.memory_space<vmem>>, vector<1x8x3264xf32>
    %30 = vector.shape_cast %29 : vector<1x8x3264xf32> to vector<8x3264xf32>
    %31 = arith.maximumf %28, %30 : vector<8x3264xf32>
    %c11 = arith.constant 11 : index
    %c0_22 = arith.constant 0 : index
    %c0_23 = arith.constant 0 : index
    %32 = vector.load %arg1[%c11, %c0_22, %c0_23] : memref<25x8x3264xf32, #tpu.memory_space<vmem>>, vector<1x8x3264xf32>
    %33 = vector.shape_cast %32 : vector<1x8x3264xf32> to vector<8x3264xf32>
    %34 = arith.maximumf %31, %33 : vector<8x3264xf32>
    %c12 = arith.constant 12 : index
    %c0_24 = arith.constant 0 : index
    %c0_25 = arith.constant 0 : index
    %35 = vector.load %arg1[%c12, %c0_24, %c0_25] : memref<25x8x3264xf32, #tpu.memory_space<vmem>>, vector<1x8x3264xf32>
    %36 = vector.shape_cast %35 : vector<1x8x3264xf32> to vector<8x3264xf32>
    %37 = arith.maximumf %34, %36 : vector<8x3264xf32>
    %c13 = arith.constant 13 : index
    %c0_26 = arith.constant 0 : index
    %c0_27 = arith.constant 0 : index
    %38 = vector.load %arg1[%c13, %c0_26, %c0_27] : memref<25x8x3264xf32, #tpu.memory_space<vmem>>, vector<1x8x3264xf32>
    %39 = vector.shape_cast %38 : vector<1x8x3264xf32> to vector<8x3264xf32>
    %40 = arith.maximumf %37, %39 : vector<8x3264xf32>
    %c14 = arith.constant 14 : index
    %c0_28 = arith.constant 0 : index
    %c0_29 = arith.constant 0 : index
    %41 = vector.load %arg1[%c14, %c0_28, %c0_29] : memref<25x8x3264xf32, #tpu.memory_space<vmem>>, vector<1x8x3264xf32>
    %42 = vector.shape_cast %41 : vector<1x8x3264xf32> to vector<8x3264xf32>
    %43 = arith.maximumf %40, %42 : vector<8x3264xf32>
    %c15 = arith.constant 15 : index
    %c0_30 = arith.constant 0 : index
    %c0_31 = arith.constant 0 : index
    %44 = vector.load %arg1[%c15, %c0_30, %c0_31] : memref<25x8x3264xf32, #tpu.memory_space<vmem>>, vector<1x8x3264xf32>
    %45 = vector.shape_cast %44 : vector<1x8x3264xf32> to vector<8x3264xf32>
    %46 = arith.maximumf %43, %45 : vector<8x3264xf32>
    %c16 = arith.constant 16 : index
    %c0_32 = arith.constant 0 : index
    %c0_33 = arith.constant 0 : index
    %47 = vector.load %arg1[%c16, %c0_32, %c0_33] : memref<25x8x3264xf32, #tpu.memory_space<vmem>>, vector<1x8x3264xf32>
    %48 = vector.shape_cast %47 : vector<1x8x3264xf32> to vector<8x3264xf32>
    %49 = arith.maximumf %46, %48 : vector<8x3264xf32>
    %c17 = arith.constant 17 : index
    %c0_34 = arith.constant 0 : index
    %c0_35 = arith.constant 0 : index
    %50 = vector.load %arg1[%c17, %c0_34, %c0_35] : memref<25x8x3264xf32, #tpu.memory_space<vmem>>, vector<1x8x3264xf32>
    %51 = vector.shape_cast %50 : vector<1x8x3264xf32> to vector<8x3264xf32>
    %52 = arith.maximumf %49, %51 : vector<8x3264xf32>
    %c18 = arith.constant 18 : index
    %c0_36 = arith.constant 0 : index
    %c0_37 = arith.constant 0 : index
    %53 = vector.load %arg1[%c18, %c0_36, %c0_37] : memref<25x8x3264xf32, #tpu.memory_space<vmem>>, vector<1x8x3264xf32>
    %54 = vector.shape_cast %53 : vector<1x8x3264xf32> to vector<8x3264xf32>
    %55 = arith.maximumf %52, %54 : vector<8x3264xf32>
    %c19 = arith.constant 19 : index
    %c0_38 = arith.constant 0 : index
    %c0_39 = arith.constant 0 : index
    %56 = vector.load %arg1[%c19, %c0_38, %c0_39] : memref<25x8x3264xf32, #tpu.memory_space<vmem>>, vector<1x8x3264xf32>
    %57 = vector.shape_cast %56 : vector<1x8x3264xf32> to vector<8x3264xf32>
    %58 = arith.maximumf %55, %57 : vector<8x3264xf32>
    %c20 = arith.constant 20 : index
    %c0_40 = arith.constant 0 : index
    %c0_41 = arith.constant 0 : index
    %59 = vector.load %arg1[%c20, %c0_40, %c0_41] : memref<25x8x3264xf32, #tpu.memory_space<vmem>>, vector<1x8x3264xf32>
    %60 = vector.shape_cast %59 : vector<1x8x3264xf32> to vector<8x3264xf32>
    %61 = arith.maximumf %58, %60 : vector<8x3264xf32>
    %c21 = arith.constant 21 : index
    %c0_42 = arith.constant 0 : index
    %c0_43 = arith.constant 0 : index
    %62 = vector.load %arg1[%c21, %c0_42, %c0_43] : memref<25x8x3264xf32, #tpu.memory_space<vmem>>, vector<1x8x3264xf32>
    %63 = vector.shape_cast %62 : vector<1x8x3264xf32> to vector<8x3264xf32>
    %64 = arith.maximumf %61, %63 : vector<8x3264xf32>
    %c22 = arith.constant 22 : index
    %c0_44 = arith.constant 0 : index
    %c0_45 = arith.constant 0 : index
    %65 = vector.load %arg1[%c22, %c0_44, %c0_45] : memref<25x8x3264xf32, #tpu.memory_space<vmem>>, vector<1x8x3264xf32>
    %66 = vector.shape_cast %65 : vector<1x8x3264xf32> to vector<8x3264xf32>
    %67 = arith.maximumf %64, %66 : vector<8x3264xf32>
    %c23 = arith.constant 23 : index
    %c0_46 = arith.constant 0 : index
    %c0_47 = arith.constant 0 : index
    %68 = vector.load %arg1[%c23, %c0_46, %c0_47] : memref<25x8x3264xf32, #tpu.memory_space<vmem>>, vector<1x8x3264xf32>
    %69 = vector.shape_cast %68 : vector<1x8x3264xf32> to vector<8x3264xf32>
    %70 = arith.maximumf %67, %69 : vector<8x3264xf32>
    %c24 = arith.constant 24 : index
    %c0_48 = arith.constant 0 : index
    %c0_49 = arith.constant 0 : index
    %71 = vector.load %arg1[%c24, %c0_48, %c0_49] : memref<25x8x3264xf32, #tpu.memory_space<vmem>>, vector<1x8x3264xf32>
    %72 = vector.shape_cast %71 : vector<1x8x3264xf32> to vector<8x3264xf32>
    %73 = arith.maximumf %70, %72 : vector<8x3264xf32>
    %74 = arith.truncf %73 : vector<8x3264xf32> to vector<8x3264xbf16>
    %c0_50 = arith.constant 0 : index
    %c0_51 = arith.constant 0 : index
    %75 = vector.load %arg2[%c0_50, %c0_51] : memref<3264x300xbf16, #tpu.memory_space<vmem>>, vector<3264x300xbf16>
    %cst = arith.constant dense<0.000000e+00> : vector<8x300xf32>
    %76 = tpu.matmul %74, %75, %cst {dimension_numbers = #tpu.dot_dimension_numbers<[1], [0], [0], [1], [0, 0, 1, 1], [], []>} : vector<8x3264xbf16>, vector<3264x300xbf16>, vector<8x300xf32> -> vector<8x300xf32>
    %c0_52 = arith.constant 0 : index
    %c0_53 = arith.constant 0 : index
    %77 = vector.load %arg3[%c0_52, %c0_53] : memref<1x300xf32, #tpu.memory_space<vmem>>, vector<1x300xf32>
    %78 = vector.broadcast %77 : vector<1x300xf32> to vector<8x300xf32>
    %79 = arith.addf %76, %78 : vector<8x300xf32>
    %cst_54 = arith.constant 0.000000e+00 : f32
    %80 = vector.broadcast %cst_54 : f32 to vector<8x300xf32>
    %81 = arith.maximumf %79, %80 : vector<8x300xf32>
    %c0_55 = arith.constant 0 : index
    %c0_56 = arith.constant 0 : index
    %82 = vector.load %arg4[%c0_55, %c0_56] : memref<300x30xf32, #tpu.memory_space<vmem>>, vector<300x30xf32>
    %cst_57 = arith.constant dense<0.000000e+00> : vector<8x30xf32>
    %83 = tpu.matmul %81, %82, %cst_57 {dimension_numbers = #tpu.dot_dimension_numbers<[1], [0], [0], [1], [0, 0, 1, 1], [], []>} : vector<8x300xf32>, vector<300x30xf32>, vector<8x30xf32> -> vector<8x30xf32>
    %c0_58 = arith.constant 0 : index
    %c0_59 = arith.constant 0 : index
    %84 = vector.load %arg5[%c0_58, %c0_59] : memref<1x30xf32, #tpu.memory_space<vmem>>, vector<1x30xf32>
    %85 = vector.broadcast %84 : vector<1x30xf32> to vector<8x30xf32>
    %86 = arith.addf %83, %85 : vector<8x30xf32>
    %cst_60 = arith.constant 0.000000e+00 : f32
    %87 = vector.broadcast %cst_60 : f32 to vector<8x30xf32>
    %88 = arith.maximumf %86, %87 : vector<8x30xf32>
    %c0_61 = arith.constant 0 : index
    %c0_62 = arith.constant 0 : index
    %89 = vector.load %arg6[%c0_61, %c0_62] : memref<30x10xf32, #tpu.memory_space<vmem>>, vector<30x10xf32>
    %cst_63 = arith.constant dense<0.000000e+00> : vector<8x10xf32>
    %90 = tpu.matmul %88, %89, %cst_63 {dimension_numbers = #tpu.dot_dimension_numbers<[1], [0], [0], [1], [0, 0, 1, 1], [], []>} : vector<8x30xf32>, vector<30x10xf32>, vector<8x10xf32> -> vector<8x10xf32>
    %c0_64 = arith.constant 0 : index
    %c0_65 = arith.constant 0 : index
    %91 = vector.load %arg7[%c0_64, %c0_65] : memref<1x10xf32, #tpu.memory_space<vmem>>, vector<1x10xf32>
    %92 = vector.broadcast %91 : vector<1x10xf32> to vector<8x10xf32>
    %93 = arith.addf %90, %92 : vector<8x10xf32>
    %cst_66 = arith.constant 0.000000e+00 : f32
    %94 = vector.broadcast %cst_66 : f32 to vector<8x10xf32>
    %95 = arith.maximumf %93, %94 : vector<8x10xf32>
    %c0_67 = arith.constant 0 : index
    %c0_68 = arith.constant 0 : index
    %96 = vector.load %arg8[%c0_67, %c0_68] : memref<10x128xf32, #tpu.memory_space<vmem>>, vector<10x128xf32>
    %cst_69 = arith.constant dense<0.000000e+00> : vector<8x128xf32>
    %97 = tpu.matmul %95, %96, %cst_69 {dimension_numbers = #tpu.dot_dimension_numbers<[1], [0], [0], [1], [0, 0, 1, 1], [], []>} : vector<8x10xf32>, vector<10x128xf32>, vector<8x128xf32> -> vector<8x128xf32>
    %c0_70 = arith.constant 0 : index
    %c0_71 = arith.constant 0 : index
    %98 = vector.load %arg9[%c0_70, %c0_71] : memref<1x128xf32, #tpu.memory_space<vmem>>, vector<1x128xf32>
    %99 = vector.broadcast %98 : vector<1x128xf32> to vector<8x128xf32>
    %100 = arith.addf %97, %99 : vector<8x128xf32>
    %c0_72 = arith.constant 0 : index
    %c0_73 = arith.constant 0 : index
    %101 = vector.load %arg10[%c0_72, %c0_73] : memref<8x128xf32, #tpu.memory_space<vmem>>, vector<8x128xf32>
    tpu.vector_store %arg10[%c0_72, %c0_73], %100 {strides = array<i32>} : memref<8x128xf32, #tpu.memory_space<vmem>>, vector<8x128xf32>,
    return
  }
  func.func @transform_0(%arg0: i32) -> (i32, i32, i32) {
    %c0_i32 = arith.constant 0 : i32
    %c0_i32_0 = arith.constant 0 : i32
    %c0_i32_1 = arith.constant 0 : i32
    return %c0_i32, %arg0, %c0_i32_0 : i32, i32, i32
  }
  func.func @transform_1(%arg0: i32) -> (i32, i32) {
    %c0_i32 = arith.constant 0 : i32
    %c0_i32_0 = arith.constant 0 : i32
    %c0_i32_1 = arith.constant 0 : i32
    return %c0_i32, %c0_i32_0 : i32, i32
  }
  func.func @transform_2(%arg0: i32) -> (i32, i32) {
    %c0_i32 = arith.constant 0 : i32
    %c0_i32_0 = arith.constant 0 : i32
    %c0_i32_1 = arith.constant 0 : i32
    return %c0_i32, %c0_i32_0 : i32, i32
  }
  func.func @transform_3(%arg0: i32) -> (i32, i32) {
    %c0_i32 = arith.constant 0 : i32
    %c0_i32_0 = arith.constant 0 : i32
    %c0_i32_1 = arith.constant 0 : i32
    return %c0_i32, %c0_i32_0 : i32, i32
  }
  func.func @transform_4(%arg0: i32) -> (i32, i32) {
    %c0_i32 = arith.constant 0 : i32
    %c0_i32_0 = arith.constant 0 : i32
    %c0_i32_1 = arith.constant 0 : i32
    return %c0_i32, %c0_i32_0 : i32, i32
  }
  func.func @transform_5(%arg0: i32) -> (i32, i32) {
    %c0_i32 = arith.constant 0 : i32
    %c0_i32_0 = arith.constant 0 : i32
    %c0_i32_1 = arith.constant 0 : i32
    return %c0_i32, %c0_i32_0 : i32, i32
  }
  func.func @transform_6(%arg0: i32) -> (i32, i32) {
    %c0_i32 = arith.constant 0 : i32
    %c0_i32_0 = arith.constant 0 : i32
    %c0_i32_1 = arith.constant 0 : i32
    return %c0_i32, %c0_i32_0 : i32, i32
  }
  func.func @transform_7(%arg0: i32) -> (i32, i32) {
    %c0_i32 = arith.constant 0 : i32
    %c0_i32_0 = arith.constant 0 : i32
    %c0_i32_1 = arith.constant 0 : i32
    return %c0_i32, %c0_i32_0 : i32, i32
  }
  func.func @transform_8(%arg0: i32) -> (i32, i32) {
    %c0_i32 = arith.constant 0 : i32
    %c0_i32_0 = arith.constant 0 : i32
    %c0_i32_1 = arith.constant 0 : i32
    return %c0_i32, %c0_i32_0 : i32, i32
  }
  func.func @transform_9(%arg0: i32) -> (i32, i32) {
    %c0_i32 = arith.constant 0 : i32
    %c0_i32_0 = arith.constant 0 : i32
    return %arg0, %c0_i32 : i32, i32
  }
}

</mosaic_0001>

<llo_original>
// kernel: net_forward.1
$region0: #{net_forward.1}
  #allocation0 [shape = 'u32[]', space=smem, size = 0x4, offset = 0x4, fixed_abs, tag = 'smem constant byte address 0x4 - core index']
  #allocation1 [shape = 'u32[144,128]{1,0:T(1,128)}', space=vmem, size = 0x12000, scoped, tag = 'internal scratch']
  %s0 = inlined_call_operand.vmem [shape: f32[25,8,3264], index: 0, kind: input, shape index: {}]
  %s1 = inlined_call_operand.vmem [shape: bf16[3264,300], index: 1, kind: input, shape index: {}]
  %s2 = inlined_call_operand.vmem [shape: f32[1,300], index: 2, kind: input, shape index: {}]
  %s3 = inlined_call_operand.vmem [shape: f32[300,30], index: 3, kind: input, shape index: {}]
  %s4 = inlined_call_operand.vmem [shape: f32[1,30], index: 4, kind: input, shape index: {}]
  %s5 = inlined_call_operand.vmem [shape: f32[30,10], index: 5, kind: input, shape index: {}]
  %s6 = inlined_call_operand.vmem [shape: f32[1,10], index: 6, kind: input, shape index: {}]
  %s7 = inlined_call_operand.vmem [shape: f32[10,128], index: 7, kind: input, shape index: {}]
  %s8 = inlined_call_operand.vmem [shape: f32[1,128], index: 8, kind: input, shape index: {}]
  %s9 = inlined_call_operand.vmem [shape: f32[8,128], index: 9, kind: output, shape index: {}]
  %s10 = sld [smem:[#allocation0]]
  $region46: #{net_forward.1} parent=0
    _
  %s12 = ssub.s32 1, %s10
  %s13 = scalar_select 0, %s12, %s10
  // Predicated region
  $region2: #{net_forward.1} parent=0 // pred_check
    _
  $region3: #{net_forward.1} parent=0 // pred_check_branch
    %15 = sbr.rel (0) target = $region5
  $region4: #{net_forward.1} parent=0 // pred_region
    _
  $region5: #{net_forward.1} parent=0 // pred_fallthru
    _
  // Predicated region
  $region6: #{net_forward.1} parent=0 // pred_check
    _
  $region7: #{net_forward.1} parent=0 // pred_check_branch
    %17 = sbr.rel (0) target = $region9
  $region8: #{net_forward.1} parent=0 // pred_region
    _
  $region9: #{net_forward.1} parent=0 // pred_fallthru
    _
  // Predicated region
  $region10: #{net_forward.1} parent=0 // pred_check
    _
  $region11: #{net_forward.1} parent=0 // pred_check_branch
    %19 = sbr.rel (0) target = $region13
  $region12: #{net_forward.1} parent=0 // pred_region
    _
  $region13: #{net_forward.1} parent=0 // pred_fallthru
    _
  // Predicated region
  $region14: #{net_forward.1} parent=0 // pred_check
    _
  $region15: #{net_forward.1} parent=0 // pred_check_branch
    %21 = sbr.rel (0) target = $region17
  $region16: #{net_forward.1} parent=0 // pred_region
    _
  $region17: #{net_forward.1} parent=0 // pred_fallthru
    _
  // Predicated region
  $region18: #{net_forward.1} parent=0 // pred_check
    _
  $region19: #{net_forward.1} parent=0 // pred_check_branch
    %23 = sbr.rel (0) target = $region21
  $region20: #{net_forward.1} parent=0 // pred_region
    _
  $region21: #{net_forward.1} parent=0 // pred_fallthru
    _
  // Predicated region
  $region22: #{net_forward.1} parent=0 // pred_check
    _
  $region23: #{net_forward.1} parent=0 // pred_check_branch
    %25 = sbr.rel (0) target = $region25
  $region24: #{net_forward.1} parent=0 // pred_region
    _
  $region25: #{net_forward.1} parent=0 // pred_fallthru
    _
  // Predicated region
  $region26: #{net_forward.1} parent=0 // pred_check
    _
  $region27: #{net_forward.1} parent=0 // pred_check_branch
    %27 = sbr.rel (0) target = $region29
  $region28: #{net_forward.1} parent=0 // pred_region
    _
  $region29: #{net_forward.1} parent=0 // pred_fallthru
    _
  // Predicated region
  $region30: #{net_forward.1} parent=0 // pred_check
    _
  $region31: #{net_forward.1} parent=0 // pred_check_branch
    %29 = sbr.rel (0) target = $region33
  $region32: #{net_forward.1} parent=0 // pred_region
    _
  $region33: #{net_forward.1} parent=0 // pred_fallthru
    _
  // Predicated region
  $region34: #{net_forward.1} parent=0 // pred_check
    _
  $region35: #{net_forward.1} parent=0 // pred_check_branch
    %31 = sbr.rel (0) target = $region37
  $region36: #{net_forward.1} parent=0 // pred_region
    _
  $region37: #{net_forward.1} parent=0 // pred_fallthru
    _
  %v33 = vld [vmem:[%s0] sm:$0xff]
  %v34 = vld [vmem:[%s0 + $0x8] sm:$0xff]
  %v35 = vld [vmem:[%s0 + $0x10] sm:$0xff]
  %v36 = vld [vmem:[%s0 + $0x18] sm:$0xff]
  %v37 = vld [vmem:[%s0 + $0x20] sm:$0xff]
  %v38 = vld [vmem:[%s0 + $0x28] sm:$0xff]
  %v39 = vld [vmem:[%s0 + $0x30] sm:$0xff]
  %v40 = vld [vmem:[%s0 + $0x38] sm:$0xff]
  %v41 = vld [vmem:[%s0 + $0x40] sm:$0xff]
  %v42 = vld [vmem:[%s0 + $0x48] sm:$0xff]
  %v43 = vld [vmem:[%s0 + $0x50] sm:$0xff]
  %v44 = vld [vmem:[%s0 + $0x58] sm:$0xff]
  %v45 = vld [vmem:[%s0 + $0x60] sm:$0xff]
  %v46 = vld [vmem:[%s0 + $0x68] sm:$0xff]
  %v47 = vld [vmem:[%s0 + $0x70] sm:$0xff]
  %v48 = vld [vmem:[%s0 + $0x78] sm:$0xff]
  %v49 = vld [vmem:[%s0 + $0x80] sm:$0xff]
  %v50 = vld [vmem:[%s0 + $0x88] sm:$0xff]
  %v51 = vld [vmem:[%s0 + $0x90] sm:$0xff]
  %v52 = vld [vmem:[%s0 + $0x98] sm:$0xff]
  %v53 = vld [vmem:[%s0 + $0xa0] sm:$0xff]
  %v54 = vld [vmem:[%s0 + $0xa8] sm:$0xff]
  %v55 = vld [vmem:[%s0 + $0xb0] sm:$0xff]
  %v56 = vld [vmem:[%s0 + $0xb8] sm:$0xff]
  %v57 = vld [vmem:[%s0 + $0xc0] sm:$0xff]
  %v58 = vld [vmem:[%s0 + $0xc8] sm:$0xff]
  %s59 = scalar_lea.vmem %s0, 208
  %v60 = vld [vmem:[%s59] sm:$0xff]
  %v61 = vld [vmem:[%s59 + $0x8] sm:$0xff]
  %v62 = vld [vmem:[%s59 + $0x10] sm:$0xff]
  %v63 = vld [vmem:[%s59 + $0x18] sm:$0xff]
  %v64 = vld [vmem:[%s59 + $0x20] sm:$0xff]
  %v65 = vld [vmem:[%s59 + $0x28] sm:$0xff]
  %v66 = vld [vmem:[%s59 + $0x30] sm:$0xff]
  %v67 = vld [vmem:[%s59 + $0x38] sm:$0xff]
  %v68 = vld [vmem:[%s59 + $0x40] sm:$0xff]
  %v69 = vld [vmem:[%s59 + $0x48] sm:$0xff]
  %v70 = vld [vmem:[%s59 + $0x50] sm:$0xff]
  %v71 = vld [vmem:[%s59 + $0x58] sm:$0xff]
  %v72 = vld [vmem:[%s59 + $0x60] sm:$0xff]
  %v73 = vld [vmem:[%s59 + $0x68] sm:$0xff]
  %v74 = vld [vmem:[%s59 + $0x70] sm:$0xff]
  %v75 = vld [vmem:[%s59 + $0x78] sm:$0xff]
  %v76 = vld [vmem:[%s59 + $0x80] sm:$0xff]
  %v77 = vld [vmem:[%s59 + $0x88] sm:$0xff]
  %v78 = vld [vmem:[%s59 + $0x90] sm:$0xff]
  %v79 = vld [vmem:[%s59 + $0x98] sm:$0xff]
  %v80 = vld [vmem:[%s59 + $0xa0] sm:$0xff]
  %v81 = vld [vmem:[%s59 + $0xa8] sm:$0xff]
  %v82 = vld [vmem:[%s59 + $0xb0] sm:$0xff]
  %v83 = vld [vmem:[%s59 + $0xb8] sm:$0xff]
  %v84 = vld [vmem:[%s59 + $0xc0] sm:$0xff]
  %v85 = vld [vmem:[%s59 + $0xc8] sm:$0xff]
  %v86 = vmax.f32 %v33, %v60
  %v87 = vmax.f32 %v34, %v61
  %v88 = vmax.f32 %v35, %v62
  %v89 = vmax.f32 %v36, %v63
  %v90 = vmax.f32 %v37, %v64
  %v91 = vmax.f32 %v38, %v65
  %v92 = vmax.f32 %v39, %v66
  %v93 = vmax.f32 %v40, %v67
  %v94 = vmax.f32 %v41, %v68
  %v95 = vmax.f32 %v42, %v69
  %v96 = vmax.f32 %v43, %v70
  %v97 = vmax.f32 %v44, %v71
  %v98 = vmax.f32 %v45, %v72
  %v99 = vmax.f32 %v46, %v73
  %v100 = vmax.f32 %v47, %v74
  %v101 = vmax.f32 %v48, %v75
  %v102 = vmax.f32 %v49, %v76
  %v103 = vmax.f32 %v50, %v77
  %v104 = vmax.f32 %v51, %v78
  %v105 = vmax.f32 %v52, %v79
  %v106 = vmax.f32 %v53, %v80
  %v107 = vmax.f32 %v54, %v81
  %v108 = vmax.f32 %v55, %v82
  %v109 = vmax.f32 %v56, %v83
  %v110 = vmax.f32 %v57, %v84
  %v111 = vmax.f32 %v58, %v85
  %s112 = scalar_lea.vmem %s0, 416
  %v113 = vld [vmem:[%s112] sm:$0xff]
  %v114 = vld [vmem:[%s112 + $0x8] sm:$0xff]
  %v115 = vld [vmem:[%s112 + $0x10] sm:$0xff]
  %v116 = vld [vmem:[%s112 + $0x18] sm:$0xff]
  %v117 = vld [vmem:[%s112 + $0x20] sm:$0xff]
  %v118 = vld [vmem:[%s112 + $0x28] sm:$0xff]
  %v119 = vld [vmem:[%s112 + $0x30] sm:$0xff]
  %v120 = vld [vmem:[%s112 + $0x38] sm:$0xff]
  %v121 = vld [vmem:[%s112 + $0x40] sm:$0xff]
  %v122 = vld [vmem:[%s112 + $0x48] sm:$0xff]
  %v123 = vld [vmem:[%s112 + $0x50] sm:$0xff]
  %v124 = vld [vmem:[%s112 + $0x58] sm:$0xff]
  %v125 = vld [vmem:[%s112 + $0x60] sm:$0xff]
  %v126 = vld [vmem:[%s112 + $0x68] sm:$0xff]
  %v127 = vld [vmem:[%s112 + $0x70] sm:$0xff]
  %v128 = vld [vmem:[%s112 + $0x78] sm:$0xff]
  %v129 = vld [vmem:[%s112 + $0x80] sm:$0xff]
  %v130 = vld [vmem:[%s112 + $0x88] sm:$0xff]
  %v131 = vld [vmem:[%s112 + $0x90] sm:$0xff]
  %v132 = vld [vmem:[%s112 + $0x98] sm:$0xff]
  %v133 = vld [vmem:[%s112 + $0xa0] sm:$0xff]
  %v134 = vld [vmem:[%s112 + $0xa8] sm:$0xff]
  %v135 = vld [vmem:[%s112 + $0xb0] sm:$0xff]
  %v136 = vld [vmem:[%s112 + $0xb8] sm:$0xff]
  %v137 = vld [vmem:[%s112 + $0xc0] sm:$0xff]
  %v138 = vld [vmem:[%s112 + $0xc8] sm:$0xff]
  %v139 = vmax.f32 %v86, %v113
  %v140 = vmax.f32 %v87, %v114
  %v141 = vmax.f32 %v88, %v115
  %v142 = vmax.f32 %v89, %v116
  %v143 = vmax.f32 %v90, %v117
  %v144 = vmax.f32 %v91, %v118
  %v145 = vmax.f32 %v92, %v119
  %v146 = vmax.f32 %v93, %v120
  %v147 = vmax.f32 %v94, %v121
  %v148 = vmax.f32 %v95, %v122
  %v149 = vmax.f32 %v96, %v123
  %v150 = vmax.f32 %v97, %v124
  %v151 = vmax.f32 %v98, %v125
  %v152 = vmax.f32 %v99, %v126
  %v153 = vmax.f32 %v100, %v127
  %v154 = vmax.f32 %v101, %v128
  %v155 = vmax.f32 %v102, %v129
  %v156 = vmax.f32 %v103, %v130
  %v157 = vmax.f32 %v104, %v131
  %v158 = vmax.f32 %v105, %v132
  %v159 = vmax.f32 %v106, %v133
  %v160 = vmax.f32 %v107, %v134
  %v161 = vmax.f32 %v108, %v135
  %v162 = vmax.f32 %v109, %v136
  %v163 = vmax.f32 %v110, %v137
  %v164 = vmax.f32 %v111, %v138
  %s165 = scalar_lea.vmem %s0, 624
  %v166 = vld [vmem:[%s165] sm:$0xff]
  %v167 = vld [vmem:[%s165 + $0x8] sm:$0xff]
  %v168 = vld [vmem:[%s165 + $0x10] sm:$0xff]
  %v169 = vld [vmem:[%s165 + $0x18] sm:$0xff]
  %v170 = vld [vmem:[%s165 + $0x20] sm:$0xff]
  %v171 = vld [vmem:[%s165 + $0x28] sm:$0xff]
  %v172 = vld [vmem:[%s165 + $0x30] sm:$0xff]
  %v173 = vld [vmem:[%s165 + $0x38] sm:$0xff]
  %v174 = vld [vmem:[%s165 + $0x40] sm:$0xff]
  %v175 = vld [vmem:[%s165 + $0x48] sm:$0xff]
  %v176 = vld [vmem:[%s165 + $0x50] sm:$0xff]
  %v177 = vld [vmem:[%s165 + $0x58] sm:$0xff]
  %v178 = vld [vmem:[%s165 + $0x60] sm:$0xff]
  %v179 = vld [vmem:[%s165 + $0x68] sm:$0xff]
  %v180 = vld [vmem:[%s165 + $0x70] sm:$0xff]
  %v181 = vld [vmem:[%s165 + $0x78] sm:$0xff]
  %v182 = vld [vmem:[%s165 + $0x80] sm:$0xff]
  %v183 = vld [vmem:[%s165 + $0x88] sm:$0xff]
  %v184 = vld [vmem:[%s165 + $0x90] sm:$0xff]
  %v185 = vld [vmem:[%s165 + $0x98] sm:$0xff]
  %v186 = vld [vmem:[%s165 + $0xa0] sm:$0xff]
  %v187 = vld [vmem:[%s165 + $0xa8] sm:$0xff]
  %v188 = vld [vmem:[%s165 + $0xb0] sm:$0xff]
  %v189 = vld [vmem:[%s165 + $0xb8] sm:$0xff]
  %v190 = vld [vmem:[%s165 + $0xc0] sm:$0xff]
  %v191 = vld [vmem:[%s165 + $0xc8] sm:$0xff]
  %v192 = vmax.f32 %v139, %v166
  %v193 = vmax.f32 %v140, %v167
  %v194 = vmax.f32 %v141, %v168
  %v195 = vmax.f32 %v142, %v169
  %v196 = vmax.f32 %v143, %v170
  %v197 = vmax.f32 %v144, %v171
  %v198 = vmax.f32 %v145, %v172
  %v199 = vmax.f32 %v146, %v173
  %v200 = vmax.f32 %v147, %v174
  %v201 = vmax.f32 %v148, %v175
  %v202 = vmax.f32 %v149, %v176
  %v203 = vmax.f32 %v150, %v177
  %v204 = vmax.f32 %v151, %v178
  %v205 = vmax.f32 %v152, %v179
  %v206 = vmax.f32 %v153, %v180
  %v207 = vmax.f32 %v154, %v181
  %v208 = vmax.f32 %v155, %v182
  %v209 = vmax.f32 %v156, %v183
  %v210 = vmax.f32 %v157, %v184
  %v211 = vmax.f32 %v158, %v185
  %v212 = vmax.f32 %v159, %v186
  %v213 = vmax.f32 %v160, %v187
  %v214 = vmax.f32 %v161, %v188
  %v215 = vmax.f32 %v162, %v189
  %v216 = vmax.f32 %v163, %v190
  %v217 = vmax.f32 %v164, %v191
  %s218 = scalar_lea.vmem %s0, 832
  %v219 = vld [vmem:[%s218] sm:$0xff]
  %v220 = vld [vmem:[%s218 + $0x8] sm:$0xff]
  %v221 = vld [vmem:[%s218 + $0x10] sm:$0xff]
  %v222 = vld [vmem:[%s218 + $0x18] sm:$0xff]
  %v223 = vld [vmem:[%s218 + $0x20] sm:$0xff]
  %v224 = vld [vmem:[%s218 + $0x28] sm:$0xff]
  %v225 = vld [vmem:[%s218 + $0x30] sm:$0xff]
  %v226 = vld [vmem:[%s218 + $0x38] sm:$0xff]
  %v227 = vld [vmem:[%s218 + $0x40] sm:$0xff]
  %v228 = vld [vmem:[%s218 + $0x48] sm:$0xff]
  %v229 = vld [vmem:[%s218 + $0x50] sm:$0xff]
  %v230 = vld [vmem:[%s218 + $0x58] sm:$0xff]
  %v231 = vld [vmem:[%s218 + $0x60] sm:$0xff]
  %v232 = vld [vmem:[%s218 + $0x68] sm:$0xff]
  %v233 = vld [vmem:[%s218 + $0x70] sm:$0xff]
  %v234 = vld [vmem:[%s218 + $0x78] sm:$0xff]
  %v235 = vld [vmem:[%s218 + $0x80] sm:$0xff]
  %v236 = vld [vmem:[%s218 + $0x88] sm:$0xff]
  %v237 = vld [vmem:[%s218 + $0x90] sm:$0xff]
  %v238 = vld [vmem:[%s218 + $0x98] sm:$0xff]
  %v239 = vld [vmem:[%s218 + $0xa0] sm:$0xff]
  %v240 = vld [vmem:[%s218 + $0xa8] sm:$0xff]
  %v241 = vld [vmem:[%s218 + $0xb0] sm:$0xff]
  %v242 = vld [vmem:[%s218 + $0xb8] sm:$0xff]
  %v243 = vld [vmem:[%s218 + $0xc0] sm:$0xff]
  %v244 = vld [vmem:[%s218 + $0xc8] sm:$0xff]
  %v245 = vmax.f32 %v192, %v219
  %v246 = vmax.f32 %v193, %v220
  %v247 = vmax.f32 %v194, %v221
  %v248 = vmax.f32 %v195, %v222
  %v249 = vmax.f32 %v196, %v223
  %v250 = vmax.f32 %v197, %v224
  %v251 = vmax.f32 %v198, %v225
  %v252 = vmax.f32 %v199, %v226
  %v253 = vmax.f32 %v200, %v227
  %v254 = vmax.f32 %v201, %v228
  %v255 = vmax.f32 %v202, %v229
  %v256 = vmax.f32 %v203, %v230
  %v257 = vmax.f32 %v204, %v231
  %v258 = vmax.f32 %v205, %v232
  %v259 = vmax.f32 %v206, %v233
  %v260 = vmax.f32 %v207, %v234
  %v261 = vmax.f32 %v208, %v235
  %v262 = vmax.f32 %v209, %v236
  %v263 = vmax.f32 %v210, %v237
  %v264 = vmax.f32 %v211, %v238
  %v265 = vmax.f32 %v212, %v239
  %v266 = vmax.f32 %v213, %v240
  %v267 = vmax.f32 %v214, %v241
  %v268 = vmax.f32 %v215, %v242
  %v269 = vmax.f32 %v216, %v243
  %v270 = vmax.f32 %v217, %v244
  %s271 = scalar_lea.vmem %s0, 1040
  %v272 = vld [vmem:[%s271] sm:$0xff]
  %v273 = vld [vmem:[%s271 + $0x8] sm:$0xff]
  %v274 = vld [vmem:[%s271 + $0x10] sm:$0xff]
  %v275 = vld [vmem:[%s271 + $0x18] sm:$0xff]
  %v276 = vld [vmem:[%s271 + $0x20] sm:$0xff]
  %v277 = vld [vmem:[%s271 + $0x28] sm:$0xff]
  %v278 = vld [vmem:[%s271 + $0x30] sm:$0xff]
  %v279 = vld [vmem:[%s271 + $0x38] sm:$0xff]
  %v280 = vld [vmem:[%s271 + $0x40] sm:$0xff]
  %v281 = vld [vmem:[%s271 + $0x48] sm:$0xff]
  %v282 = vld [vmem:[%s271 + $0x50] sm:$0xff]
  %v283 = vld [vmem:[%s271 + $0x58] sm:$0xff]
  %v284 = vld [vmem:[%s271 + $0x60] sm:$0xff]
  %v285 = vld [vmem:[%s271 + $0x68] sm:$0xff]
  %v286 = vld [vmem:[%s271 + $0x70] sm:$0xff]
  %v287 = vld [vmem:[%s271 + $0x78] sm:$0xff]
  %v288 = vld [vmem:[%s271 + $0x80] sm:$0xff]
  %v289 = vld [vmem:[%s271 + $0x88] sm:$0xff]
  %v290 = vld [vmem:[%s271 + $0x90] sm:$0xff]
  %v291 = vld [vmem:[%s271 + $0x98] sm:$0xff]
  %v292 = vld [vmem:[%s271 + $0xa0] sm:$0xff]
  %v293 = vld [vmem:[%s271 + $0xa8] sm:$0xff]
  %v294 = vld [vmem:[%s271 + $0xb0] sm:$0xff]
  %v295 = vld [vmem:[%s271 + $0xb8] sm:$0xff]
  %v296 = vld [vmem:[%s271 + $0xc0] sm:$0xff]
  %v297 = vld [vmem:[%s271 + $0xc8] sm:$0xff]
  %v298 = vmax.f32 %v245, %v272
  %v299 = vmax.f32 %v246, %v273
  %v300 = vmax.f32 %v247, %v274
  %v301 = vmax.f32 %v248, %v275
  %v302 = vmax.f32 %v249, %v276
  %v303 = vmax.f32 %v250, %v277
  %v304 = vmax.f32 %v251, %v278
  %v305 = vmax.f32 %v252, %v279
  %v306 = vmax.f32 %v253, %v280
  %v307 = vmax.f32 %v254, %v281
  %v308 = vmax.f32 %v255, %v282
  %v309 = vmax.f32 %v256, %v283
  %v310 = vmax.f32 %v257, %v284
  %v311 = vmax.f32 %v258, %v285
  %v312 = vmax.f32 %v259, %v286
  %v313 = vmax.f32 %v260, %v287
  %v314 = vmax.f32 %v261, %v288
  %v315 = vmax.f32 %v262, %v289
  %v316 = vmax.f32 %v263, %v290
  %v317 = vmax.f32 %v264, %v291
  %v318 = vmax.f32 %v265, %v292
  %v319 = vmax.f32 %v266, %v293
  %v320 = vmax.f32 %v267, %v294
  %v321 = vmax.f32 %v268, %v295
  %v322 = vmax.f32 %v269, %v296
  %v323 = vmax.f32 %v270, %v297
  %s324 = scalar_lea.vmem %s0, 1248
  %v325 = vld [vmem:[%s324] sm:$0xff]
  %v326 = vld [vmem:[%s324 + $0x8] sm:$0xff]
  %v327 = vld [vmem:[%s324 + $0x10] sm:$0xff]
  %v328 = vld [vmem:[%s324 + $0x18] sm:$0xff]
  %v329 = vld [vmem:[%s324 + $0x20] sm:$0xff]
  %v330 = vld [vmem:[%s324 + $0x28] sm:$0xff]
  %v331 = vld [vmem:[%s324 + $0x30] sm:$0xff]
  %v332 = vld [vmem:[%s324 + $0x38] sm:$0xff]
  %v333 = vld [vmem:[%s324 + $0x40] sm:$0xff]
  %v334 = vld [vmem:[%s324 + $0x48] sm:$0xff]
  %v335 = vld [vmem:[%s324 + $0x50] sm:$0xff]
  %v336 = vld [vmem:[%s324 + $0x58] sm:$0xff]
  %v337 = vld [vmem:[%s324 + $0x60] sm:$0xff]
  %v338 = vld [vmem:[%s324 + $0x68] sm:$0xff]
  %v339 = vld [vmem:[%s324 + $0x70] sm:$0xff]
  %v340 = vld [vmem:[%s324 + $0x78] sm:$0xff]
  %v341 = vld [vmem:[%s324 + $0x80] sm:$0xff]
  %v342 = vld [vmem:[%s324 + $0x88] sm:$0xff]
  %v343 = vld [vmem:[%s324 + $0x90] sm:$0xff]
  %v344 = vld [vmem:[%s324 + $0x98] sm:$0xff]
  %v345 = vld [vmem:[%s324 + $0xa0] sm:$0xff]
  %v346 = vld [vmem:[%s324 + $0xa8] sm:$0xff]
  %v347 = vld [vmem:[%s324 + $0xb0] sm:$0xff]
  %v348 = vld [vmem:[%s324 + $0xb8] sm:$0xff]
  %v349 = vld [vmem:[%s324 + $0xc0] sm:$0xff]
  %v350 = vld [vmem:[%s324 + $0xc8] sm:$0xff]
  %v351 = vmax.f32 %v298, %v325
  %v352 = vmax.f32 %v299, %v326
  %v353 = vmax.f32 %v300, %v327
  %v354 = vmax.f32 %v301, %v328
  %v355 = vmax.f32 %v302, %v329
  %v356 = vmax.f32 %v303, %v330
  %v357 = vmax.f32 %v304, %v331
  %v358 = vmax.f32 %v305, %v332
  %v359 = vmax.f32 %v306, %v333
  %v360 = vmax.f32 %v307, %v334
  %v361 = vmax.f32 %v308, %v335
  %v362 = vmax.f32 %v309, %v336
  %v363 = vmax.f32 %v310, %v337
  %v364 = vmax.f32 %v311, %v338
  %v365 = vmax.f32 %v312, %v339
  %v366 = vmax.f32 %v313, %v340
  %v367 = vmax.f32 %v314, %v341
  %v368 = vmax.f32 %v315, %v342
  %v369 = vmax.f32 %v316, %v343
  %v370 = vmax.f32 %v317, %v344
  %v371 = vmax.f32 %v318, %v345
  %v372 = vmax.f32 %v319, %v346
  %v373 = vmax.f32 %v320, %v347
  %v374 = vmax.f32 %v321, %v348
  %v375 = vmax.f32 %v322, %v349
  %v376 = vmax.f32 %v323, %v350
  %s377 = scalar_lea.vmem %s0, 1456
  %v378 = vld [vmem:[%s377] sm:$0xff]
  %v379 = vld [vmem:[%s377 + $0x8] sm:$0xff]
  %v380 = vld [vmem:[%s377 + $0x10] sm:$0xff]
  %v381 = vld [vmem:[%s377 + $0x18] sm:$0xff]
  %v382 = vld [vmem:[%s377 + $0x20] sm:$0xff]
  %v383 = vld [vmem:[%s377 + $0x28] sm:$0xff]
  %v384 = vld [vmem:[%s377 + $0x30] sm:$0xff]
  %v385 = vld [vmem:[%s377 + $0x38] sm:$0xff]
  %v386 = vld [vmem:[%s377 + $0x40] sm:$0xff]
  %v387 = vld [vmem:[%s377 + $0x48] sm:$0xff]
  %v388 = vld [vmem:[%s377 + $0x50] sm:$0xff]
  %v389 = vld [vmem:[%s377 + $0x58] sm:$0xff]
  %v390 = vld [vmem:[%s377 + $0x60] sm:$0xff]
  %v391 = vld [vmem:[%s377 + $0x68] sm:$0xff]
  %v392 = vld [vmem:[%s377 + $0x70] sm:$0xff]
  %v393 = vld [vmem:[%s377 + $0x78] sm:$0xff]
  %v394 = vld [vmem:[%s377 + $0x80] sm:$0xff]
  %v395 = vld [vmem:[%s377 + $0x88] sm:$0xff]
  %v396 = vld [vmem:[%s377 + $0x90] sm:$0xff]
  %v397 = vld [vmem:[%s377 + $0x98] sm:$0xff]
  %v398 = vld [vmem:[%s377 + $0xa0] sm:$0xff]
  %v399 = vld [vmem:[%s377 + $0xa8] sm:$0xff]
  %v400 = vld [vmem:[%s377 + $0xb0] sm:$0xff]
  %v401 = vld [vmem:[%s377 + $0xb8] sm:$0xff]
  %v402 = vld [vmem:[%s377 + $0xc0] sm:$0xff]
  %v403 = vld [vmem:[%s377 + $0xc8] sm:$0xff]
  %v404 = vmax.f32 %v351, %v378
  %v405 = vmax.f32 %v352, %v379
  %v406 = vmax.f32 %v353, %v380
  %v407 = vmax.f32 %v354, %v381
  %v408 = vmax.f32 %v355, %v382
  %v409 = vmax.f32 %v356, %v383
  %v410 = vmax.f32 %v357, %v384
  %v411 = vmax.f32 %v358, %v385
  %v412 = vmax.f32 %v359, %v386
  %v413 = vmax.f32 %v360, %v387
  %v414 = vmax.f32 %v361, %v388
  %v415 = vmax.f32 %v362, %v389
  %v416 = vmax.f32 %v363, %v390
  %v417 = vmax.f32 %v364, %v391
  %v418 = vmax.f32 %v365, %v392
  %v419 = vmax.f32 %v366, %v393
  %v420 = vmax.f32 %v367, %v394
  %v421 = vmax.f32 %v368, %v395
  %v422 = vmax.f32 %v369, %v396
  %v423 = vmax.f32 %v370, %v397
  %v424 = vmax.f32 %v371, %v398
  %v425 = vmax.f32 %v372, %v399
  %v426 = vmax.f32 %v373, %v400
  %v427 = vmax.f32 %v374, %v401
  %v428 = vmax.f32 %v375, %v402
  %v429 = vmax.f32 %v376, %v403
  %s430 = scalar_lea.vmem %s0, 1664
  %v431 = vld [vmem:[%s430] sm:$0xff]
  %v432 = vld [vmem:[%s430 + $0x8] sm:$0xff]
  %v433 = vld [vmem:[%s430 + $0x10] sm:$0xff]
  %v434 = vld [vmem:[%s430 + $0x18] sm:$0xff]
  %v435 = vld [vmem:[%s430 + $0x20] sm:$0xff]
  %v436 = vld [vmem:[%s430 + $0x28] sm:$0xff]
  %v437 = vld [vmem:[%s430 + $0x30] sm:$0xff]
  %v438 = vld [vmem:[%s430 + $0x38] sm:$0xff]
  %v439 = vld [vmem:[%s430 + $0x40] sm:$0xff]
  %v440 = vld [vmem:[%s430 + $0x48] sm:$0xff]
  %v441 = vld [vmem:[%s430 + $0x50] sm:$0xff]
  %v442 = vld [vmem:[%s430 + $0x58] sm:$0xff]
  %v443 = vld [vmem:[%s430 + $0x60] sm:$0xff]
  %v444 = vld [vmem:[%s430 + $0x68] sm:$0xff]
  %v445 = vld [vmem:[%s430 + $0x70] sm:$0xff]
  %v446 = vld [vmem:[%s430 + $0x78] sm:$0xff]
  %v447 = vld [vmem:[%s430 + $0x80] sm:$0xff]
  %v448 = vld [vmem:[%s430 + $0x88] sm:$0xff]
  %v449 = vld [vmem:[%s430 + $0x90] sm:$0xff]
  %v450 = vld [vmem:[%s430 + $0x98] sm:$0xff]
  %v451 = vld [vmem:[%s430 + $0xa0] sm:$0xff]
  %v452 = vld [vmem:[%s430 + $0xa8] sm:$0xff]
  %v453 = vld [vmem:[%s430 + $0xb0] sm:$0xff]
  %v454 = vld [vmem:[%s430 + $0xb8] sm:$0xff]
  %v455 = vld [vmem:[%s430 + $0xc0] sm:$0xff]
  %v456 = vld [vmem:[%s430 + $0xc8] sm:$0xff]
  %v457 = vmax.f32 %v404, %v431
  %v458 = vmax.f32 %v405, %v432
  %v459 = vmax.f32 %v406, %v433
  %v460 = vmax.f32 %v407, %v434
  %v461 = vmax.f32 %v408, %v435
  %v462 = vmax.f32 %v409, %v436
  %v463 = vmax.f32 %v410, %v437
  %v464 = vmax.f32 %v411, %v438
  %v465 = vmax.f32 %v412, %v439
  %v466 = vmax.f32 %v413, %v440
  %v467 = vmax.f32 %v414, %v441
  %v468 = vmax.f32 %v415, %v442
  %v469 = vmax.f32 %v416, %v443
  %v470 = vmax.f32 %v417, %v444
  %v471 = vmax.f32 %v418, %v445
  %v472 = vmax.f32 %v419, %v446
  %v473 = vmax.f32 %v420, %v447
  %v474 = vmax.f32 %v421, %v448
  %v475 = vmax.f32 %v422, %v449
  %v476 = vmax.f32 %v423, %v450
  %v477 = vmax.f32 %v424, %v451
  %v478 = vmax.f32 %v425, %v452
  %v479 = vmax.f32 %v426, %v453
  %v480 = vmax.f32 %v427, %v454
  %v481 = vmax.f32 %v428, %v455
  %v482 = vmax.f32 %v429, %v456
  %s483 = scalar_lea.vmem %s0, 1872
  %v484 = vld [vmem:[%s483] sm:$0xff]
  %v485 = vld [vmem:[%s483 + $0x8] sm:$0xff]
  %v486 = vld [vmem:[%s483 + $0x10] sm:$0xff]
  %v487 = vld [vmem:[%s483 + $0x18] sm:$0xff]
  %v488 = vld [vmem:[%s483 + $0x20] sm:$0xff]
  %v489 = vld [vmem:[%s483 + $0x28] sm:$0xff]
  %v490 = vld [vmem:[%s483 + $0x30] sm:$0xff]
  %v491 = vld [vmem:[%s483 + $0x38] sm:$0xff]
  %v492 = vld [vmem:[%s483 + $0x40] sm:$0xff]
  %v493 = vld [vmem:[%s483 + $0x48] sm:$0xff]
  %v494 = vld [vmem:[%s483 + $0x50] sm:$0xff]
  %v495 = vld [vmem:[%s483 + $0x58] sm:$0xff]
  %v496 = vld [vmem:[%s483 + $0x60] sm:$0xff]
  %v497 = vld [vmem:[%s483 + $0x68] sm:$0xff]
  %v498 = vld [vmem:[%s483 + $0x70] sm:$0xff]
  %v499 = vld [vmem:[%s483 + $0x78] sm:$0xff]
  %v500 = vld [vmem:[%s483 + $0x80] sm:$0xff]
  %v501 = vld [vmem:[%s483 + $0x88] sm:$0xff]
  %v502 = vld [vmem:[%s483 + $0x90] sm:$0xff]
  %v503 = vld [vmem:[%s483 + $0x98] sm:$0xff]
  %v504 = vld [vmem:[%s483 + $0xa0] sm:$0xff]
  %v505 = vld [vmem:[%s483 + $0xa8] sm:$0xff]
  %v506 = vld [vmem:[%s483 + $0xb0] sm:$0xff]
  %v507 = vld [vmem:[%s483 + $0xb8] sm:$0xff]
  %v508 = vld [vmem:[%s483 + $0xc0] sm:$0xff]
  %v509 = vld [vmem:[%s483 + $0xc8] sm:$0xff]
  %v510 = vmax.f32 %v457, %v484
  %v511 = vmax.f32 %v458, %v485
  %v512 = vmax.f32 %v459, %v486
  %v513 = vmax.f32 %v460, %v487
  %v514 = vmax.f32 %v461, %v488
  %v515 = vmax.f32 %v462, %v489
  %v516 = vmax.f32 %v463, %v490
  %v517 = vmax.f32 %v464, %v491
  %v518 = vmax.f32 %v465, %v492
  %v519 = vmax.f32 %v466, %v493
  %v520 = vmax.f32 %v467, %v494
  %v521 = vmax.f32 %v468, %v495
  %v522 = vmax.f32 %v469, %v496
  %v523 = vmax.f32 %v470, %v497
  %v524 = vmax.f32 %v471, %v498
  %v525 = vmax.f32 %v472, %v499
  %v526 = vmax.f32 %v473, %v500
  %v527 = vmax.f32 %v474, %v501
  %v528 = vmax.f32 %v475, %v502
  %v529 = vmax.f32 %v476, %v503
  %v530 = vmax.f32 %v477, %v504
  %v531 = vmax.f32 %v478, %v505
  %v532 = vmax.f32 %v479, %v506
  %v533 = vmax.f32 %v480, %v507
  %v534 = vmax.f32 %v481, %v508
  %v535 = vmax.f32 %v482, %v509
  %s536 = scalar_lea.vmem %s0, 2080
  %v537 = vld [vmem:[%s536] sm:$0xff]
  %v538 = vld [vmem:[%s536 + $0x8] sm:$0xff]
  %v539 = vld [vmem:[%s536 + $0x10] sm:$0xff]
  %v540 = vld [vmem:[%s536 + $0x18] sm:$0xff]
  %v541 = vld [vmem:[%s536 + $0x20] sm:$0xff]
  %v542 = vld [vmem:[%s536 + $0x28] sm:$0xff]
  %v543 = vld [vmem:[%s536 + $0x30] sm:$0xff]
  %v544 = vld [vmem:[%s536 + $0x38] sm:$0xff]
  %v545 = vld [vmem:[%s536 + $0x40] sm:$0xff]
  %v546 = vld [vmem:[%s536 + $0x48] sm:$0xff]
  %v547 = vld [vmem:[%s536 + $0x50] sm:$0xff]
  %v548 = vld [vmem:[%s536 + $0x58] sm:$0xff]
  %v549 = vld [vmem:[%s536 + $0x60] sm:$0xff]
  %v550 = vld [vmem:[%s536 + $0x68] sm:$0xff]
  %v551 = vld [vmem:[%s536 + $0x70] sm:$0xff]
  %v552 = vld [vmem:[%s536 + $0x78] sm:$0xff]
  %v553 = vld [vmem:[%s536 + $0x80] sm:$0xff]
  %v554 = vld [vmem:[%s536 + $0x88] sm:$0xff]
  %v555 = vld [vmem:[%s536 + $0x90] sm:$0xff]
  %v556 = vld [vmem:[%s536 + $0x98] sm:$0xff]
  %v557 = vld [vmem:[%s536 + $0xa0] sm:$0xff]
  %v558 = vld [vmem:[%s536 + $0xa8] sm:$0xff]
  %v559 = vld [vmem:[%s536 + $0xb0] sm:$0xff]
  %v560 = vld [vmem:[%s536 + $0xb8] sm:$0xff]
  %v561 = vld [vmem:[%s536 + $0xc0] sm:$0xff]
  %v562 = vld [vmem:[%s536 + $0xc8] sm:$0xff]
  %v563 = vmax.f32 %v510, %v537
  %v564 = vmax.f32 %v511, %v538
  %v565 = vmax.f32 %v512, %v539
  %v566 = vmax.f32 %v513, %v540
  %v567 = vmax.f32 %v514, %v541
  %v568 = vmax.f32 %v515, %v542
  %v569 = vmax.f32 %v516, %v543
  %v570 = vmax.f32 %v517, %v544
  %v571 = vmax.f32 %v518, %v545
  %v572 = vmax.f32 %v519, %v546
  %v573 = vmax.f32 %v520, %v547
  %v574 = vmax.f32 %v521, %v548
  %v575 = vmax.f32 %v522, %v549
  %v576 = vmax.f32 %v523, %v550
  %v577 = vmax.f32 %v524, %v551
  %v578 = vmax.f32 %v525, %v552
  %v579 = vmax.f32 %v526, %v553
  %v580 = vmax.f32 %v527, %v554
  %v581 = vmax.f32 %v528, %v555
  %v582 = vmax.f32 %v529, %v556
  %v583 = vmax.f32 %v530, %v557
  %v584 = vmax.f32 %v531, %v558
  %v585 = vmax.f32 %v532, %v559
  %v586 = vmax.f32 %v533, %v560
  %v587 = vmax.f32 %v534, %v561
  %v588 = vmax.f32 %v535, %v562
  %s589 = scalar_lea.vmem %s0, 2288
  %v590 = vld [vmem:[%s589] sm:$0xff]
  %v591 = vld [vmem:[%s589 + $0x8] sm:$0xff]
  %v592 = vld [vmem:[%s589 + $0x10] sm:$0xff]
  %v593 = vld [vmem:[%s589 + $0x18] sm:$0xff]
  %v594 = vld [vmem:[%s589 + $0x20] sm:$0xff]
  %v595 = vld [vmem:[%s589 + $0x28] sm:$0xff]
  %v596 = vld [vmem:[%s589 + $0x30] sm:$0xff]
  %v597 = vld [vmem:[%s589 + $0x38] sm:$0xff]
  %v598 = vld [vmem:[%s589 + $0x40] sm:$0xff]
  %v599 = vld [vmem:[%s589 + $0x48] sm:$0xff]
  %v600 = vld [vmem:[%s589 + $0x50] sm:$0xff]
  %v601 = vld [vmem:[%s589 + $0x58] sm:$0xff]
  %v602 = vld [vmem:[%s589 + $0x60] sm:$0xff]
  %v603 = vld [vmem:[%s589 + $0x68] sm:$0xff]
  %v604 = vld [vmem:[%s589 + $0x70] sm:$0xff]
  %v605 = vld [vmem:[%s589 + $0x78] sm:$0xff]
  %v606 = vld [vmem:[%s589 + $0x80] sm:$0xff]
  %v607 = vld [vmem:[%s589 + $0x88] sm:$0xff]
  %v608 = vld [vmem:[%s589 + $0x90] sm:$0xff]
  %v609 = vld [vmem:[%s589 + $0x98] sm:$0xff]
  %v610 = vld [vmem:[%s589 + $0xa0] sm:$0xff]
  %v611 = vld [vmem:[%s589 + $0xa8] sm:$0xff]
  %v612 = vld [vmem:[%s589 + $0xb0] sm:$0xff]
  %v613 = vld [vmem:[%s589 + $0xb8] sm:$0xff]
  %v614 = vld [vmem:[%s589 + $0xc0] sm:$0xff]
  %v615 = vld [vmem:[%s589 + $0xc8] sm:$0xff]
  %v616 = vmax.f32 %v563, %v590
  %v617 = vmax.f32 %v564, %v591
  %v618 = vmax.f32 %v565, %v592
  %v619 = vmax.f32 %v566, %v593
  %v620 = vmax.f32 %v567, %v594
  %v621 = vmax.f32 %v568, %v595
  %v622 = vmax.f32 %v569, %v596
  %v623 = vmax.f32 %v570, %v597
  %v624 = vmax.f32 %v571, %v598
  %v625 = vmax.f32 %v572, %v599
  %v626 = vmax.f32 %v573, %v600
  %v627 = vmax.f32 %v574, %v601
  %v628 = vmax.f32 %v575, %v602
  %v629 = vmax.f32 %v576, %v603
  %v630 = vmax.f32 %v577, %v604
  %v631 = vmax.f32 %v578, %v605
  %v632 = vmax.f32 %v579, %v606
  %v633 = vmax.f32 %v580, %v607
  %v634 = vmax.f32 %v581, %v608
  %v635 = vmax.f32 %v582, %v609
  %v636 = vmax.f32 %v583, %v610
  %v637 = vmax.f32 %v584, %v611
  %v638 = vmax.f32 %v585, %v612
  %v639 = vmax.f32 %v586, %v613
  %v640 = vmax.f32 %v587, %v614
  %v641 = vmax.f32 %v588, %v615
  %s642 = scalar_lea.vmem %s0, 2496
  %v643 = vld [vmem:[%s642] sm:$0xff]
  %v644 = vld [vmem:[%s642 + $0x8] sm:$0xff]
  %v645 = vld [vmem:[%s642 + $0x10] sm:$0xff]
  %v646 = vld [vmem:[%s642 + $0x18] sm:$0xff]
  %v647 = vld [vmem:[%s642 + $0x20] sm:$0xff]
  %v648 = vld [vmem:[%s642 + $0x28] sm:$0xff]
  %v649 = vld [vmem:[%s642 + $0x30] sm:$0xff]
  %v650 = vld [vmem:[%s642 + $0x38] sm:$0xff]
  %v651 = vld [vmem:[%s642 + $0x40] sm:$0xff]
  %v652 = vld [vmem:[%s642 + $0x48] sm:$0xff]
  %v653 = vld [vmem:[%s642 + $0x50] sm:$0xff]
  %v654 = vld [vmem:[%s642 + $0x58] sm:$0xff]
  %v655 = vld [vmem:[%s642 + $0x60] sm:$0xff]
  %v656 = vld [vmem:[%s642 + $0x68] sm:$0xff]
  %v657 = vld [vmem:[%s642 + $0x70] sm:$0xff]
  %v658 = vld [vmem:[%s642 + $0x78] sm:$0xff]
  %v659 = vld [vmem:[%s642 + $0x80] sm:$0xff]
  %v660 = vld [vmem:[%s642 + $0x88] sm:$0xff]
  %v661 = vld [vmem:[%s642 + $0x90] sm:$0xff]
  %v662 = vld [vmem:[%s642 + $0x98] sm:$0xff]
  %v663 = vld [vmem:[%s642 + $0xa0] sm:$0xff]
  %v664 = vld [vmem:[%s642 + $0xa8] sm:$0xff]
  %v665 = vld [vmem:[%s642 + $0xb0] sm:$0xff]
  %v666 = vld [vmem:[%s642 + $0xb8] sm:$0xff]
  %v667 = vld [vmem:[%s642 + $0xc0] sm:$0xff]
  %v668 = vld [vmem:[%s642 + $0xc8] sm:$0xff]
  %v669 = vmax.f32 %v616, %v643
  %v670 = vmax.f32 %v617, %v644
  %v671 = vmax.f32 %v618, %v645
  %v672 = vmax.f32 %v619, %v646
  %v673 = vmax.f32 %v620, %v647
  %v674 = vmax.f32 %v621, %v648
  %v675 = vmax.f32 %v622, %v649
  %v676 = vmax.f32 %v623, %v650
  %v677 = vmax.f32 %v624, %v651
  %v678 = vmax.f32 %v625, %v652
  %v679 = vmax.f32 %v626, %v653
  %v680 = vmax.f32 %v627, %v654
  %v681 = vmax.f32 %v628, %v655
  %v682 = vmax.f32 %v629, %v656
  %v683 = vmax.f32 %v630, %v657
  %v684 = vmax.f32 %v631, %v658
  %v685 = vmax.f32 %v632, %v659
  %v686 = vmax.f32 %v633, %v660
  %v687 = vmax.f32 %v634, %v661
  %v688 = vmax.f32 %v635, %v662
  %v689 = vmax.f32 %v636, %v663
  %v690 = vmax.f32 %v637, %v664
  %v691 = vmax.f32 %v638, %v665
  %v692 = vmax.f32 %v639, %v666
  %v693 = vmax.f32 %v640, %v667
  %v694 = vmax.f32 %v641, %v668
  %s695 = scalar_lea.vmem %s0, 2704
  %v696 = vld [vmem:[%s695] sm:$0xff]
  %v697 = vld [vmem:[%s695 + $0x8] sm:$0xff]
  %v698 = vld [vmem:[%s695 + $0x10] sm:$0xff]
  %v699 = vld [vmem:[%s695 + $0x18] sm:$0xff]
  %v700 = vld [vmem:[%s695 + $0x20] sm:$0xff]
  %v701 = vld [vmem:[%s695 + $0x28] sm:$0xff]
  %v702 = vld [vmem:[%s695 + $0x30] sm:$0xff]
  %v703 = vld [vmem:[%s695 + $0x38] sm:$0xff]
  %v704 = vld [vmem:[%s695 + $0x40] sm:$0xff]
  %v705 = vld [vmem:[%s695 + $0x48] sm:$0xff]
  %v706 = vld [vmem:[%s695 + $0x50] sm:$0xff]
  %v707 = vld [vmem:[%s695 + $0x58] sm:$0xff]
  %v708 = vld [vmem:[%s695 + $0x60] sm:$0xff]
  %v709 = vld [vmem:[%s695 + $0x68] sm:$0xff]
  %v710 = vld [vmem:[%s695 + $0x70] sm:$0xff]
  %v711 = vld [vmem:[%s695 + $0x78] sm:$0xff]
  %v712 = vld [vmem:[%s695 + $0x80] sm:$0xff]
  %v713 = vld [vmem:[%s695 + $0x88] sm:$0xff]
  %v714 = vld [vmem:[%s695 + $0x90] sm:$0xff]
  %v715 = vld [vmem:[%s695 + $0x98] sm:$0xff]
  %v716 = vld [vmem:[%s695 + $0xa0] sm:$0xff]
  %v717 = vld [vmem:[%s695 + $0xa8] sm:$0xff]
  %v718 = vld [vmem:[%s695 + $0xb0] sm:$0xff]
  %v719 = vld [vmem:[%s695 + $0xb8] sm:$0xff]
  %v720 = vld [vmem:[%s695 + $0xc0] sm:$0xff]
  %v721 = vld [vmem:[%s695 + $0xc8] sm:$0xff]
  %v722 = vmax.f32 %v669, %v696
  %v723 = vmax.f32 %v670, %v697
  %v724 = vmax.f32 %v671, %v698
  %v725 = vmax.f32 %v672, %v699
  %v726 = vmax.f32 %v673, %v700
  %v727 = vmax.f32 %v674, %v701
  %v728 = vmax.f32 %v675, %v702
  %v729 = vmax.f32 %v676, %v703
  %v730 = vmax.f32 %v677, %v704
  %v731 = vmax.f32 %v678, %v705
  %v732 = vmax.f32 %v679, %v706
  %v733 = vmax.f32 %v680, %v707
  %v734 = vmax.f32 %v681, %v708
  %v735 = vmax.f32 %v682, %v709
  %v736 = vmax.f32 %v683, %v710
  %v737 = vmax.f32 %v684, %v711
  %v738 = vmax.f32 %v685, %v712
  %v739 = vmax.f32 %v686, %v713
  %v740 = vmax.f32 %v687, %v714
  %v741 = vmax.f32 %v688, %v715
  %v742 = vmax.f32 %v689, %v716
  %v743 = vmax.f32 %v690, %v717
  %v744 = vmax.f32 %v691, %v718
  %v745 = vmax.f32 %v692, %v719
  %v746 = vmax.f32 %v693, %v720
  %v747 = vmax.f32 %v694, %v721
  %s748 = scalar_lea.vmem %s0, 2912
  %v749 = vld [vmem:[%s748] sm:$0xff]
  %v750 = vld [vmem:[%s748 + $0x8] sm:$0xff]
  %v751 = vld [vmem:[%s748 + $0x10] sm:$0xff]
  %v752 = vld [vmem:[%s748 + $0x18] sm:$0xff]
  %v753 = vld [vmem:[%s748 + $0x20] sm:$0xff]
  %v754 = vld [vmem:[%s748 + $0x28] sm:$0xff]
  %v755 = vld [vmem:[%s748 + $0x30] sm:$0xff]
  %v756 = vld [vmem:[%s748 + $0x38] sm:$0xff]
  %v757 = vld [vmem:[%s748 + $0x40] sm:$0xff]
  %v758 = vld [vmem:[%s748 + $0x48] sm:$0xff]
  %v759 = vld [vmem:[%s748 + $0x50] sm:$0xff]
  %v760 = vld [vmem:[%s748 + $0x58] sm:$0xff]
  %v761 = vld [vmem:[%s748 + $0x60] sm:$0xff]
  %v762 = vld [vmem:[%s748 + $0x68] sm:$0xff]
  %v763 = vld [vmem:[%s748 + $0x70] sm:$0xff]
  %v764 = vld [vmem:[%s748 + $0x78] sm:$0xff]
  %v765 = vld [vmem:[%s748 + $0x80] sm:$0xff]
  %v766 = vld [vmem:[%s748 + $0x88] sm:$0xff]
  %v767 = vld [vmem:[%s748 + $0x90] sm:$0xff]
  %v768 = vld [vmem:[%s748 + $0x98] sm:$0xff]
  %v769 = vld [vmem:[%s748 + $0xa0] sm:$0xff]
  %v770 = vld [vmem:[%s748 + $0xa8] sm:$0xff]
  %v771 = vld [vmem:[%s748 + $0xb0] sm:$0xff]
  %v772 = vld [vmem:[%s748 + $0xb8] sm:$0xff]
  %v773 = vld [vmem:[%s748 + $0xc0] sm:$0xff]
  %v774 = vld [vmem:[%s748 + $0xc8] sm:$0xff]
  %v775 = vmax.f32 %v722, %v749
  %v776 = vmax.f32 %v723, %v750
  %v777 = vmax.f32 %v724, %v751
  %v778 = vmax.f32 %v725, %v752
  %v779 = vmax.f32 %v726, %v753
  %v780 = vmax.f32 %v727, %v754
  %v781 = vmax.f32 %v728, %v755
  %v782 = vmax.f32 %v729, %v756
  %v783 = vmax.f32 %v730, %v757
  %v784 = vmax.f32 %v731, %v758
  %v785 = vmax.f32 %v732, %v759
  %v786 = vmax.f32 %v733, %v760
  %v787 = vmax.f32 %v734, %v761
  %v788 = vmax.f32 %v735, %v762
  %v789 = vmax.f32 %v736, %v763
  %v790 = vmax.f32 %v737, %v764
  %v791 = vmax.f32 %v738, %v765
  %v792 = vmax.f32 %v739, %v766
  %v793 = vmax.f32 %v740, %v767
  %v794 = vmax.f32 %v741, %v768
  %v795 = vmax.f32 %v742, %v769
  %v796 = vmax.f32 %v743, %v770
  %v797 = vmax.f32 %v744, %v771
  %v798 = vmax.f32 %v745, %v772
  %v799 = vmax.f32 %v746, %v773
  %v800 = vmax.f32 %v747, %v774
  %s801 = scalar_lea.vmem %s0, 3120
  %v802 = vld [vmem:[%s801] sm:$0xff]
  %v803 = vld [vmem:[%s801 + $0x8] sm:$0xff]
  %v804 = vld [vmem:[%s801 + $0x10] sm:$0xff]
  %v805 = vld [vmem:[%s801 + $0x18] sm:$0xff]
  %v806 = vld [vmem:[%s801 + $0x20] sm:$0xff]
  %v807 = vld [vmem:[%s801 + $0x28] sm:$0xff]
  %v808 = vld [vmem:[%s801 + $0x30] sm:$0xff]
  %v809 = vld [vmem:[%s801 + $0x38] sm:$0xff]
  %v810 = vld [vmem:[%s801 + $0x40] sm:$0xff]
  %v811 = vld [vmem:[%s801 + $0x48] sm:$0xff]
  %v812 = vld [vmem:[%s801 + $0x50] sm:$0xff]
  %v813 = vld [vmem:[%s801 + $0x58] sm:$0xff]
  %v814 = vld [vmem:[%s801 + $0x60] sm:$0xff]
  %v815 = vld [vmem:[%s801 + $0x68] sm:$0xff]
  %v816 = vld [vmem:[%s801 + $0x70] sm:$0xff]
  %v817 = vld [vmem:[%s801 + $0x78] sm:$0xff]
  %v818 = vld [vmem:[%s801 + $0x80] sm:$0xff]
  %v819 = vld [vmem:[%s801 + $0x88] sm:$0xff]
  %v820 = vld [vmem:[%s801 + $0x90] sm:$0xff]
  %v821 = vld [vmem:[%s801 + $0x98] sm:$0xff]
  %v822 = vld [vmem:[%s801 + $0xa0] sm:$0xff]
  %v823 = vld [vmem:[%s801 + $0xa8] sm:$0xff]
  %v824 = vld [vmem:[%s801 + $0xb0] sm:$0xff]
  %v825 = vld [vmem:[%s801 + $0xb8] sm:$0xff]
  %v826 = vld [vmem:[%s801 + $0xc0] sm:$0xff]
  %v827 = vld [vmem:[%s801 + $0xc8] sm:$0xff]
  %v828 = vmax.f32 %v775, %v802
  %v829 = vmax.f32 %v776, %v803
  %v830 = vmax.f32 %v777, %v804
  %v831 = vmax.f32 %v778, %v805
  %v832 = vmax.f32 %v779, %v806
  %v833 = vmax.f32 %v780, %v807
  %v834 = vmax.f32 %v781, %v808
  %v835 = vmax.f32 %v782, %v809
  %v836 = vmax.f32 %v783, %v810
  %v837 = vmax.f32 %v784, %v811
  %v838 = vmax.f32 %v785, %v812
  %v839 = vmax.f32 %v786, %v813
  %v840 = vmax.f32 %v787, %v814
  %v841 = vmax.f32 %v788, %v815
  %v842 = vmax.f32 %v789, %v816
  %v843 = vmax.f32 %v790, %v817
  %v844 = vmax.f32 %v791, %v818
  %v845 = vmax.f32 %v792, %v819
  %v846 = vmax.f32 %v793, %v820
  %v847 = vmax.f32 %v794, %v821
  %v848 = vmax.f32 %v795, %v822
  %v849 = vmax.f32 %v796, %v823
  %v850 = vmax.f32 %v797, %v824
  %v851 = vmax.f32 %v798, %v825
  %v852 = vmax.f32 %v799, %v826
  %v853 = vmax.f32 %v800, %v827
  %s854 = scalar_lea.vmem %s0, 3328
  %v855 = vld [vmem:[%s854] sm:$0xff]
  %v856 = vld [vmem:[%s854 + $0x8] sm:$0xff]
  %v857 = vld [vmem:[%s854 + $0x10] sm:$0xff]
  %v858 = vld [vmem:[%s854 + $0x18] sm:$0xff]
  %v859 = vld [vmem:[%s854 + $0x20] sm:$0xff]
  %v860 = vld [vmem:[%s854 + $0x28] sm:$0xff]
  %v861 = vld [vmem:[%s854 + $0x30] sm:$0xff]
  %v862 = vld [vmem:[%s854 + $0x38] sm:$0xff]
  %v863 = vld [vmem:[%s854 + $0x40] sm:$0xff]
  %v864 = vld [vmem:[%s854 + $0x48] sm:$0xff]
  %v865 = vld [vmem:[%s854 + $0x50] sm:$0xff]
  %v866 = vld [vmem:[%s854 + $0x58] sm:$0xff]
  %v867 = vld [vmem:[%s854 + $0x60] sm:$0xff]
  %v868 = vld [vmem:[%s854 + $0x68] sm:$0xff]
  %v869 = vld [vmem:[%s854 + $0x70] sm:$0xff]
  %v870 = vld [vmem:[%s854 + $0x78] sm:$0xff]
  %v871 = vld [vmem:[%s854 + $0x80] sm:$0xff]
  %v872 = vld [vmem:[%s854 + $0x88] sm:$0xff]
  %v873 = vld [vmem:[%s854 + $0x90] sm:$0xff]
  %v874 = vld [vmem:[%s854 + $0x98] sm:$0xff]
  %v875 = vld [vmem:[%s854 + $0xa0] sm:$0xff]
  %v876 = vld [vmem:[%s854 + $0xa8] sm:$0xff]
  %v877 = vld [vmem:[%s854 + $0xb0] sm:$0xff]
  %v878 = vld [vmem:[%s854 + $0xb8] sm:$0xff]
  %v879 = vld [vmem:[%s854 + $0xc0] sm:$0xff]
  %v880 = vld [vmem:[%s854 + $0xc8] sm:$0xff]
  %v881 = vmax.f32 %v828, %v855
  %v882 = vmax.f32 %v829, %v856
  %v883 = vmax.f32 %v830, %v857
  %v884 = vmax.f32 %v831, %v858
  %v885 = vmax.f32 %v832, %v859
  %v886 = vmax.f32 %v833, %v860
  %v887 = vmax.f32 %v834, %v861
  %v888 = vmax.f32 %v835, %v862
  %v889 = vmax.f32 %v836, %v863
  %v890 = vmax.f32 %v837, %v864
  %v891 = vmax.f32 %v838, %v865
  %v892 = vmax.f32 %v839, %v866
  %v893 = vmax.f32 %v840, %v867
  %v894 = vmax.f32 %v841, %v868
  %v895 = vmax.f32 %v842, %v869
  %v896 = vmax.f32 %v843, %v870
  %v897 = vmax.f32 %v844, %v871
  %v898 = vmax.f32 %v845, %v872
  %v899 = vmax.f32 %v846, %v873
  %v900 = vmax.f32 %v847, %v874
  %v901 = vmax.f32 %v848, %v875
  %v902 = vmax.f32 %v849, %v876
  %v903 = vmax.f32 %v850, %v877
  %v904 = vmax.f32 %v851, %v878
  %v905 = vmax.f32 %v852, %v879
  %v906 = vmax.f32 %v853, %v880
  %s907 = scalar_lea.vmem %s0, 3536
  %v908 = vld [vmem:[%s907] sm:$0xff]
  %v909 = vld [vmem:[%s907 + $0x8] sm:$0xff]
  %v910 = vld [vmem:[%s907 + $0x10] sm:$0xff]
  %v911 = vld [vmem:[%s907 + $0x18] sm:$0xff]
  %v912 = vld [vmem:[%s907 + $0x20] sm:$0xff]
  %v913 = vld [vmem:[%s907 + $0x28] sm:$0xff]
  %v914 = vld [vmem:[%s907 + $0x30] sm:$0xff]
  %v915 = vld [vmem:[%s907 + $0x38] sm:$0xff]
  %v916 = vld [vmem:[%s907 + $0x40] sm:$0xff]
  %v917 = vld [vmem:[%s907 + $0x48] sm:$0xff]
  %v918 = vld [vmem:[%s907 + $0x50] sm:$0xff]
  %v919 = vld [vmem:[%s907 + $0x58] sm:$0xff]
  %v920 = vld [vmem:[%s907 + $0x60] sm:$0xff]
  %v921 = vld [vmem:[%s907 + $0x68] sm:$0xff]
  %v922 = vld [vmem:[%s907 + $0x70] sm:$0xff]
  %v923 = vld [vmem:[%s907 + $0x78] sm:$0xff]
  %v924 = vld [vmem:[%s907 + $0x80] sm:$0xff]
  %v925 = vld [vmem:[%s907 + $0x88] sm:$0xff]
  %v926 = vld [vmem:[%s907 + $0x90] sm:$0xff]
  %v927 = vld [vmem:[%s907 + $0x98] sm:$0xff]
  %v928 = vld [vmem:[%s907 + $0xa0] sm:$0xff]
  %v929 = vld [vmem:[%s907 + $0xa8] sm:$0xff]
  %v930 = vld [vmem:[%s907 + $0xb0] sm:$0xff]
  %v931 = vld [vmem:[%s907 + $0xb8] sm:$0xff]
  %v932 = vld [vmem:[%s907 + $0xc0] sm:$0xff]
  %v933 = vld [vmem:[%s907 + $0xc8] sm:$0xff]
  %v934 = vmax.f32 %v881, %v908
  %v935 = vmax.f32 %v882, %v909
  %v936 = vmax.f32 %v883, %v910
  %v937 = vmax.f32 %v884, %v911
  %v938 = vmax.f32 %v885, %v912
  %v939 = vmax.f32 %v886, %v913
  %v940 = vmax.f32 %v887, %v914
  %v941 = vmax.f32 %v888, %v915
  %v942 = vmax.f32 %v889, %v916
  %v943 = vmax.f32 %v890, %v917
  %v944 = vmax.f32 %v891, %v918
  %v945 = vmax.f32 %v892, %v919
  %v946 = vmax.f32 %v893, %v920
  %v947 = vmax.f32 %v894, %v921
  %v948 = vmax.f32 %v895, %v922
  %v949 = vmax.f32 %v896, %v923
  %v950 = vmax.f32 %v897, %v924
  %v951 = vmax.f32 %v898, %v925
  %v952 = vmax.f32 %v899, %v926
  %v953 = vmax.f32 %v900, %v927
  %v954 = vmax.f32 %v901, %v928
  %v955 = vmax.f32 %v902, %v929
  %v956 = vmax.f32 %v903, %v930
  %v957 = vmax.f32 %v904, %v931
  %v958 = vmax.f32 %v905, %v932
  %v959 = vmax.f32 %v906, %v933
  %s960 = scalar_lea.vmem %s0, 3744
  %v961 = vld [vmem:[%s960] sm:$0xff]
  %v962 = vld [vmem:[%s960 + $0x8] sm:$0xff]
  %v963 = vld [vmem:[%s960 + $0x10] sm:$0xff]
  %v964 = vld [vmem:[%s960 + $0x18] sm:$0xff]
  %v965 = vld [vmem:[%s960 + $0x20] sm:$0xff]
  %v966 = vld [vmem:[%s960 + $0x28] sm:$0xff]
  %v967 = vld [vmem:[%s960 + $0x30] sm:$0xff]
  %v968 = vld [vmem:[%s960 + $0x38] sm:$0xff]
  %v969 = vld [vmem:[%s960 + $0x40] sm:$0xff]
  %v970 = vld [vmem:[%s960 + $0x48] sm:$0xff]
  %v971 = vld [vmem:[%s960 + $0x50] sm:$0xff]
  %v972 = vld [vmem:[%s960 + $0x58] sm:$0xff]
  %v973 = vld [vmem:[%s960 + $0x60] sm:$0xff]
  %v974 = vld [vmem:[%s960 + $0x68] sm:$0xff]
  %v975 = vld [vmem:[%s960 + $0x70] sm:$0xff]
  %v976 = vld [vmem:[%s960 + $0x78] sm:$0xff]
  %v977 = vld [vmem:[%s960 + $0x80] sm:$0xff]
  %v978 = vld [vmem:[%s960 + $0x88] sm:$0xff]
  %v979 = vld [vmem:[%s960 + $0x90] sm:$0xff]
  %v980 = vld [vmem:[%s960 + $0x98] sm:$0xff]
  %v981 = vld [vmem:[%s960 + $0xa0] sm:$0xff]
  %v982 = vld [vmem:[%s960 + $0xa8] sm:$0xff]
  %v983 = vld [vmem:[%s960 + $0xb0] sm:$0xff]
  %v984 = vld [vmem:[%s960 + $0xb8] sm:$0xff]
  %v985 = vld [vmem:[%s960 + $0xc0] sm:$0xff]
  %v986 = vld [vmem:[%s960 + $0xc8] sm:$0xff]
  %v987 = vmax.f32 %v934, %v961
  %v988 = vmax.f32 %v935, %v962
  %v989 = vmax.f32 %v936, %v963
  %v990 = vmax.f32 %v937, %v964
  %v991 = vmax.f32 %v938, %v965
  %v992 = vmax.f32 %v939, %v966
  %v993 = vmax.f32 %v940, %v967
  %v994 = vmax.f32 %v941, %v968
  %v995 = vmax.f32 %v942, %v969
  %v996 = vmax.f32 %v943, %v970
  %v997 = vmax.f32 %v944, %v971
  %v998 = vmax.f32 %v945, %v972
  %v999 = vmax.f32 %v946, %v973
  %v1000 = vmax.f32 %v947, %v974
  %v1001 = vmax.f32 %v948, %v975
  %v1002 = vmax.f32 %v949, %v976
  %v1003 = vmax.f32 %v950, %v977
  %v1004 = vmax.f32 %v951, %v978
  %v1005 = vmax.f32 %v952, %v979
  %v1006 = vmax.f32 %v953, %v980
  %v1007 = vmax.f32 %v954, %v981
  %v1008 = vmax.f32 %v955, %v982
  %v1009 = vmax.f32 %v956, %v983
  %v1010 = vmax.f32 %v957, %v984
  %v1011 = vmax.f32 %v958, %v985
  %v1012 = vmax.f32 %v959, %v986
  %s1013 = scalar_lea.vmem %s0, 3952
  %v1014 = vld [vmem:[%s1013] sm:$0xff]
  %v1015 = vld [vmem:[%s1013 + $0x8] sm:$0xff]
  %v1016 = vld [vmem:[%s1013 + $0x10] sm:$0xff]
  %v1017 = vld [vmem:[%s1013 + $0x18] sm:$0xff]
  %v1018 = vld [vmem:[%s1013 + $0x20] sm:$0xff]
  %v1019 = vld [vmem:[%s1013 + $0x28] sm:$0xff]
  %v1020 = vld [vmem:[%s1013 + $0x30] sm:$0xff]
  %v1021 = vld [vmem:[%s1013 + $0x38] sm:$0xff]
  %v1022 = vld [vmem:[%s1013 + $0x40] sm:$0xff]
  %v1023 = vld [vmem:[%s1013 + $0x48] sm:$0xff]
  %v1024 = vld [vmem:[%s1013 + $0x50] sm:$0xff]
  %v1025 = vld [vmem:[%s1013 + $0x58] sm:$0xff]
  %v1026 = vld [vmem:[%s1013 + $0x60] sm:$0xff]
  %v1027 = vld [vmem:[%s1013 + $0x68] sm:$0xff]
  %v1028 = vld [vmem:[%s1013 + $0x70] sm:$0xff]
  %v1029 = vld [vmem:[%s1013 + $0x78] sm:$0xff]
  %v1030 = vld [vmem:[%s1013 + $0x80] sm:$0xff]
  %v1031 = vld [vmem:[%s1013 + $0x88] sm:$0xff]
  %v1032 = vld [vmem:[%s1013 + $0x90] sm:$0xff]
  %v1033 = vld [vmem:[%s1013 + $0x98] sm:$0xff]
  %v1034 = vld [vmem:[%s1013 + $0xa0] sm:$0xff]
  %v1035 = vld [vmem:[%s1013 + $0xa8] sm:$0xff]
  %v1036 = vld [vmem:[%s1013 + $0xb0] sm:$0xff]
  %v1037 = vld [vmem:[%s1013 + $0xb8] sm:$0xff]
  %v1038 = vld [vmem:[%s1013 + $0xc0] sm:$0xff]
  %v1039 = vld [vmem:[%s1013 + $0xc8] sm:$0xff]
  %v1040 = vmax.f32 %v987, %v1014
  %v1041 = vmax.f32 %v988, %v1015
  %v1042 = vmax.f32 %v989, %v1016
  %v1043 = vmax.f32 %v990, %v1017
  %v1044 = vmax.f32 %v991, %v1018
  %v1045 = vmax.f32 %v992, %v1019
  %v1046 = vmax.f32 %v993, %v1020
  %v1047 = vmax.f32 %v994, %v1021
  %v1048 = vmax.f32 %v995, %v1022
  %v1049 = vmax.f32 %v996, %v1023
  %v1050 = vmax.f32 %v997, %v1024
  %v1051 = vmax.f32 %v998, %v1025
  %v1052 = vmax.f32 %v999, %v1026
  %v1053 = vmax.f32 %v1000, %v1027
  %v1054 = vmax.f32 %v1001, %v1028
  %v1055 = vmax.f32 %v1002, %v1029
  %v1056 = vmax.f32 %v1003, %v1030
  %v1057 = vmax.f32 %v1004, %v1031
  %v1058 = vmax.f32 %v1005, %v1032
  %v1059 = vmax.f32 %v1006, %v1033
  %v1060 = vmax.f32 %v1007, %v1034
  %v1061 = vmax.f32 %v1008, %v1035
  %v1062 = vmax.f32 %v1009, %v1036
  %v1063 = vmax.f32 %v1010, %v1037
  %v1064 = vmax.f32 %v1011, %v1038
  %v1065 = vmax.f32 %v1012, %v1039
  %s1066 = scalar_lea.vmem %s0, 4160
  %v1067 = vld [vmem:[%s1066] sm:$0xff]
  %v1068 = vld [vmem:[%s1066 + $0x8] sm:$0xff]
  %v1069 = vld [vmem:[%s1066 + $0x10] sm:$0xff]
  %v1070 = vld [vmem:[%s1066 + $0x18] sm:$0xff]
  %v1071 = vld [vmem:[%s1066 + $0x20] sm:$0xff]
  %v1072 = vld [vmem:[%s1066 + $0x28] sm:$0xff]
  %v1073 = vld [vmem:[%s1066 + $0x30] sm:$0xff]
  %v1074 = vld [vmem:[%s1066 + $0x38] sm:$0xff]
  %v1075 = vld [vmem:[%s1066 + $0x40] sm:$0xff]
  %v1076 = vld [vmem:[%s1066 + $0x48] sm:$0xff]
  %v1077 = vld [vmem:[%s1066 + $0x50] sm:$0xff]
  %v1078 = vld [vmem:[%s1066 + $0x58] sm:$0xff]
  %v1079 = vld [vmem:[%s1066 + $0x60] sm:$0xff]
  %v1080 = vld [vmem:[%s1066 + $0x68] sm:$0xff]
  %v1081 = vld [vmem:[%s1066 + $0x70] sm:$0xff]
  %v1082 = vld [vmem:[%s1066 + $0x78] sm:$0xff]
  %v1083 = vld [vmem:[%s1066 + $0x80] sm:$0xff]
  %v1084 = vld [vmem:[%s1066 + $0x88] sm:$0xff]
  %v1085 = vld [vmem:[%s1066 + $0x90] sm:$0xff]
  %v1086 = vld [vmem:[%s1066 + $0x98] sm:$0xff]
  %v1087 = vld [vmem:[%s1066 + $0xa0] sm:$0xff]
  %v1088 = vld [vmem:[%s1066 + $0xa8] sm:$0xff]
  %v1089 = vld [vmem:[%s1066 + $0xb0] sm:$0xff]
  %v1090 = vld [vmem:[%s1066 + $0xb8] sm:$0xff]
  %v1091 = vld [vmem:[%s1066 + $0xc0] sm:$0xff]
  %v1092 = vld [vmem:[%s1066 + $0xc8] sm:$0xff]
  %v1093 = vmax.f32 %v1040, %v1067
  %v1094 = vmax.f32 %v1041, %v1068
  %v1095 = vmax.f32 %v1042, %v1069
  %v1096 = vmax.f32 %v1043, %v1070
  %v1097 = vmax.f32 %v1044, %v1071
  %v1098 = vmax.f32 %v1045, %v1072
  %v1099 = vmax.f32 %v1046, %v1073
  %v1100 = vmax.f32 %v1047, %v1074
  %v1101 = vmax.f32 %v1048, %v1075
  %v1102 = vmax.f32 %v1049, %v1076
  %v1103 = vmax.f32 %v1050, %v1077
  %v1104 = vmax.f32 %v1051, %v1078
  %v1105 = vmax.f32 %v1052, %v1079
  %v1106 = vmax.f32 %v1053, %v1080
  %v1107 = vmax.f32 %v1054, %v1081
  %v1108 = vmax.f32 %v1055, %v1082
  %v1109 = vmax.f32 %v1056, %v1083
  %v1110 = vmax.f32 %v1057, %v1084
  %v1111 = vmax.f32 %v1058, %v1085
  %v1112 = vmax.f32 %v1059, %v1086
  %v1113 = vmax.f32 %v1060, %v1087
  %v1114 = vmax.f32 %v1061, %v1088
  %v1115 = vmax.f32 %v1062, %v1089
  %v1116 = vmax.f32 %v1063, %v1090
  %v1117 = vmax.f32 %v1064, %v1091
  %v1118 = vmax.f32 %v1065, %v1092
  %s1119 = scalar_lea.vmem %s0, 4368
  %v1120 = vld [vmem:[%s1119] sm:$0xff]
  %v1121 = vld [vmem:[%s1119 + $0x8] sm:$0xff]
  %v1122 = vld [vmem:[%s1119 + $0x10] sm:$0xff]
  %v1123 = vld [vmem:[%s1119 + $0x18] sm:$0xff]
  %v1124 = vld [vmem:[%s1119 + $0x20] sm:$0xff]
  %v1125 = vld [vmem:[%s1119 + $0x28] sm:$0xff]
  %v1126 = vld [vmem:[%s1119 + $0x30] sm:$0xff]
  %v1127 = vld [vmem:[%s1119 + $0x38] sm:$0xff]
  %v1128 = vld [vmem:[%s1119 + $0x40] sm:$0xff]
  %v1129 = vld [vmem:[%s1119 + $0x48] sm:$0xff]
  %v1130 = vld [vmem:[%s1119 + $0x50] sm:$0xff]
  %v1131 = vld [vmem:[%s1119 + $0x58] sm:$0xff]
  %v1132 = vld [vmem:[%s1119 + $0x60] sm:$0xff]
  %v1133 = vld [vmem:[%s1119 + $0x68] sm:$0xff]
  %v1134 = vld [vmem:[%s1119 + $0x70] sm:$0xff]
  %v1135 = vld [vmem:[%s1119 + $0x78] sm:$0xff]
  %v1136 = vld [vmem:[%s1119 + $0x80] sm:$0xff]
  %v1137 = vld [vmem:[%s1119 + $0x88] sm:$0xff]
  %v1138 = vld [vmem:[%s1119 + $0x90] sm:$0xff]
  %v1139 = vld [vmem:[%s1119 + $0x98] sm:$0xff]
  %v1140 = vld [vmem:[%s1119 + $0xa0] sm:$0xff]
  %v1141 = vld [vmem:[%s1119 + $0xa8] sm:$0xff]
  %v1142 = vld [vmem:[%s1119 + $0xb0] sm:$0xff]
  %v1143 = vld [vmem:[%s1119 + $0xb8] sm:$0xff]
  %v1144 = vld [vmem:[%s1119 + $0xc0] sm:$0xff]
  %v1145 = vld [vmem:[%s1119 + $0xc8] sm:$0xff]
  %v1146 = vmax.f32 %v1093, %v1120
  %v1147 = vmax.f32 %v1094, %v1121
  %v1148 = vmax.f32 %v1095, %v1122
  %v1149 = vmax.f32 %v1096, %v1123
  %v1150 = vmax.f32 %v1097, %v1124
  %v1151 = vmax.f32 %v1098, %v1125
  %v1152 = vmax.f32 %v1099, %v1126
  %v1153 = vmax.f32 %v1100, %v1127
  %v1154 = vmax.f32 %v1101, %v1128
  %v1155 = vmax.f32 %v1102, %v1129
  %v1156 = vmax.f32 %v1103, %v1130
  %v1157 = vmax.f32 %v1104, %v1131
  %v1158 = vmax.f32 %v1105, %v1132
  %v1159 = vmax.f32 %v1106, %v1133
  %v1160 = vmax.f32 %v1107, %v1134
  %v1161 = vmax.f32 %v1108, %v1135
  %v1162 = vmax.f32 %v1109, %v1136
  %v1163 = vmax.f32 %v1110, %v1137
  %v1164 = vmax.f32 %v1111, %v1138
  %v1165 = vmax.f32 %v1112, %v1139
  %v1166 = vmax.f32 %v1113, %v1140
  %v1167 = vmax.f32 %v1114, %v1141
  %v1168 = vmax.f32 %v1115, %v1142
  %v1169 = vmax.f32 %v1116, %v1143
  %v1170 = vmax.f32 %v1117, %v1144
  %v1171 = vmax.f32 %v1118, %v1145
  %s1172 = scalar_lea.vmem %s0, 4576
  %v1173 = vld [vmem:[%s1172] sm:$0xff]
  %v1174 = vld [vmem:[%s1172 + $0x8] sm:$0xff]
  %v1175 = vld [vmem:[%s1172 + $0x10] sm:$0xff]
  %v1176 = vld [vmem:[%s1172 + $0x18] sm:$0xff]
  %v1177 = vld [vmem:[%s1172 + $0x20] sm:$0xff]
  %v1178 = vld [vmem:[%s1172 + $0x28] sm:$0xff]
  %v1179 = vld [vmem:[%s1172 + $0x30] sm:$0xff]
  %v1180 = vld [vmem:[%s1172 + $0x38] sm:$0xff]
  %v1181 = vld [vmem:[%s1172 + $0x40] sm:$0xff]
  %v1182 = vld [vmem:[%s1172 + $0x48] sm:$0xff]
  %v1183 = vld [vmem:[%s1172 + $0x50] sm:$0xff]
  %v1184 = vld [vmem:[%s1172 + $0x58] sm:$0xff]
  %v1185 = vld [vmem:[%s1172 + $0x60] sm:$0xff]
  %v1186 = vld [vmem:[%s1172 + $0x68] sm:$0xff]
  %v1187 = vld [vmem:[%s1172 + $0x70] sm:$0xff]
  %v1188 = vld [vmem:[%s1172 + $0x78] sm:$0xff]
  %v1189 = vld [vmem:[%s1172 + $0x80] sm:$0xff]
  %v1190 = vld [vmem:[%s1172 + $0x88] sm:$0xff]
  %v1191 = vld [vmem:[%s1172 + $0x90] sm:$0xff]
  %v1192 = vld [vmem:[%s1172 + $0x98] sm:$0xff]
  %v1193 = vld [vmem:[%s1172 + $0xa0] sm:$0xff]
  %v1194 = vld [vmem:[%s1172 + $0xa8] sm:$0xff]
  %v1195 = vld [vmem:[%s1172 + $0xb0] sm:$0xff]
  %v1196 = vld [vmem:[%s1172 + $0xb8] sm:$0xff]
  %v1197 = vld [vmem:[%s1172 + $0xc0] sm:$0xff]
  %v1198 = vld [vmem:[%s1172 + $0xc8] sm:$0xff]
  %v1199 = vmax.f32 %v1146, %v1173
  %v1200 = vmax.f32 %v1147, %v1174
  %v1201 = vmax.f32 %v1148, %v1175
  %v1202 = vmax.f32 %v1149, %v1176
  %v1203 = vmax.f32 %v1150, %v1177
  %v1204 = vmax.f32 %v1151, %v1178
  %v1205 = vmax.f32 %v1152, %v1179
  %v1206 = vmax.f32 %v1153, %v1180
  %v1207 = vmax.f32 %v1154, %v1181
  %v1208 = vmax.f32 %v1155, %v1182
  %v1209 = vmax.f32 %v1156, %v1183
  %v1210 = vmax.f32 %v1157, %v1184
  %v1211 = vmax.f32 %v1158, %v1185
  %v1212 = vmax.f32 %v1159, %v1186
  %v1213 = vmax.f32 %v1160, %v1187
  %v1214 = vmax.f32 %v1161, %v1188
  %v1215 = vmax.f32 %v1162, %v1189
  %v1216 = vmax.f32 %v1163, %v1190
  %v1217 = vmax.f32 %v1164, %v1191
  %v1218 = vmax.f32 %v1165, %v1192
  %v1219 = vmax.f32 %v1166, %v1193
  %v1220 = vmax.f32 %v1167, %v1194
  %v1221 = vmax.f32 %v1168, %v1195
  %v1222 = vmax.f32 %v1169, %v1196
  %v1223 = vmax.f32 %v1170, %v1197
  %v1224 = vmax.f32 %v1171, %v1198
  %s1225 = scalar_lea.vmem %s0, 4784
  %v1226 = vld [vmem:[%s1225] sm:$0xff]
  %v1227 = vld [vmem:[%s1225 + $0x8] sm:$0xff]
  %v1228 = vld [vmem:[%s1225 + $0x10] sm:$0xff]
  %v1229 = vld [vmem:[%s1225 + $0x18] sm:$0xff]
  %v1230 = vld [vmem:[%s1225 + $0x20] sm:$0xff]
  %v1231 = vld [vmem:[%s1225 + $0x28] sm:$0xff]
  %v1232 = vld [vmem:[%s1225 + $0x30] sm:$0xff]
  %v1233 = vld [vmem:[%s1225 + $0x38] sm:$0xff]
  %v1234 = vld [vmem:[%s1225 + $0x40] sm:$0xff]
  %v1235 = vld [vmem:[%s1225 + $0x48] sm:$0xff]
  %v1236 = vld [vmem:[%s1225 + $0x50] sm:$0xff]
  %v1237 = vld [vmem:[%s1225 + $0x58] sm:$0xff]
  %v1238 = vld [vmem:[%s1225 + $0x60] sm:$0xff]
  %v1239 = vld [vmem:[%s1225 + $0x68] sm:$0xff]
  %v1240 = vld [vmem:[%s1225 + $0x70] sm:$0xff]
  %v1241 = vld [vmem:[%s1225 + $0x78] sm:$0xff]
  %v1242 = vld [vmem:[%s1225 + $0x80] sm:$0xff]
  %v1243 = vld [vmem:[%s1225 + $0x88] sm:$0xff]
  %v1244 = vld [vmem:[%s1225 + $0x90] sm:$0xff]
  %v1245 = vld [vmem:[%s1225 + $0x98] sm:$0xff]
  %v1246 = vld [vmem:[%s1225 + $0xa0] sm:$0xff]
  %v1247 = vld [vmem:[%s1225 + $0xa8] sm:$0xff]
  %v1248 = vld [vmem:[%s1225 + $0xb0] sm:$0xff]
  %v1249 = vld [vmem:[%s1225 + $0xb8] sm:$0xff]
  %v1250 = vld [vmem:[%s1225 + $0xc0] sm:$0xff]
  %v1251 = vld [vmem:[%s1225 + $0xc8] sm:$0xff]
  %v1252 = vmax.f32 %v1199, %v1226
  %v1253 = vmax.f32 %v1200, %v1227
  %v1254 = vmax.f32 %v1201, %v1228
  %v1255 = vmax.f32 %v1202, %v1229
  %v1256 = vmax.f32 %v1203, %v1230
  %v1257 = vmax.f32 %v1204, %v1231
  %v1258 = vmax.f32 %v1205, %v1232
  %v1259 = vmax.f32 %v1206, %v1233
  %v1260 = vmax.f32 %v1207, %v1234
  %v1261 = vmax.f32 %v1208, %v1235
  %v1262 = vmax.f32 %v1209, %v1236
  %v1263 = vmax.f32 %v1210, %v1237
  %v1264 = vmax.f32 %v1211, %v1238
  %v1265 = vmax.f32 %v1212, %v1239
  %v1266 = vmax.f32 %v1213, %v1240
  %v1267 = vmax.f32 %v1214, %v1241
  %v1268 = vmax.f32 %v1215, %v1242
  %v1269 = vmax.f32 %v1216, %v1243
  %v1270 = vmax.f32 %v1217, %v1244
  %v1271 = vmax.f32 %v1218, %v1245
  %v1272 = vmax.f32 %v1219, %v1246
  %v1273 = vmax.f32 %v1220, %v1247
  %v1274 = vmax.f32 %v1221, %v1248
  %v1275 = vmax.f32 %v1222, %v1249
  %v1276 = vmax.f32 %v1223, %v1250
  %v1277 = vmax.f32 %v1224, %v1251
  %s1278 = scalar_lea.vmem %s0, 4992
  %v1279 = vld [vmem:[%s1278] sm:$0xff]
  %v1280 = vld [vmem:[%s1278 + $0x8] sm:$0xff]
  %v1281 = vld [vmem:[%s1278 + $0x10] sm:$0xff]
  %v1282 = vld [vmem:[%s1278 + $0x18] sm:$0xff]
  %v1283 = vld [vmem:[%s1278 + $0x20] sm:$0xff]
  %v1284 = vld [vmem:[%s1278 + $0x28] sm:$0xff]
  %v1285 = vld [vmem:[%s1278 + $0x30] sm:$0xff]
  %v1286 = vld [vmem:[%s1278 + $0x38] sm:$0xff]
  %v1287 = vld [vmem:[%s1278 + $0x40] sm:$0xff]
  %v1288 = vld [vmem:[%s1278 + $0x48] sm:$0xff]
  %v1289 = vld [vmem:[%s1278 + $0x50] sm:$0xff]
  %v1290 = vld [vmem:[%s1278 + $0x58] sm:$0xff]
  %v1291 = vld [vmem:[%s1278 + $0x60] sm:$0xff]
  %v1292 = vld [vmem:[%s1278 + $0x68] sm:$0xff]
  %v1293 = vld [vmem:[%s1278 + $0x70] sm:$0xff]
  %v1294 = vld [vmem:[%s1278 + $0x78] sm:$0xff]
  %v1295 = vld [vmem:[%s1278 + $0x80] sm:$0xff]
  %v1296 = vld [vmem:[%s1278 + $0x88] sm:$0xff]
  %v1297 = vld [vmem:[%s1278 + $0x90] sm:$0xff]
  %v1298 = vld [vmem:[%s1278 + $0x98] sm:$0xff]
  %v1299 = vld [vmem:[%s1278 + $0xa0] sm:$0xff]
  %v1300 = vld [vmem:[%s1278 + $0xa8] sm:$0xff]
  %v1301 = vld [vmem:[%s1278 + $0xb0] sm:$0xff]
  %v1302 = vld [vmem:[%s1278 + $0xb8] sm:$0xff]
  %v1303 = vld [vmem:[%s1278 + $0xc0] sm:$0xff]
  %v1304 = vld [vmem:[%s1278 + $0xc8] sm:$0xff]
  %v1305 = vmax.f32 %v1252, %v1279
  %v1306 = vmax.f32 %v1253, %v1280
  %v1307 = vmax.f32 %v1254, %v1281
  %v1308 = vmax.f32 %v1255, %v1282
  %v1309 = vmax.f32 %v1256, %v1283
  %v1310 = vmax.f32 %v1257, %v1284
  %v1311 = vmax.f32 %v1258, %v1285
  %v1312 = vmax.f32 %v1259, %v1286
  %v1313 = vmax.f32 %v1260, %v1287
  %v1314 = vmax.f32 %v1261, %v1288
  %v1315 = vmax.f32 %v1262, %v1289
  %v1316 = vmax.f32 %v1263, %v1290
  %v1317 = vmax.f32 %v1264, %v1291
  %v1318 = vmax.f32 %v1265, %v1292
  %v1319 = vmax.f32 %v1266, %v1293
  %v1320 = vmax.f32 %v1267, %v1294
  %v1321 = vmax.f32 %v1268, %v1295
  %v1322 = vmax.f32 %v1269, %v1296
  %v1323 = vmax.f32 %v1270, %v1297
  %v1324 = vmax.f32 %v1271, %v1298
  %v1325 = vmax.f32 %v1272, %v1299
  %v1326 = vmax.f32 %v1273, %v1300
  %v1327 = vmax.f32 %v1274, %v1301
  %v1328 = vmax.f32 %v1275, %v1302
  %v1329 = vmax.f32 %v1276, %v1303
  %v1330 = vmax.f32 %v1277, %v1304
  %v1331 = vpack.c.bf16 %v1305, %v1305
  %v1332 = vpack.c.bf16 %v1306, %v1306
  %v1333 = vpack.c.bf16 %v1307, %v1307
  %v1334 = vpack.c.bf16 %v1308, %v1308
  %v1335 = vpack.c.bf16 %v1309, %v1309
  %v1336 = vpack.c.bf16 %v1310, %v1310
  %v1337 = vpack.c.bf16 %v1311, %v1311
  %v1338 = vpack.c.bf16 %v1312, %v1312
  %v1339 = vpack.c.bf16 %v1313, %v1313
  %v1340 = vpack.c.bf16 %v1314, %v1314
  %v1341 = vpack.c.bf16 %v1315, %v1315
  %v1342 = vpack.c.bf16 %v1316, %v1316
  %v1343 = vpack.c.bf16 %v1317, %v1317
  %v1344 = vpack.c.bf16 %v1318, %v1318
  %v1345 = vpack.c.bf16 %v1319, %v1319
  %v1346 = vpack.c.bf16 %v1320, %v1320
  %v1347 = vpack.c.bf16 %v1321, %v1321
  %v1348 = vpack.c.bf16 %v1322, %v1322
  %v1349 = vpack.c.bf16 %v1323, %v1323
  %v1350 = vpack.c.bf16 %v1324, %v1324
  %v1351 = vpack.c.bf16 %v1325, %v1325
  %v1352 = vpack.c.bf16 %v1326, %v1326
  %v1353 = vpack.c.bf16 %v1327, %v1327
  %v1354 = vpack.c.bf16 %v1328, %v1328
  %v1355 = vpack.c.bf16 %v1329, %v1329
  %v1356 = vpack.c.bf16 %v1330, %v1330
  %v1357 = vld [vmem:[%s1] sm:$0xff]
  %v1358 = vld [vmem:[%s1 + $0x8] sm:$0xf]
  %v1359 = vld [vmem:[%s1 + $0xc] sm:$0xff]
  %v1360 = vld [vmem:[%s1 + $0x14] sm:$0xf]
  %v1361 = vld [vmem:[%s1 + $0x18] sm:$0xff]
  %v1362 = vld [vmem:[%s1 + $0x20] sm:$0xf]
  %v1363 = vld [vmem:[%s1 + $0x24] sm:$0xff]
  %v1364 = vld [vmem:[%s1 + $0x2c] sm:$0xf]
  %v1365 = vld [vmem:[%s1 + $0x30] sm:$0xff]
  %v1366 = vld [vmem:[%s1 + $0x38] sm:$0xf]
  %v1367 = vld [vmem:[%s1 + $0x3c] sm:$0xff]
  %v1368 = vld [vmem:[%s1 + $0x44] sm:$0xf]
  %v1369 = vld [vmem:[%s1 + $0x48] sm:$0xff]
  %v1370 = vld [vmem:[%s1 + $0x50] sm:$0xf]
  %v1371 = vld [vmem:[%s1 + $0x54] sm:$0xff]
  %v1372 = vld [vmem:[%s1 + $0x5c] sm:$0xf]
  %v1373 = vld [vmem:[%s1 + $0x60] sm:$0xff]
  %v1374 = vld [vmem:[%s1 + $0x68] sm:$0xf]
  %v1375 = vld [vmem:[%s1 + $0x6c] sm:$0xff]
  %v1376 = vld [vmem:[%s1 + $0x74] sm:$0xf]
  %v1377 = vld [vmem:[%s1 + $0x78] sm:$0xff]
  %v1378 = vld [vmem:[%s1 + $0x80] sm:$0xf]
  %v1379 = vld [vmem:[%s1 + $0x84] sm:$0xff]
  %v1380 = vld [vmem:[%s1 + $0x8c] sm:$0xf]
  %v1381 = vld [vmem:[%s1 + $0x90] sm:$0xff]
  %v1382 = vld [vmem:[%s1 + $0x98] sm:$0xf]
  %v1383 = vld [vmem:[%s1 + $0x9c] sm:$0xff]
  %v1384 = vld [vmem:[%s1 + $0xa4] sm:$0xf]
  %v1385 = vld [vmem:[%s1 + $0xa8] sm:$0xff]
  %v1386 = vld [vmem:[%s1 + $0xb0] sm:$0xf]
  %v1387 = vld [vmem:[%s1 + $0xb4] sm:$0xff]
  %v1388 = vld [vmem:[%s1 + $0xbc] sm:$0xf]
  %v1389 = vld [vmem:[%s1 + $0xc0] sm:$0xff]
  %v1390 = vld [vmem:[%s1 + $0xc8] sm:$0xf]
  %v1391 = vld [vmem:[%s1 + $0xcc] sm:$0xff]
  %v1392 = vld [vmem:[%s1 + $0xd4] sm:$0xf]
  %v1393 = vld [vmem:[%s1 + $0xd8] sm:$0xff]
  %v1394 = vld [vmem:[%s1 + $0xe0] sm:$0xf]
  %v1395 = vld [vmem:[%s1 + $0xe4] sm:$0xff]
  %v1396 = vld [vmem:[%s1 + $0xec] sm:$0xf]
  %v1397 = vld [vmem:[%s1 + $0xf0] sm:$0xff]
  %v1398 = vld [vmem:[%s1 + $0xf8] sm:$0xf]
  %v1399 = vld [vmem:[%s1 + $0xfc] sm:$0xff]
  %v1400 = vld [vmem:[%s1 + $0x104] sm:$0xf]
  %v1401 = vld [vmem:[%s1 + $0x108] sm:$0xff]
  %v1402 = vld [vmem:[%s1 + $0x110] sm:$0xf]
  %v1403 = vld [vmem:[%s1 + $0x114] sm:$0xff]
  %v1404 = vld [vmem:[%s1 + $0x11c] sm:$0xf]
  %v1405 = vld [vmem:[%s1 + $0x120] sm:$0xff]
  %v1406 = vld [vmem:[%s1 + $0x128] sm:$0xf]
  %v1407 = vld [vmem:[%s1 + $0x12c] sm:$0xff]
  %v1408 = vld [vmem:[%s1 + $0x134] sm:$0xf]
  %v1409 = vld [vmem:[%s1 + $0x138] sm:$0xff]
  %v1410 = vld [vmem:[%s1 + $0x140] sm:$0xf]
  %v1411 = vld [vmem:[%s1 + $0x144] sm:$0xff]
  %v1412 = vld [vmem:[%s1 + $0x14c] sm:$0xf]
  %v1413 = vld [vmem:[%s1 + $0x150] sm:$0xff]
  %v1414 = vld [vmem:[%s1 + $0x158] sm:$0xf]
  %v1415 = vld [vmem:[%s1 + $0x15c] sm:$0xff]
  %v1416 = vld [vmem:[%s1 + $0x164] sm:$0xf]
  %v1417 = vld [vmem:[%s1 + $0x168] sm:$0xff]
  %v1418 = vld [vmem:[%s1 + $0x170] sm:$0xf]
  %v1419 = vld [vmem:[%s1 + $0x174] sm:$0xff]
  %v1420 = vld [vmem:[%s1 + $0x17c] sm:$0xf]
  %v1421 = vld [vmem:[%s1 + $0x180] sm:$0xff]
  %v1422 = vld [vmem:[%s1 + $0x188] sm:$0xf]
  %v1423 = vld [vmem:[%s1 + $0x18c] sm:$0xff]
  %v1424 = vld [vmem:[%s1 + $0x194] sm:$0xf]
  %v1425 = vld [vmem:[%s1 + $0x198] sm:$0xff]
  %v1426 = vld [vmem:[%s1 + $0x1a0] sm:$0xf]
  %v1427 = vld [vmem:[%s1 + $0x1a4] sm:$0xff]
  %v1428 = vld [vmem:[%s1 + $0x1ac] sm:$0xf]
  %v1429 = vld [vmem:[%s1 + $0x1b0] sm:$0xff]
  %v1430 = vld [vmem:[%s1 + $0x1b8] sm:$0xf]
  %v1431 = vld [vmem:[%s1 + $0x1bc] sm:$0xff]
  %v1432 = vld [vmem:[%s1 + $0x1c4] sm:$0xf]
  %v1433 = vld [vmem:[%s1 + $0x1c8] sm:$0xff]
  %v1434 = vld [vmem:[%s1 + $0x1d0] sm:$0xf]
  %v1435 = vld [vmem:[%s1 + $0x1d4] sm:$0xff]
  %v1436 = vld [vmem:[%s1 + $0x1dc] sm:$0xf]
  %v1437 = vld [vmem:[%s1 + $0x1e0] sm:$0xff]
  %v1438 = vld [vmem:[%s1 + $0x1e8] sm:$0xf]
  %v1439 = vld [vmem:[%s1 + $0x1ec] sm:$0xff]
  %v1440 = vld [vmem:[%s1 + $0x1f4] sm:$0xf]
  %v1441 = vld [vmem:[%s1 + $0x1f8] sm:$0xff]
  %v1442 = vld [vmem:[%s1 + $0x200] sm:$0xf]
  %v1443 = vld [vmem:[%s1 + $0x204] sm:$0xff]
  %v1444 = vld [vmem:[%s1 + $0x20c] sm:$0xf]
  %v1445 = vld [vmem:[%s1 + $0x210] sm:$0xff]
  %v1446 = vld [vmem:[%s1 + $0x218] sm:$0xf]
  %v1447 = vld [vmem:[%s1 + $0x21c] sm:$0xff]
  %v1448 = vld [vmem:[%s1 + $0x224] sm:$0xf]
  %v1449 = vld [vmem:[%s1 + $0x228] sm:$0xff]
  %v1450 = vld [vmem:[%s1 + $0x230] sm:$0xf]
  %v1451 = vld [vmem:[%s1 + $0x234] sm:$0xff]
  %v1452 = vld [vmem:[%s1 + $0x23c] sm:$0xf]
  %v1453 = vld [vmem:[%s1 + $0x240] sm:$0xff]
  %v1454 = vld [vmem:[%s1 + $0x248] sm:$0xf]
  %v1455 = vld [vmem:[%s1 + $0x24c] sm:$0xff]
  %v1456 = vld [vmem:[%s1 + $0x254] sm:$0xf]
  %v1457 = vld [vmem:[%s1 + $0x258] sm:$0xff]
  %v1458 = vld [vmem:[%s1 + $0x260] sm:$0xf]
  %v1459 = vld [vmem:[%s1 + $0x264] sm:$0xff]
  %v1460 = vld [vmem:[%s1 + $0x26c] sm:$0xf]
  %v1461 = vld [vmem:[%s1 + $0x270] sm:$0xff]
  %v1462 = vld [vmem:[%s1 + $0x278] sm:$0xf]
  %v1463 = vld [vmem:[%s1 + $0x27c] sm:$0xff]
  %v1464 = vld [vmem:[%s1 + $0x284] sm:$0xf]
  %v1465 = vld [vmem:[%s1 + $0x288] sm:$0xff]
  %v1466 = vld [vmem:[%s1 + $0x290] sm:$0xf]
  %v1467 = vld [vmem:[%s1 + $0x294] sm:$0xff]
  %v1468 = vld [vmem:[%s1 + $0x29c] sm:$0xf]
  %v1469 = vld [vmem:[%s1 + $0x2a0] sm:$0xff]
  %v1470 = vld [vmem:[%s1 + $0x2a8] sm:$0xf]
  %v1471 = vld [vmem:[%s1 + $0x2ac] sm:$0xff]
  %v1472 = vld [vmem:[%s1 + $0x2b4] sm:$0xf]
  %v1473 = vld [vmem:[%s1 + $0x2b8] sm:$0xff]
  %v1474 = vld [vmem:[%s1 + $0x2c0] sm:$0xf]
  %v1475 = vld [vmem:[%s1 + $0x2c4] sm:$0xff]
  %v1476 = vld [vmem:[%s1 + $0x2cc] sm:$0xf]
  %v1477 = vld [vmem:[%s1 + $0x2d0] sm:$0xff]
  %v1478 = vld [vmem:[%s1 + $0x2d8] sm:$0xf]
  %v1479 = vld [vmem:[%s1 + $0x2dc] sm:$0xff]
  %v1480 = vld [vmem:[%s1 + $0x2e4] sm:$0xf]
  %v1481 = vld [vmem:[%s1 + $0x2e8] sm:$0xff]
  %v1482 = vld [vmem:[%s1 + $0x2f0] sm:$0xf]
  %v1483 = vld [vmem:[%s1 + $0x2f4] sm:$0xff]
  %v1484 = vld [vmem:[%s1 + $0x2fc] sm:$0xf]
  %v1485 = vld [vmem:[%s1 + $0x300] sm:$0xff]
  %v1486 = vld [vmem:[%s1 + $0x308] sm:$0xf]
  %v1487 = vld [vmem:[%s1 + $0x30c] sm:$0xff]
  %v1488 = vld [vmem:[%s1 + $0x314] sm:$0xf]
  %v1489 = vld [vmem:[%s1 + $0x318] sm:$0xff]
  %v1490 = vld [vmem:[%s1 + $0x320] sm:$0xf]
  %v1491 = vld [vmem:[%s1 + $0x324] sm:$0xff]
  %v1492 = vld [vmem:[%s1 + $0x32c] sm:$0xf]
  %v1493 = vld [vmem:[%s1 + $0x330] sm:$0xff]
  %v1494 = vld [vmem:[%s1 + $0x338] sm:$0xf]
  %v1495 = vld [vmem:[%s1 + $0x33c] sm:$0xff]
  %v1496 = vld [vmem:[%s1 + $0x344] sm:$0xf]
  %v1497 = vld [vmem:[%s1 + $0x348] sm:$0xff]
  %v1498 = vld [vmem:[%s1 + $0x350] sm:$0xf]
  %v1499 = vld [vmem:[%s1 + $0x354] sm:$0xff]
  %v1500 = vld [vmem:[%s1 + $0x35c] sm:$0xf]
  %v1501 = vld [vmem:[%s1 + $0x360] sm:$0xff]
  %v1502 = vld [vmem:[%s1 + $0x368] sm:$0xf]
  %v1503 = vld [vmem:[%s1 + $0x36c] sm:$0xff]
  %v1504 = vld [vmem:[%s1 + $0x374] sm:$0xf]
  %v1505 = vld [vmem:[%s1 + $0x378] sm:$0xff]
  %v1506 = vld [vmem:[%s1 + $0x380] sm:$0xf]
  %v1507 = vld [vmem:[%s1 + $0x384] sm:$0xff]
  %v1508 = vld [vmem:[%s1 + $0x38c] sm:$0xf]
  %v1509 = vld [vmem:[%s1 + $0x390] sm:$0xff]
  %v1510 = vld [vmem:[%s1 + $0x398] sm:$0xf]
  %v1511 = vld [vmem:[%s1 + $0x39c] sm:$0xff]
  %v1512 = vld [vmem:[%s1 + $0x3a4] sm:$0xf]
  %v1513 = vld [vmem:[%s1 + $0x3a8] sm:$0xff]
  %v1514 = vld [vmem:[%s1 + $0x3b0] sm:$0xf]
  %v1515 = vld [vmem:[%s1 + $0x3b4] sm:$0xff]
  %v1516 = vld [vmem:[%s1 + $0x3bc] sm:$0xf]
  %v1517 = vld [vmem:[%s1 + $0x3c0] sm:$0xff]
  %v1518 = vld [vmem:[%s1 + $0x3c8] sm:$0xf]
  %v1519 = vld [vmem:[%s1 + $0x3cc] sm:$0xff]
  %v1520 = vld [vmem:[%s1 + $0x3d4] sm:$0xf]
  %v1521 = vld [vmem:[%s1 + $0x3d8] sm:$0xff]
  %v1522 = vld [vmem:[%s1 + $0x3e0] sm:$0xf]
  %v1523 = vld [vmem:[%s1 + $0x3e4] sm:$0xff]
  %v1524 = vld [vmem:[%s1 + $0x3ec] sm:$0xf]
  %v1525 = vld [vmem:[%s1 + $0x3f0] sm:$0xff]
  %v1526 = vld [vmem:[%s1 + $0x3f8] sm:$0xf]
  %v1527 = vld [vmem:[%s1 + $0x3fc] sm:$0xff]
  %v1528 = vld [vmem:[%s1 + $0x404] sm:$0xf]
  %v1529 = vld [vmem:[%s1 + $0x408] sm:$0xff]
  %v1530 = vld [vmem:[%s1 + $0x410] sm:$0xf]
  %v1531 = vld [vmem:[%s1 + $0x414] sm:$0xff]
  %v1532 = vld [vmem:[%s1 + $0x41c] sm:$0xf]
  %v1533 = vld [vmem:[%s1 + $0x420] sm:$0xff]
  %v1534 = vld [vmem:[%s1 + $0x428] sm:$0xf]
  %v1535 = vld [vmem:[%s1 + $0x42c] sm:$0xff]
  %v1536 = vld [vmem:[%s1 + $0x434] sm:$0xf]
  %v1537 = vld [vmem:[%s1 + $0x438] sm:$0xff]
  %v1538 = vld [vmem:[%s1 + $0x440] sm:$0xf]
  %v1539 = vld [vmem:[%s1 + $0x444] sm:$0xff]
  %v1540 = vld [vmem:[%s1 + $0x44c] sm:$0xf]
  %v1541 = vld [vmem:[%s1 + $0x450] sm:$0xff]
  %v1542 = vld [vmem:[%s1 + $0x458] sm:$0xf]
  %v1543 = vld [vmem:[%s1 + $0x45c] sm:$0xff]
  %v1544 = vld [vmem:[%s1 + $0x464] sm:$0xf]
  %v1545 = vld [vmem:[%s1 + $0x468] sm:$0xff]
  %v1546 = vld [vmem:[%s1 + $0x470] sm:$0xf]
  %v1547 = vld [vmem:[%s1 + $0x474] sm:$0xff]
  %v1548 = vld [vmem:[%s1 + $0x47c] sm:$0xf]
  %v1549 = vld [vmem:[%s1 + $0x480] sm:$0xff]
  %v1550 = vld [vmem:[%s1 + $0x488] sm:$0xf]
  %v1551 = vld [vmem:[%s1 + $0x48c] sm:$0xff]
  %v1552 = vld [vmem:[%s1 + $0x494] sm:$0xf]
  %v1553 = vld [vmem:[%s1 + $0x498] sm:$0xff]
  %v1554 = vld [vmem:[%s1 + $0x4a0] sm:$0xf]
  %v1555 = vld [vmem:[%s1 + $0x4a4] sm:$0xff]
  %v1556 = vld [vmem:[%s1 + $0x4ac] sm:$0xf]
  %v1557 = vld [vmem:[%s1 + $0x4b0] sm:$0xff]
  %v1558 = vld [vmem:[%s1 + $0x4b8] sm:$0xf]
  %v1559 = vld [vmem:[%s1 + $0x4bc] sm:$0xff]
  %v1560 = vld [vmem:[%s1 + $0x4c4] sm:$0xf]
  %v1561 = vld [vmem:[%s1 + $0x4c8] sm:$0xff]
  %v1562 = vld [vmem:[%s1 + $0x4d0] sm:$0xf]
  %v1563 = vld [vmem:[%s1 + $0x4d4] sm:$0xff]
  %v1564 = vld [vmem:[%s1 + $0x4dc] sm:$0xf]
  %v1565 = vld [vmem:[%s1 + $0x4e0] sm:$0xff]
  %v1566 = vld [vmem:[%s1 + $0x4e8] sm:$0xf]
  %v1567 = vld [vmem:[%s1 + $0x4ec] sm:$0xff]
  %v1568 = vld [vmem:[%s1 + $0x4f4] sm:$0xf]
  %v1569 = vld [vmem:[%s1 + $0x4f8] sm:$0xff]
  %v1570 = vld [vmem:[%s1 + $0x500] sm:$0xf]
  %v1571 = vld [vmem:[%s1 + $0x504] sm:$0xff]
  %v1572 = vld [vmem:[%s1 + $0x50c] sm:$0xf]
  %v1573 = vld [vmem:[%s1 + $0x510] sm:$0xff]
  %v1574 = vld [vmem:[%s1 + $0x518] sm:$0xf]
  %v1575 = vld [vmem:[%s1 + $0x51c] sm:$0xff]
  %v1576 = vld [vmem:[%s1 + $0x524] sm:$0xf]
  %v1577 = vld [vmem:[%s1 + $0x528] sm:$0xff]
  %v1578 = vld [vmem:[%s1 + $0x530] sm:$0xf]
  %v1579 = vld [vmem:[%s1 + $0x534] sm:$0xff]
  %v1580 = vld [vmem:[%s1 + $0x53c] sm:$0xf]
  %v1581 = vld [vmem:[%s1 + $0x540] sm:$0xff]
  %v1582 = vld [vmem:[%s1 + $0x548] sm:$0xf]
  %v1583 = vld [vmem:[%s1 + $0x54c] sm:$0xff]
  %v1584 = vld [vmem:[%s1 + $0x554] sm:$0xf]
  %v1585 = vld [vmem:[%s1 + $0x558] sm:$0xff]
  %v1586 = vld [vmem:[%s1 + $0x560] sm:$0xf]
  %v1587 = vld [vmem:[%s1 + $0x564] sm:$0xff]
  %v1588 = vld [vmem:[%s1 + $0x56c] sm:$0xf]
  %v1589 = vld [vmem:[%s1 + $0x570] sm:$0xff]
  %v1590 = vld [vmem:[%s1 + $0x578] sm:$0xf]
  %v1591 = vld [vmem:[%s1 + $0x57c] sm:$0xff]
  %v1592 = vld [vmem:[%s1 + $0x584] sm:$0xf]
  %v1593 = vld [vmem:[%s1 + $0x588] sm:$0xff]
  %v1594 = vld [vmem:[%s1 + $0x590] sm:$0xf]
  %v1595 = vld [vmem:[%s1 + $0x594] sm:$0xff]
  %v1596 = vld [vmem:[%s1 + $0x59c] sm:$0xf]
  %v1597 = vld [vmem:[%s1 + $0x5a0] sm:$0xff]
  %v1598 = vld [vmem:[%s1 + $0x5a8] sm:$0xf]
  %v1599 = vld [vmem:[%s1 + $0x5ac] sm:$0xff]
  %v1600 = vld [vmem:[%s1 + $0x5b4] sm:$0xf]
  %v1601 = vld [vmem:[%s1 + $0x5b8] sm:$0xff]
  %v1602 = vld [vmem:[%s1 + $0x5c0] sm:$0xf]
  %v1603 = vld [vmem:[%s1 + $0x5c4] sm:$0xff]
  %v1604 = vld [vmem:[%s1 + $0x5cc] sm:$0xf]
  %v1605 = vld [vmem:[%s1 + $0x5d0] sm:$0xff]
  %v1606 = vld [vmem:[%s1 + $0x5d8] sm:$0xf]
  %v1607 = vld [vmem:[%s1 + $0x5dc] sm:$0xff]
  %v1608 = vld [vmem:[%s1 + $0x5e4] sm:$0xf]
  %v1609 = vld [vmem:[%s1 + $0x5e8] sm:$0xff]
  %v1610 = vld [vmem:[%s1 + $0x5f0] sm:$0xf]
  %v1611 = vld [vmem:[%s1 + $0x5f4] sm:$0xff]
  %v1612 = vld [vmem:[%s1 + $0x5fc] sm:$0xf]
  %v1613 = vld [vmem:[%s1 + $0x600] sm:$0xff]
  %v1614 = vld [vmem:[%s1 + $0x608] sm:$0xf]
  %v1615 = vld [vmem:[%s1 + $0x60c] sm:$0xff]
  %v1616 = vld [vmem:[%s1 + $0x614] sm:$0xf]
  %v1617 = vld [vmem:[%s1 + $0x618] sm:$0xff]
  %v1618 = vld [vmem:[%s1 + $0x620] sm:$0xf]
  %v1619 = vld [vmem:[%s1 + $0x624] sm:$0xff]
  %v1620 = vld [vmem:[%s1 + $0x62c] sm:$0xf]
  %v1621 = vld [vmem:[%s1 + $0x630] sm:$0xff]
  %v1622 = vld [vmem:[%s1 + $0x638] sm:$0xf]
  %v1623 = vld [vmem:[%s1 + $0x63c] sm:$0xff]
  %v1624 = vld [vmem:[%s1 + $0x644] sm:$0xf]
  %v1625 = vld [vmem:[%s1 + $0x648] sm:$0xff]
  %v1626 = vld [vmem:[%s1 + $0x650] sm:$0xf]
  %v1627 = vld [vmem:[%s1 + $0x654] sm:$0xff]
  %v1628 = vld [vmem:[%s1 + $0x65c] sm:$0xf]
  %v1629 = vld [vmem:[%s1 + $0x660] sm:$0xff]
  %v1630 = vld [vmem:[%s1 + $0x668] sm:$0xf]
  %v1631 = vld [vmem:[%s1 + $0x66c] sm:$0xff]
  %v1632 = vld [vmem:[%s1 + $0x674] sm:$0xf]
  %v1633 = vld [vmem:[%s1 + $0x678] sm:$0xff]
  %v1634 = vld [vmem:[%s1 + $0x680] sm:$0xf]
  %v1635 = vld [vmem:[%s1 + $0x684] sm:$0xff]
  %v1636 = vld [vmem:[%s1 + $0x68c] sm:$0xf]
  %v1637 = vld [vmem:[%s1 + $0x690] sm:$0xff]
  %v1638 = vld [vmem:[%s1 + $0x698] sm:$0xf]
  %v1639 = vld [vmem:[%s1 + $0x69c] sm:$0xff]
  %v1640 = vld [vmem:[%s1 + $0x6a4] sm:$0xf]
  %v1641 = vld [vmem:[%s1 + $0x6a8] sm:$0xff]
  %v1642 = vld [vmem:[%s1 + $0x6b0] sm:$0xf]
  %v1643 = vld [vmem:[%s1 + $0x6b4] sm:$0xff]
  %v1644 = vld [vmem:[%s1 + $0x6bc] sm:$0xf]
  %v1645 = vld [vmem:[%s1 + $0x6c0] sm:$0xff]
  %v1646 = vld [vmem:[%s1 + $0x6c8] sm:$0xf]
  %v1647 = vld [vmem:[%s1 + $0x6cc] sm:$0xff]
  %v1648 = vld [vmem:[%s1 + $0x6d4] sm:$0xf]
  %v1649 = vld [vmem:[%s1 + $0x6d8] sm:$0xff]
  %v1650 = vld [vmem:[%s1 + $0x6e0] sm:$0xf]
  %v1651 = vld [vmem:[%s1 + $0x6e4] sm:$0xff]
  %v1652 = vld [vmem:[%s1 + $0x6ec] sm:$0xf]
  %v1653 = vld [vmem:[%s1 + $0x6f0] sm:$0xff]
  %v1654 = vld [vmem:[%s1 + $0x6f8] sm:$0xf]
  %v1655 = vld [vmem:[%s1 + $0x6fc] sm:$0xff]
  %v1656 = vld [vmem:[%s1 + $0x704] sm:$0xf]
  %v1657 = vld [vmem:[%s1 + $0x708] sm:$0xff]
  %v1658 = vld [vmem:[%s1 + $0x710] sm:$0xf]
  %v1659 = vld [vmem:[%s1 + $0x714] sm:$0xff]
  %v1660 = vld [vmem:[%s1 + $0x71c] sm:$0xf]
  %v1661 = vld [vmem:[%s1 + $0x720] sm:$0xff]
  %v1662 = vld [vmem:[%s1 + $0x728] sm:$0xf]
  %v1663 = vld [vmem:[%s1 + $0x72c] sm:$0xff]
  %v1664 = vld [vmem:[%s1 + $0x734] sm:$0xf]
  %v1665 = vld [vmem:[%s1 + $0x738] sm:$0xff]
  %v1666 = vld [vmem:[%s1 + $0x740] sm:$0xf]
  %v1667 = vld [vmem:[%s1 + $0x744] sm:$0xff]
  %v1668 = vld [vmem:[%s1 + $0x74c] sm:$0xf]
  %v1669 = vld [vmem:[%s1 + $0x750] sm:$0xff]
  %v1670 = vld [vmem:[%s1 + $0x758] sm:$0xf]
  %v1671 = vld [vmem:[%s1 + $0x75c] sm:$0xff]
  %v1672 = vld [vmem:[%s1 + $0x764] sm:$0xf]
  %v1673 = vld [vmem:[%s1 + $0x768] sm:$0xff]
  %v1674 = vld [vmem:[%s1 + $0x770] sm:$0xf]
  %v1675 = vld [vmem:[%s1 + $0x774] sm:$0xff]
  %v1676 = vld [vmem:[%s1 + $0x77c] sm:$0xf]
  %v1677 = vld [vmem:[%s1 + $0x780] sm:$0xff]
  %v1678 = vld [vmem:[%s1 + $0x788] sm:$0xf]
  %v1679 = vld [vmem:[%s1 + $0x78c] sm:$0xff]
  %v1680 = vld [vmem:[%s1 + $0x794] sm:$0xf]
  %v1681 = vld [vmem:[%s1 + $0x798] sm:$0xff]
  %v1682 = vld [vmem:[%s1 + $0x7a0] sm:$0xf]
  %v1683 = vld [vmem:[%s1 + $0x7a4] sm:$0xff]
  %v1684 = vld [vmem:[%s1 + $0x7ac] sm:$0xf]
  %v1685 = vld [vmem:[%s1 + $0x7b0] sm:$0xff]
  %v1686 = vld [vmem:[%s1 + $0x7b8] sm:$0xf]
  %v1687 = vld [vmem:[%s1 + $0x7bc] sm:$0xff]
  %v1688 = vld [vmem:[%s1 + $0x7c4] sm:$0xf]
  %v1689 = vld [vmem:[%s1 + $0x7c8] sm:$0xff]
  %v1690 = vld [vmem:[%s1 + $0x7d0] sm:$0xf]
  %v1691 = vld [vmem:[%s1 + $0x7d4] sm:$0xff]
  %v1692 = vld [vmem:[%s1 + $0x7dc] sm:$0xf]
  %v1693 = vld [vmem:[%s1 + $0x7e0] sm:$0xff]
  %v1694 = vld [vmem:[%s1 + $0x7e8] sm:$0xf]
  %v1695 = vld [vmem:[%s1 + $0x7ec] sm:$0xff]
  %v1696 = vld [vmem:[%s1 + $0x7f4] sm:$0xf]
  %v1697 = vld [vmem:[%s1 + $0x7f8] sm:$0xff]
  %v1698 = vld [vmem:[%s1 + $0x800] sm:$0xf]
  %v1699 = vld [vmem:[%s1 + $0x804] sm:$0xff]
  %v1700 = vld [vmem:[%s1 + $0x80c] sm:$0xf]
  %v1701 = vld [vmem:[%s1 + $0x810] sm:$0xff]
  %v1702 = vld [vmem:[%s1 + $0x818] sm:$0xf]
  %v1703 = vld [vmem:[%s1 + $0x81c] sm:$0xff]
  %v1704 = vld [vmem:[%s1 + $0x824] sm:$0xf]
  %v1705 = vld [vmem:[%s1 + $0x828] sm:$0xff]
  %v1706 = vld [vmem:[%s1 + $0x830] sm:$0xf]
  %v1707 = vld [vmem:[%s1 + $0x834] sm:$0xff]
  %v1708 = vld [vmem:[%s1 + $0x83c] sm:$0xf]
  %v1709 = vld [vmem:[%s1 + $0x840] sm:$0xff]
  %v1710 = vld [vmem:[%s1 + $0x848] sm:$0xf]
  %v1711 = vld [vmem:[%s1 + $0x84c] sm:$0xff]
  %v1712 = vld [vmem:[%s1 + $0x854] sm:$0xf]
  %v1713 = vld [vmem:[%s1 + $0x858] sm:$0xff]
  %v1714 = vld [vmem:[%s1 + $0x860] sm:$0xf]
  %v1715 = vld [vmem:[%s1 + $0x864] sm:$0xff]
  %v1716 = vld [vmem:[%s1 + $0x86c] sm:$0xf]
  %v1717 = vld [vmem:[%s1 + $0x870] sm:$0xff]
  %v1718 = vld [vmem:[%s1 + $0x878] sm:$0xf]
  %v1719 = vld [vmem:[%s1 + $0x87c] sm:$0xff]
  %v1720 = vld [vmem:[%s1 + $0x884] sm:$0xf]
  %v1721 = vld [vmem:[%s1 + $0x888] sm:$0xff]
  %v1722 = vld [vmem:[%s1 + $0x890] sm:$0xf]
  %v1723 = vld [vmem:[%s1 + $0x894] sm:$0xff]
  %v1724 = vld [vmem:[%s1 + $0x89c] sm:$0xf]
  %v1725 = vld [vmem:[%s1 + $0x8a0] sm:$0xff]
  %v1726 = vld [vmem:[%s1 + $0x8a8] sm:$0xf]
  %v1727 = vld [vmem:[%s1 + $0x8ac] sm:$0xff]
  %v1728 = vld [vmem:[%s1 + $0x8b4] sm:$0xf]
  %v1729 = vld [vmem:[%s1 + $0x8b8] sm:$0xff]
  %v1730 = vld [vmem:[%s1 + $0x8c0] sm:$0xf]
  %v1731 = vld [vmem:[%s1 + $0x8c4] sm:$0xff]
  %v1732 = vld [vmem:[%s1 + $0x8cc] sm:$0xf]
  %v1733 = vld [vmem:[%s1 + $0x8d0] sm:$0xff]
  %v1734 = vld [vmem:[%s1 + $0x8d8] sm:$0xf]
  %v1735 = vld [vmem:[%s1 + $0x8dc] sm:$0xff]
  %v1736 = vld [vmem:[%s1 + $0x8e4] sm:$0xf]
  %v1737 = vld [vmem:[%s1 + $0x8e8] sm:$0xff]
  %v1738 = vld [vmem:[%s1 + $0x8f0] sm:$0xf]
  %v1739 = vld [vmem:[%s1 + $0x8f4] sm:$0xff]
  %v1740 = vld [vmem:[%s1 + $0x8fc] sm:$0xf]
  %v1741 = vld [vmem:[%s1 + $0x900] sm:$0xff]
  %v1742 = vld [vmem:[%s1 + $0x908] sm:$0xf]
  %v1743 = vld [vmem:[%s1 + $0x90c] sm:$0xff]
  %v1744 = vld [vmem:[%s1 + $0x914] sm:$0xf]
  %v1745 = vld [vmem:[%s1 + $0x918] sm:$0xff]
  %v1746 = vld [vmem:[%s1 + $0x920] sm:$0xf]
  %v1747 = vld [vmem:[%s1 + $0x924] sm:$0xff]
  %v1748 = vld [vmem:[%s1 + $0x92c] sm:$0xf]
  %v1749 = vld [vmem:[%s1 + $0x930] sm:$0xff]
  %v1750 = vld [vmem:[%s1 + $0x938] sm:$0xf]
  %v1751 = vld [vmem:[%s1 + $0x93c] sm:$0xff]
  %v1752 = vld [vmem:[%s1 + $0x944] sm:$0xf]
  %v1753 = vld [vmem:[%s1 + $0x948] sm:$0xff]
  %v1754 = vld [vmem:[%s1 + $0x950] sm:$0xf]
  %v1755 = vld [vmem:[%s1 + $0x954] sm:$0xff]
  %v1756 = vld [vmem:[%s1 + $0x95c] sm:$0xf]
  %v1757 = vld [vmem:[%s1 + $0x960] sm:$0xff]
  %v1758 = vld [vmem:[%s1 + $0x968] sm:$0xf]
  %v1759 = vld [vmem:[%s1 + $0x96c] sm:$0xff]
  %v1760 = vld [vmem:[%s1 + $0x974] sm:$0xf]
  %v1761 = vld [vmem:[%s1 + $0x978] sm:$0xff]
  %v1762 = vld [vmem:[%s1 + $0x980] sm:$0xf]
  %v1763 = vld [vmem:[%s1 + $0x984] sm:$0xff]
  %v1764 = vld [vmem:[%s1 + $0x98c] sm:$0xf]
  %v1765 = vld [vmem:[%s1 + $0x990] sm:$0xff]
  %v1766 = vld [vmem:[%s1 + $0x998] sm:$0xf]
  %v1767 = vld [vmem:[%s1 + $0x99c] sm:$0xff]
  %v1768 = vld [vmem:[%s1 + $0x9a4] sm:$0xf]
  %v1769 = vld [vmem:[%s1 + $0x9a8] sm:$0xff]
  %v1770 = vld [vmem:[%s1 + $0x9b0] sm:$0xf]
  %v1771 = vld [vmem:[%s1 + $0x9b4] sm:$0xff]
  %v1772 = vld [vmem:[%s1 + $0x9bc] sm:$0xf]
  %v1773 = vld [vmem:[%s1 + $0x9c0] sm:$0xff]
  %v1774 = vld [vmem:[%s1 + $0x9c8] sm:$0xf]
  %v1775 = vld [vmem:[%s1 + $0x9cc] sm:$0xff]
  %v1776 = vld [vmem:[%s1 + $0x9d4] sm:$0xf]
  %v1777 = vld [vmem:[%s1 + $0x9d8] sm:$0xff]
  %v1778 = vld [vmem:[%s1 + $0x9e0] sm:$0xf]
  %v1779 = vld [vmem:[%s1 + $0x9e4] sm:$0xff]
  %v1780 = vld [vmem:[%s1 + $0x9ec] sm:$0xf]
  %v1781 = vld [vmem:[%s1 + $0x9f0] sm:$0xff]
  %v1782 = vld [vmem:[%s1 + $0x9f8] sm:$0xf]
  %v1783 = vld [vmem:[%s1 + $0x9fc] sm:$0xff]
  %v1784 = vld [vmem:[%s1 + $0xa04] sm:$0xf]
  %v1785 = vld [vmem:[%s1 + $0xa08] sm:$0xff]
  %v1786 = vld [vmem:[%s1 + $0xa10] sm:$0xf]
  %v1787 = vld [vmem:[%s1 + $0xa14] sm:$0xff]
  %v1788 = vld [vmem:[%s1 + $0xa1c] sm:$0xf]
  %v1789 = vld [vmem:[%s1 + $0xa20] sm:$0xff]
  %v1790 = vld [vmem:[%s1 + $0xa28] sm:$0xf]
  %v1791 = vld [vmem:[%s1 + $0xa2c] sm:$0xff]
  %v1792 = vld [vmem:[%s1 + $0xa34] sm:$0xf]
  %v1793 = vld [vmem:[%s1 + $0xa38] sm:$0xff]
  %v1794 = vld [vmem:[%s1 + $0xa40] sm:$0xf]
  %v1795 = vld [vmem:[%s1 + $0xa44] sm:$0xff]
  %v1796 = vld [vmem:[%s1 + $0xa4c] sm:$0xf]
  %v1797 = vld [vmem:[%s1 + $0xa50] sm:$0xff]
  %v1798 = vld [vmem:[%s1 + $0xa58] sm:$0xf]
  %v1799 = vld [vmem:[%s1 + $0xa5c] sm:$0xff]
  %v1800 = vld [vmem:[%s1 + $0xa64] sm:$0xf]
  %v1801 = vld [vmem:[%s1 + $0xa68] sm:$0xff]
  %v1802 = vld [vmem:[%s1 + $0xa70] sm:$0xf]
  %v1803 = vld [vmem:[%s1 + $0xa74] sm:$0xff]
  %v1804 = vld [vmem:[%s1 + $0xa7c] sm:$0xf]
  %v1805 = vld [vmem:[%s1 + $0xa80] sm:$0xff]
  %v1806 = vld [vmem:[%s1 + $0xa88] sm:$0xf]
  %v1807 = vld [vmem:[%s1 + $0xa8c] sm:$0xff]
  %v1808 = vld [vmem:[%s1 + $0xa94] sm:$0xf]
  %v1809 = vld [vmem:[%s1 + $0xa98] sm:$0xff]
  %v1810 = vld [vmem:[%s1 + $0xaa0] sm:$0xf]
  %v1811 = vld [vmem:[%s1 + $0xaa4] sm:$0xff]
  %v1812 = vld [vmem:[%s1 + $0xaac] sm:$0xf]
  %v1813 = vld [vmem:[%s1 + $0xab0] sm:$0xff]
  %v1814 = vld [vmem:[%s1 + $0xab8] sm:$0xf]
  %v1815 = vld [vmem:[%s1 + $0xabc] sm:$0xff]
  %v1816 = vld [vmem:[%s1 + $0xac4] sm:$0xf]
  %v1817 = vld [vmem:[%s1 + $0xac8] sm:$0xff]
  %v1818 = vld [vmem:[%s1 + $0xad0] sm:$0xf]
  %v1819 = vld [vmem:[%s1 + $0xad4] sm:$0xff]
  %v1820 = vld [vmem:[%s1 + $0xadc] sm:$0xf]
  %v1821 = vld [vmem:[%s1 + $0xae0] sm:$0xff]
  %v1822 = vld [vmem:[%s1 + $0xae8] sm:$0xf]
  %v1823 = vld [vmem:[%s1 + $0xaec] sm:$0xff]
  %v1824 = vld [vmem:[%s1 + $0xaf4] sm:$0xf]
  %v1825 = vld [vmem:[%s1 + $0xaf8] sm:$0xff]
  %v1826 = vld [vmem:[%s1 + $0xb00] sm:$0xf]
  %v1827 = vld [vmem:[%s1 + $0xb04] sm:$0xff]
  %v1828 = vld [vmem:[%s1 + $0xb0c] sm:$0xf]
  %v1829 = vld [vmem:[%s1 + $0xb10] sm:$0xff]
  %v1830 = vld [vmem:[%s1 + $0xb18] sm:$0xf]
  %v1831 = vld [vmem:[%s1 + $0xb1c] sm:$0xff]
  %v1832 = vld [vmem:[%s1 + $0xb24] sm:$0xf]
  %v1833 = vld [vmem:[%s1 + $0xb28] sm:$0xff]
  %v1834 = vld [vmem:[%s1 + $0xb30] sm:$0xf]
  %v1835 = vld [vmem:[%s1 + $0xb34] sm:$0xff]
  %v1836 = vld [vmem:[%s1 + $0xb3c] sm:$0xf]
  %v1837 = vld [vmem:[%s1 + $0xb40] sm:$0xff]
  %v1838 = vld [vmem:[%s1 + $0xb48] sm:$0xf]
  %v1839 = vld [vmem:[%s1 + $0xb4c] sm:$0xff]
  %v1840 = vld [vmem:[%s1 + $0xb54] sm:$0xf]
  %v1841 = vld [vmem:[%s1 + $0xb58] sm:$0xff]
  %v1842 = vld [vmem:[%s1 + $0xb60] sm:$0xf]
  %v1843 = vld [vmem:[%s1 + $0xb64] sm:$0xff]
  %v1844 = vld [vmem:[%s1 + $0xb6c] sm:$0xf]
  %v1845 = vld [vmem:[%s1 + $0xb70] sm:$0xff]
  %v1846 = vld [vmem:[%s1 + $0xb78] sm:$0xf]
  %v1847 = vld [vmem:[%s1 + $0xb7c] sm:$0xff]
  %v1848 = vld [vmem:[%s1 + $0xb84] sm:$0xf]
  %v1849 = vld [vmem:[%s1 + $0xb88] sm:$0xff]
  %v1850 = vld [vmem:[%s1 + $0xb90] sm:$0xf]
  %v1851 = vld [vmem:[%s1 + $0xb94] sm:$0xff]
  %v1852 = vld [vmem:[%s1 + $0xb9c] sm:$0xf]
  %v1853 = vld [vmem:[%s1 + $0xba0] sm:$0xff]
  %v1854 = vld [vmem:[%s1 + $0xba8] sm:$0xf]
  %v1855 = vld [vmem:[%s1 + $0xbac] sm:$0xff]
  %v1856 = vld [vmem:[%s1 + $0xbb4] sm:$0xf]
  %v1857 = vld [vmem:[%s1 + $0xbb8] sm:$0xff]
  %v1858 = vld [vmem:[%s1 + $0xbc0] sm:$0xf]
  %v1859 = vld [vmem:[%s1 + $0xbc4] sm:$0xff]
  %v1860 = vld [vmem:[%s1 + $0xbcc] sm:$0xf]
  %v1861 = vld [vmem:[%s1 + $0xbd0] sm:$0xff]
  %v1862 = vld [vmem:[%s1 + $0xbd8] sm:$0xf]
  %v1863 = vld [vmem:[%s1 + $0xbdc] sm:$0xff]
  %v1864 = vld [vmem:[%s1 + $0xbe4] sm:$0xf]
  %v1865 = vld [vmem:[%s1 + $0xbe8] sm:$0xff]
  %v1866 = vld [vmem:[%s1 + $0xbf0] sm:$0xf]
  %v1867 = vld [vmem:[%s1 + $0xbf4] sm:$0xff]
  %v1868 = vld [vmem:[%s1 + $0xbfc] sm:$0xf]
  %v1869 = vld [vmem:[%s1 + $0xc00] sm:$0xff]
  %v1870 = vld [vmem:[%s1 + $0xc08] sm:$0xf]
  %v1871 = vld [vmem:[%s1 + $0xc0c] sm:$0xff]
  %v1872 = vld [vmem:[%s1 + $0xc14] sm:$0xf]
  %v1873 = vld [vmem:[%s1 + $0xc18] sm:$0xff]
  %v1874 = vld [vmem:[%s1 + $0xc20] sm:$0xf]
  %v1875 = vld [vmem:[%s1 + $0xc24] sm:$0xff]
  %v1876 = vld [vmem:[%s1 + $0xc2c] sm:$0xf]
  %v1877 = vld [vmem:[%s1 + $0xc30] sm:$0xff]
  %v1878 = vld [vmem:[%s1 + $0xc38] sm:$0xf]
  %v1879 = vld [vmem:[%s1 + $0xc3c] sm:$0xff]
  %v1880 = vld [vmem:[%s1 + $0xc44] sm:$0xf]
  %v1881 = vld [vmem:[%s1 + $0xc48] sm:$0xff]
  %v1882 = vld [vmem:[%s1 + $0xc50] sm:$0xf]
  %v1883 = vld [vmem:[%s1 + $0xc54] sm:$0xff]
  %v1884 = vld [vmem:[%s1 + $0xc5c] sm:$0xf]
  %v1885 = vld [vmem:[%s1 + $0xc60] sm:$0xff]
  %v1886 = vld [vmem:[%s1 + $0xc68] sm:$0xf]
  %v1887 = vld [vmem:[%s1 + $0xc6c] sm:$0xff]
  %v1888 = vld [vmem:[%s1 + $0xc74] sm:$0xf]
  %v1889 = vld [vmem:[%s1 + $0xc78] sm:$0xff]
  %v1890 = vld [vmem:[%s1 + $0xc80] sm:$0xf]
  %v1891 = vld [vmem:[%s1 + $0xc84] sm:$0xff]
  %v1892 = vld [vmem:[%s1 + $0xc8c] sm:$0xf]
  %v1893 = vld [vmem:[%s1 + $0xc90] sm:$0xff]
  %v1894 = vld [vmem:[%s1 + $0xc98] sm:$0xf]
  %v1895 = vld [vmem:[%s1 + $0xc9c] sm:$0xff]
  %v1896 = vld [vmem:[%s1 + $0xca4] sm:$0xf]
  %v1897 = vld [vmem:[%s1 + $0xca8] sm:$0xff]
  %v1898 = vld [vmem:[%s1 + $0xcb0] sm:$0xf]
  %v1899 = vld [vmem:[%s1 + $0xcb4] sm:$0xff]
  %v1900 = vld [vmem:[%s1 + $0xcbc] sm:$0xf]
  %v1901 = vld [vmem:[%s1 + $0xcc0] sm:$0xff]
  %v1902 = vld [vmem:[%s1 + $0xcc8] sm:$0xf]
  %v1903 = vld [vmem:[%s1 + $0xccc] sm:$0xff]
  %v1904 = vld [vmem:[%s1 + $0xcd4] sm:$0xf]
  %v1905 = vld [vmem:[%s1 + $0xcd8] sm:$0xff]
  %v1906 = vld [vmem:[%s1 + $0xce0] sm:$0xf]
  %v1907 = vld [vmem:[%s1 + $0xce4] sm:$0xff]
  %v1908 = vld [vmem:[%s1 + $0xcec] sm:$0xf]
  %v1909 = vld [vmem:[%s1 + $0xcf0] sm:$0xff]
  %v1910 = vld [vmem:[%s1 + $0xcf8] sm:$0xf]
  %v1911 = vld [vmem:[%s1 + $0xcfc] sm:$0xff]
  %v1912 = vld [vmem:[%s1 + $0xd04] sm:$0xf]
  %v1913 = vld [vmem:[%s1 + $0xd08] sm:$0xff]
  %v1914 = vld [vmem:[%s1 + $0xd10] sm:$0xf]
  %v1915 = vld [vmem:[%s1 + $0xd14] sm:$0xff]
  %v1916 = vld [vmem:[%s1 + $0xd1c] sm:$0xf]
  %v1917 = vld [vmem:[%s1 + $0xd20] sm:$0xff]
  %v1918 = vld [vmem:[%s1 + $0xd28] sm:$0xf]
  %v1919 = vld [vmem:[%s1 + $0xd2c] sm:$0xff]
  %v1920 = vld [vmem:[%s1 + $0xd34] sm:$0xf]
  %v1921 = vld [vmem:[%s1 + $0xd38] sm:$0xff]
  %v1922 = vld [vmem:[%s1 + $0xd40] sm:$0xf]
  %v1923 = vld [vmem:[%s1 + $0xd44] sm:$0xff]
  %v1924 = vld [vmem:[%s1 + $0xd4c] sm:$0xf]
  %v1925 = vld [vmem:[%s1 + $0xd50] sm:$0xff]
  %v1926 = vld [vmem:[%s1 + $0xd58] sm:$0xf]
  %v1927 = vld [vmem:[%s1 + $0xd5c] sm:$0xff]
  %v1928 = vld [vmem:[%s1 + $0xd64] sm:$0xf]
  %v1929 = vld [vmem:[%s1 + $0xd68] sm:$0xff]
  %v1930 = vld [vmem:[%s1 + $0xd70] sm:$0xf]
  %v1931 = vld [vmem:[%s1 + $0xd74] sm:$0xff]
  %v1932 = vld [vmem:[%s1 + $0xd7c] sm:$0xf]
  %v1933 = vld [vmem:[%s1 + $0xd80] sm:$0xff]
  %v1934 = vld [vmem:[%s1 + $0xd88] sm:$0xf]
  %v1935 = vld [vmem:[%s1 + $0xd8c] sm:$0xff]
  %v1936 = vld [vmem:[%s1 + $0xd94] sm:$0xf]
  %v1937 = vld [vmem:[%s1 + $0xd98] sm:$0xff]
  %v1938 = vld [vmem:[%s1 + $0xda0] sm:$0xf]
  %v1939 = vld [vmem:[%s1 + $0xda4] sm:$0xff]
  %v1940 = vld [vmem:[%s1 + $0xdac] sm:$0xf]
  %v1941 = vld [vmem:[%s1 + $0xdb0] sm:$0xff]
  %v1942 = vld [vmem:[%s1 + $0xdb8] sm:$0xf]
  %v1943 = vld [vmem:[%s1 + $0xdbc] sm:$0xff]
  %v1944 = vld [vmem:[%s1 + $0xdc4] sm:$0xf]
  %v1945 = vld [vmem:[%s1 + $0xdc8] sm:$0xff]
  %v1946 = vld [vmem:[%s1 + $0xdd0] sm:$0xf]
  %v1947 = vld [vmem:[%s1 + $0xdd4] sm:$0xff]
  %v1948 = vld [vmem:[%s1 + $0xddc] sm:$0xf]
  %v1949 = vld [vmem:[%s1 + $0xde0] sm:$0xff]
  %v1950 = vld [vmem:[%s1 + $0xde8] sm:$0xf]
  %v1951 = vld [vmem:[%s1 + $0xdec] sm:$0xff]
  %v1952 = vld [vmem:[%s1 + $0xdf4] sm:$0xf]
  %v1953 = vld [vmem:[%s1 + $0xdf8] sm:$0xff]
  %v1954 = vld [vmem:[%s1 + $0xe00] sm:$0xf]
  %v1955 = vld [vmem:[%s1 + $0xe04] sm:$0xff]
  %v1956 = vld [vmem:[%s1 + $0xe0c] sm:$0xf]
  %v1957 = vld [vmem:[%s1 + $0xe10] sm:$0xff]
  %v1958 = vld [vmem:[%s1 + $0xe18] sm:$0xf]
  %v1959 = vld [vmem:[%s1 + $0xe1c] sm:$0xff]
  %v1960 = vld [vmem:[%s1 + $0xe24] sm:$0xf]
  %v1961 = vld [vmem:[%s1 + $0xe28] sm:$0xff]
  %v1962 = vld [vmem:[%s1 + $0xe30] sm:$0xf]
  %v1963 = vld [vmem:[%s1 + $0xe34] sm:$0xff]
  %v1964 = vld [vmem:[%s1 + $0xe3c] sm:$0xf]
  %v1965 = vld [vmem:[%s1 + $0xe40] sm:$0xff]
  %v1966 = vld [vmem:[%s1 + $0xe48] sm:$0xf]
  %v1967 = vld [vmem:[%s1 + $0xe4c] sm:$0xff]
  %v1968 = vld [vmem:[%s1 + $0xe54] sm:$0xf]
  %v1969 = vld [vmem:[%s1 + $0xe58] sm:$0xff]
  %v1970 = vld [vmem:[%s1 + $0xe60] sm:$0xf]
  %v1971 = vld [vmem:[%s1 + $0xe64] sm:$0xff]
  %v1972 = vld [vmem:[%s1 + $0xe6c] sm:$0xf]
  %v1973 = vld [vmem:[%s1 + $0xe70] sm:$0xff]
  %v1974 = vld [vmem:[%s1 + $0xe78] sm:$0xf]
  %v1975 = vld [vmem:[%s1 + $0xe7c] sm:$0xff]
  %v1976 = vld [vmem:[%s1 + $0xe84] sm:$0xf]
  %v1977 = vld [vmem:[%s1 + $0xe88] sm:$0xff]
  %v1978 = vld [vmem:[%s1 + $0xe90] sm:$0xf]
  %v1979 = vld [vmem:[%s1 + $0xe94] sm:$0xff]
  %v1980 = vld [vmem:[%s1 + $0xe9c] sm:$0xf]
  %v1981 = vld [vmem:[%s1 + $0xea0] sm:$0xff]
  %v1982 = vld [vmem:[%s1 + $0xea8] sm:$0xf]
  %v1983 = vld [vmem:[%s1 + $0xeac] sm:$0xff]
  %v1984 = vld [vmem:[%s1 + $0xeb4] sm:$0xf]
  %v1985 = vld [vmem:[%s1 + $0xeb8] sm:$0xff]
  %v1986 = vld [vmem:[%s1 + $0xec0] sm:$0xf]
  %v1987 = vld [vmem:[%s1 + $0xec4] sm:$0xff]
  %v1988 = vld [vmem:[%s1 + $0xecc] sm:$0xf]
  %v1989 = vld [vmem:[%s1 + $0xed0] sm:$0xff]
  %v1990 = vld [vmem:[%s1 + $0xed8] sm:$0xf]
  %v1991 = vld [vmem:[%s1 + $0xedc] sm:$0xff]
  %v1992 = vld [vmem:[%s1 + $0xee4] sm:$0xf]
  %v1993 = vld [vmem:[%s1 + $0xee8] sm:$0xff]
  %v1994 = vld [vmem:[%s1 + $0xef0] sm:$0xf]
  %v1995 = vld [vmem:[%s1 + $0xef4] sm:$0xff]
  %v1996 = vld [vmem:[%s1 + $0xefc] sm:$0xf]
  %v1997 = vld [vmem:[%s1 + $0xf00] sm:$0xff]
  %v1998 = vld [vmem:[%s1 + $0xf08] sm:$0xf]
  %v1999 = vld [vmem:[%s1 + $0xf0c] sm:$0xff]
  %v2000 = vld [vmem:[%s1 + $0xf14] sm:$0xf]
  %v2001 = vld [vmem:[%s1 + $0xf18] sm:$0xff]
  %v2002 = vld [vmem:[%s1 + $0xf20] sm:$0xf]
  %v2003 = vld [vmem:[%s1 + $0xf24] sm:$0xff]
  %v2004 = vld [vmem:[%s1 + $0xf2c] sm:$0xf]
  %v2005 = vld [vmem:[%s1 + $0xf30] sm:$0xff]
  %v2006 = vld [vmem:[%s1 + $0xf38] sm:$0xf]
  %v2007 = vld [vmem:[%s1 + $0xf3c] sm:$0xff]
  %v2008 = vld [vmem:[%s1 + $0xf44] sm:$0xf]
  %v2009 = vld [vmem:[%s1 + $0xf48] sm:$0xff]
  %v2010 = vld [vmem:[%s1 + $0xf50] sm:$0xf]
  %v2011 = vld [vmem:[%s1 + $0xf54] sm:$0xff]
  %v2012 = vld [vmem:[%s1 + $0xf5c] sm:$0xf]
  %v2013 = vld [vmem:[%s1 + $0xf60] sm:$0xff]
  %v2014 = vld [vmem:[%s1 + $0xf68] sm:$0xf]
  %v2015 = vld [vmem:[%s1 + $0xf6c] sm:$0xff]
  %v2016 = vld [vmem:[%s1 + $0xf74] sm:$0xf]
  %v2017 = vld [vmem:[%s1 + $0xf78] sm:$0xff]
  %v2018 = vld [vmem:[%s1 + $0xf80] sm:$0xf]
  %v2019 = vld [vmem:[%s1 + $0xf84] sm:$0xff]
  %v2020 = vld [vmem:[%s1 + $0xf8c] sm:$0xf]
  %v2021 = vld [vmem:[%s1 + $0xf90] sm:$0xff]
  %v2022 = vld [vmem:[%s1 + $0xf98] sm:$0xf]
  %v2023 = vld [vmem:[%s1 + $0xf9c] sm:$0xff]
  %v2024 = vld [vmem:[%s1 + $0xfa4] sm:$0xf]
  %v2025 = vld [vmem:[%s1 + $0xfa8] sm:$0xff]
  %v2026 = vld [vmem:[%s1 + $0xfb0] sm:$0xf]
  %v2027 = vld [vmem:[%s1 + $0xfb4] sm:$0xff]
  %v2028 = vld [vmem:[%s1 + $0xfbc] sm:$0xf]
  %v2029 = vld [vmem:[%s1 + $0xfc0] sm:$0xff]
  %v2030 = vld [vmem:[%s1 + $0xfc8] sm:$0xf]
  %v2031 = vld [vmem:[%s1 + $0xfcc] sm:$0xff]
  %v2032 = vld [vmem:[%s1 + $0xfd4] sm:$0xf]
  %v2033 = vld [vmem:[%s1 + $0xfd8] sm:$0xff]
  %v2034 = vld [vmem:[%s1 + $0xfe0] sm:$0xf]
  %v2035 = vld [vmem:[%s1 + $0xfe4] sm:$0xff]
  %v2036 = vld [vmem:[%s1 + $0xfec] sm:$0xf]
  %v2037 = vld [vmem:[%s1 + $0xff0] sm:$0xff]
  %v2038 = vld [vmem:[%s1 + $0xff8] sm:$0xf]
  %v2039 = vld [vmem:[%s1 + $0xffc] sm:$0xff]
  %v2040 = vld [vmem:[%s1 + $0x1004] sm:$0xf]
  %v2041 = vld [vmem:[%s1 + $0x1008] sm:$0xff]
  %v2042 = vld [vmem:[%s1 + $0x1010] sm:$0xf]
  %v2043 = vld [vmem:[%s1 + $0x1014] sm:$0xff]
  %v2044 = vld [vmem:[%s1 + $0x101c] sm:$0xf]
  %v2045 = vld [vmem:[%s1 + $0x1020] sm:$0xff]
  %v2046 = vld [vmem:[%s1 + $0x1028] sm:$0xf]
  %v2047 = vld [vmem:[%s1 + $0x102c] sm:$0xff]
  %v2048 = vld [vmem:[%s1 + $0x1034] sm:$0xf]
  %v2049 = vld [vmem:[%s1 + $0x1038] sm:$0xff]
  %v2050 = vld [vmem:[%s1 + $0x1040] sm:$0xf]
  %v2051 = vld [vmem:[%s1 + $0x1044] sm:$0xff]
  %v2052 = vld [vmem:[%s1 + $0x104c] sm:$0xf]
  %v2053 = vld [vmem:[%s1 + $0x1050] sm:$0xff]
  %v2054 = vld [vmem:[%s1 + $0x1058] sm:$0xf]
  %v2055 = vld [vmem:[%s1 + $0x105c] sm:$0xff]
  %v2056 = vld [vmem:[%s1 + $0x1064] sm:$0xf]
  %v2057 = vld [vmem:[%s1 + $0x1068] sm:$0xff]
  %v2058 = vld [vmem:[%s1 + $0x1070] sm:$0xf]
  %v2059 = vld [vmem:[%s1 + $0x1074] sm:$0xff]
  %v2060 = vld [vmem:[%s1 + $0x107c] sm:$0xf]
  %v2061 = vld [vmem:[%s1 + $0x1080] sm:$0xff]
  %v2062 = vld [vmem:[%s1 + $0x1088] sm:$0xf]
  %v2063 = vld [vmem:[%s1 + $0x108c] sm:$0xff]
  %v2064 = vld [vmem:[%s1 + $0x1094] sm:$0xf]
  %v2065 = vld [vmem:[%s1 + $0x1098] sm:$0xff]
  %v2066 = vld [vmem:[%s1 + $0x10a0] sm:$0xf]
  %v2067 = vld [vmem:[%s1 + $0x10a4] sm:$0xff]
  %v2068 = vld [vmem:[%s1 + $0x10ac] sm:$0xf]
  %v2069 = vld [vmem:[%s1 + $0x10b0] sm:$0xff]
  %v2070 = vld [vmem:[%s1 + $0x10b8] sm:$0xf]
  %v2071 = vld [vmem:[%s1 + $0x10bc] sm:$0xff]
  %v2072 = vld [vmem:[%s1 + $0x10c4] sm:$0xf]
  %v2073 = vld [vmem:[%s1 + $0x10c8] sm:$0xff]
  %v2074 = vld [vmem:[%s1 + $0x10d0] sm:$0xf]
  %v2075 = vld [vmem:[%s1 + $0x10d4] sm:$0xff]
  %v2076 = vld [vmem:[%s1 + $0x10dc] sm:$0xf]
  %v2077 = vld [vmem:[%s1 + $0x10e0] sm:$0xff]
  %v2078 = vld [vmem:[%s1 + $0x10e8] sm:$0xf]
  %v2079 = vld [vmem:[%s1 + $0x10ec] sm:$0xff]
  %v2080 = vld [vmem:[%s1 + $0x10f4] sm:$0xf]
  %v2081 = vld [vmem:[%s1 + $0x10f8] sm:$0xff]
  %v2082 = vld [vmem:[%s1 + $0x1100] sm:$0xf]
  %v2083 = vld [vmem:[%s1 + $0x1104] sm:$0xff]
  %v2084 = vld [vmem:[%s1 + $0x110c] sm:$0xf]
  %v2085 = vld [vmem:[%s1 + $0x1110] sm:$0xff]
  %v2086 = vld [vmem:[%s1 + $0x1118] sm:$0xf]
  %v2087 = vld [vmem:[%s1 + $0x111c] sm:$0xff]
  %v2088 = vld [vmem:[%s1 + $0x1124] sm:$0xf]
  %v2089 = vld [vmem:[%s1 + $0x1128] sm:$0xff]
  %v2090 = vld [vmem:[%s1 + $0x1130] sm:$0xf]
  %v2091 = vld [vmem:[%s1 + $0x1134] sm:$0xff]
  %v2092 = vld [vmem:[%s1 + $0x113c] sm:$0xf]
  %v2093 = vld [vmem:[%s1 + $0x1140] sm:$0xff]
  %v2094 = vld [vmem:[%s1 + $0x1148] sm:$0xf]
  %v2095 = vld [vmem:[%s1 + $0x114c] sm:$0xff]
  %v2096 = vld [vmem:[%s1 + $0x1154] sm:$0xf]
  %v2097 = vld [vmem:[%s1 + $0x1158] sm:$0xff]
  %v2098 = vld [vmem:[%s1 + $0x1160] sm:$0xf]
  %v2099 = vld [vmem:[%s1 + $0x1164] sm:$0xff]
  %v2100 = vld [vmem:[%s1 + $0x116c] sm:$0xf]
  %v2101 = vld [vmem:[%s1 + $0x1170] sm:$0xff]
  %v2102 = vld [vmem:[%s1 + $0x1178] sm:$0xf]
  %v2103 = vld [vmem:[%s1 + $0x117c] sm:$0xff]
  %v2104 = vld [vmem:[%s1 + $0x1184] sm:$0xf]
  %v2105 = vld [vmem:[%s1 + $0x1188] sm:$0xff]
  %v2106 = vld [vmem:[%s1 + $0x1190] sm:$0xf]
  %v2107 = vld [vmem:[%s1 + $0x1194] sm:$0xff]
  %v2108 = vld [vmem:[%s1 + $0x119c] sm:$0xf]
  %v2109 = vld [vmem:[%s1 + $0x11a0] sm:$0xff]
  %v2110 = vld [vmem:[%s1 + $0x11a8] sm:$0xf]
  %v2111 = vld [vmem:[%s1 + $0x11ac] sm:$0xff]
  %v2112 = vld [vmem:[%s1 + $0x11b4] sm:$0xf]
  %v2113 = vld [vmem:[%s1 + $0x11b8] sm:$0xff]
  %v2114 = vld [vmem:[%s1 + $0x11c0] sm:$0xf]
  %v2115 = vld [vmem:[%s1 + $0x11c4] sm:$0xff]
  %v2116 = vld [vmem:[%s1 + $0x11cc] sm:$0xf]
  %v2117 = vld [vmem:[%s1 + $0x11d0] sm:$0xff]
  %v2118 = vld [vmem:[%s1 + $0x11d8] sm:$0xf]
  %v2119 = vld [vmem:[%s1 + $0x11dc] sm:$0xff]
  %v2120 = vld [vmem:[%s1 + $0x11e4] sm:$0xf]
  %v2121 = vld [vmem:[%s1 + $0x11e8] sm:$0xff]
  %v2122 = vld [vmem:[%s1 + $0x11f0] sm:$0xf]
  %v2123 = vld [vmem:[%s1 + $0x11f4] sm:$0xff]
  %v2124 = vld [vmem:[%s1 + $0x11fc] sm:$0xf]
  %v2125 = vld [vmem:[%s1 + $0x1200] sm:$0xff]
  %v2126 = vld [vmem:[%s1 + $0x1208] sm:$0xf]
  %v2127 = vld [vmem:[%s1 + $0x120c] sm:$0xff]
  %v2128 = vld [vmem:[%s1 + $0x1214] sm:$0xf]
  %v2129 = vld [vmem:[%s1 + $0x1218] sm:$0xff]
  %v2130 = vld [vmem:[%s1 + $0x1220] sm:$0xf]
  %v2131 = vld [vmem:[%s1 + $0x1224] sm:$0xff]
  %v2132 = vld [vmem:[%s1 + $0x122c] sm:$0xf]
  %v2133 = vld [vmem:[%s1 + $0x1230] sm:$0xff]
  %v2134 = vld [vmem:[%s1 + $0x1238] sm:$0xf]
  %v2135 = vld [vmem:[%s1 + $0x123c] sm:$0xff]
  %v2136 = vld [vmem:[%s1 + $0x1244] sm:$0xf]
  %v2137 = vld [vmem:[%s1 + $0x1248] sm:$0xff]
  %v2138 = vld [vmem:[%s1 + $0x1250] sm:$0xf]
  %v2139 = vld [vmem:[%s1 + $0x1254] sm:$0xff]
  %v2140 = vld [vmem:[%s1 + $0x125c] sm:$0xf]
  %v2141 = vld [vmem:[%s1 + $0x1260] sm:$0xff]
  %v2142 = vld [vmem:[%s1 + $0x1268] sm:$0xf]
  %v2143 = vld [vmem:[%s1 + $0x126c] sm:$0xff]
  %v2144 = vld [vmem:[%s1 + $0x1274] sm:$0xf]
  %v2145 = vld [vmem:[%s1 + $0x1278] sm:$0xff]
  %v2146 = vld [vmem:[%s1 + $0x1280] sm:$0xf]
  %v2147 = vld [vmem:[%s1 + $0x1284] sm:$0xff]
  %v2148 = vld [vmem:[%s1 + $0x128c] sm:$0xf]
  %v2149 = vld [vmem:[%s1 + $0x1290] sm:$0xff]
  %v2150 = vld [vmem:[%s1 + $0x1298] sm:$0xf]
  %v2151 = vld [vmem:[%s1 + $0x129c] sm:$0xff]
  %v2152 = vld [vmem:[%s1 + $0x12a4] sm:$0xf]
  %v2153 = vld [vmem:[%s1 + $0x12a8] sm:$0xff]
  %v2154 = vld [vmem:[%s1 + $0x12b0] sm:$0xf]
  %v2155 = vld [vmem:[%s1 + $0x12b4] sm:$0xff]
  %v2156 = vld [vmem:[%s1 + $0x12bc] sm:$0xf]
  %v2157 = vld [vmem:[%s1 + $0x12c0] sm:$0xff]
  %v2158 = vld [vmem:[%s1 + $0x12c8] sm:$0xf]
  %v2159 = vld [vmem:[%s1 + $0x12cc] sm:$0xff]
  %v2160 = vld [vmem:[%s1 + $0x12d4] sm:$0xf]
  %v2161 = vld [vmem:[%s1 + $0x12d8] sm:$0xff]
  %v2162 = vld [vmem:[%s1 + $0x12e0] sm:$0xf]
  %v2163 = vld [vmem:[%s1 + $0x12e4] sm:$0xff]
  %v2164 = vld [vmem:[%s1 + $0x12ec] sm:$0xf]
  %v2165 = vld [vmem:[%s1 + $0x12f0] sm:$0xff]
  %v2166 = vld [vmem:[%s1 + $0x12f8] sm:$0xf]
  %v2167 = vld [vmem:[%s1 + $0x12fc] sm:$0xff]
  %v2168 = vld [vmem:[%s1 + $0x1304] sm:$0xf]
  %v2169 = vld [vmem:[%s1 + $0x1308] sm:$0xff]
  %v2170 = vld [vmem:[%s1 + $0x1310] sm:$0xf]
  %v2171 = vld [vmem:[%s1 + $0x1314] sm:$0xff]
  %v2172 = vld [vmem:[%s1 + $0x131c] sm:$0xf]
  %v2173 = vld [vmem:[%s2] sm:$0x7]
  %v2175 = vlaneseq
  %v2176 = vshrl.u32 %v2175, 7
  %v2177 = vsub.s32 0, %v2176
  %v2178 = vrot.slane %v2173, %v2177
  %v2179 = vlaneseq
  %v2180 = vshrl.u32 %v2179, 7
  %v2181 = vsub.s32 1, %v2180
  %v2182 = vrot.slane %v2173, %v2181
  %v2183 = vlaneseq
  %v2184 = vshrl.u32 %v2183, 7
  %v2185 = vsub.s32 2, %v2184
  %v2186 = vrot.slane %v2173, %v2185
  %v3006 = vunpack.c.l.b16 %v1357
  %v3007 = vunpack.c.h.b16 %v1357
  %v3008 = vunpack.c.l.b16 %v1358
  %v3009 = vunpack.c.l.b16 %v1359
  %v3010 = vunpack.c.h.b16 %v1359
  %v3011 = vunpack.c.l.b16 %v1360
  %v3012 = vunpack.c.l.b16 %v1361
  %v3013 = vunpack.c.h.b16 %v1361
  %v3014 = vunpack.c.l.b16 %v1362
  %v3015 = vunpack.c.l.b16 %v1363
  %v3016 = vunpack.c.h.b16 %v1363
  %v3017 = vunpack.c.l.b16 %v1364
  %v3018 = vunpack.c.l.b16 %v1365
  %v3019 = vunpack.c.h.b16 %v1365
  %v3020 = vunpack.c.l.b16 %v1366
  %v3021 = vunpack.c.l.b16 %v1367
  %v3022 = vunpack.c.h.b16 %v1367
  %v3023 = vunpack.c.l.b16 %v1368
  %v3024 = vunpack.c.l.b16 %v1369
  %v3025 = vunpack.c.h.b16 %v1369
  %v3026 = vunpack.c.l.b16 %v1370
  %v3027 = vunpack.c.l.b16 %v1371
  %v3028 = vunpack.c.h.b16 %v1371
  %v3029 = vunpack.c.l.b16 %v1372
  %v3030 = vunpack.c.l.b16 %v1373
  %v3031 = vunpack.c.h.b16 %v1373
  %v3032 = vunpack.c.l.b16 %v1374
  %v3033 = vunpack.c.l.b16 %v1375
  %v3034 = vunpack.c.h.b16 %v1375
  %v3035 = vunpack.c.l.b16 %v1376
  %v3036 = vunpack.c.l.b16 %v1377
  %v3037 = vunpack.c.h.b16 %v1377
  %v3038 = vunpack.c.l.b16 %v1378
  %v3039 = vunpack.c.l.b16 %v1379
  %v3040 = vunpack.c.h.b16 %v1379
  %v3041 = vunpack.c.l.b16 %v1380
  %v3042 = vunpack.c.l.b16 %v1381
  %v3043 = vunpack.c.h.b16 %v1381
  %v3044 = vunpack.c.l.b16 %v1382
  %v3045 = vunpack.c.l.b16 %v1383
  %v3046 = vunpack.c.h.b16 %v1383
  %v3047 = vunpack.c.l.b16 %v1384
  %v3048 = vunpack.c.l.b16 %v1385
  %v3049 = vunpack.c.h.b16 %v1385
  %v3050 = vunpack.c.l.b16 %v1386
  %v3051 = vunpack.c.l.b16 %v1387
  %v3052 = vunpack.c.h.b16 %v1387
  %v3053 = vunpack.c.l.b16 %v1388
  %v3054 = vunpack.c.l.b16 %v1389
  %v3055 = vunpack.c.h.b16 %v1389
  %v3056 = vunpack.c.l.b16 %v1390
  %v3057 = vunpack.c.l.b16 %v1391
  %v3058 = vunpack.c.h.b16 %v1391
  %v3059 = vunpack.c.l.b16 %v1392
  %v3060 = vunpack.c.l.b16 %v1393
  %v3061 = vunpack.c.h.b16 %v1393
  %v3062 = vunpack.c.l.b16 %v1394
  %v3063 = vunpack.c.l.b16 %v1395
  %v3064 = vunpack.c.h.b16 %v1395
  %v3065 = vunpack.c.l.b16 %v1396
  %v3066 = vunpack.c.l.b16 %v1397
  %v3067 = vunpack.c.h.b16 %v1397
  %v3068 = vunpack.c.l.b16 %v1398
  %v3069 = vunpack.c.l.b16 %v1399
  %v3070 = vunpack.c.h.b16 %v1399
  %v3071 = vunpack.c.l.b16 %v1400
  %v3072 = vunpack.c.l.b16 %v1401
  %v3073 = vunpack.c.h.b16 %v1401
  %v3074 = vunpack.c.l.b16 %v1402
  %v3075 = vunpack.c.l.b16 %v1403
  %v3076 = vunpack.c.h.b16 %v1403
  %v3077 = vunpack.c.l.b16 %v1404
  %v3078 = vunpack.c.l.b16 %v1405
  %v3079 = vunpack.c.h.b16 %v1405
  %v3080 = vunpack.c.l.b16 %v1406
  %v3081 = vunpack.c.l.b16 %v1407
  %v3082 = vunpack.c.h.b16 %v1407
  %v3083 = vunpack.c.l.b16 %v1408
  %v3084 = vunpack.c.l.b16 %v1409
  %v3085 = vunpack.c.h.b16 %v1409
  %v3086 = vunpack.c.l.b16 %v1410
  %v3087 = vunpack.c.l.b16 %v1411
  %v3088 = vunpack.c.h.b16 %v1411
  %v3089 = vunpack.c.l.b16 %v1412
  %v3090 = vunpack.c.l.b16 %v1413
  %v3091 = vunpack.c.h.b16 %v1413
  %v3092 = vunpack.c.l.b16 %v1414
  %v3093 = vunpack.c.l.b16 %v1415
  %v3094 = vunpack.c.h.b16 %v1415
  %v3095 = vunpack.c.l.b16 %v1416
  %v3096 = vunpack.c.l.b16 %v1417
  %v3097 = vunpack.c.h.b16 %v1417
  %v3098 = vunpack.c.l.b16 %v1418
  %v3099 = vunpack.c.l.b16 %v1419
  %v3100 = vunpack.c.h.b16 %v1419
  %v3101 = vunpack.c.l.b16 %v1420
  %v3102 = vunpack.c.l.b16 %v1421
  %v3103 = vunpack.c.h.b16 %v1421
  %v3104 = vunpack.c.l.b16 %v1422
  %v3105 = vunpack.c.l.b16 %v1423
  %v3106 = vunpack.c.h.b16 %v1423
  %v3107 = vunpack.c.l.b16 %v1424
  %v3108 = vunpack.c.l.b16 %v1425
  %v3109 = vunpack.c.h.b16 %v1425
  %v3110 = vunpack.c.l.b16 %v1426
  %v3111 = vunpack.c.l.b16 %v1427
  %v3112 = vunpack.c.h.b16 %v1427
  %v3113 = vunpack.c.l.b16 %v1428
  %v3114 = vunpack.c.l.b16 %v1429
  %v3115 = vunpack.c.h.b16 %v1429
  %v3116 = vunpack.c.l.b16 %v1430
  %v3117 = vunpack.c.l.b16 %v1431
  %v3118 = vunpack.c.h.b16 %v1431
  %v3119 = vunpack.c.l.b16 %v1432
  %v3120 = vunpack.c.l.b16 %v1433
  %v3121 = vunpack.c.h.b16 %v1433
  %v3122 = vunpack.c.l.b16 %v1434
  %v3123 = vunpack.c.l.b16 %v1435
  %v3124 = vunpack.c.h.b16 %v1435
  %v3125 = vunpack.c.l.b16 %v1436
  %v3126 = vunpack.c.l.b16 %v1437
  %v3127 = vunpack.c.h.b16 %v1437
  %v3128 = vunpack.c.l.b16 %v1438
  %v3129 = vunpack.c.l.b16 %v1439
  %v3130 = vunpack.c.h.b16 %v1439
  %v3131 = vunpack.c.l.b16 %v1440
  %v3132 = vunpack.c.l.b16 %v1441
  %v3133 = vunpack.c.h.b16 %v1441
  %v3134 = vunpack.c.l.b16 %v1442
  %v3135 = vunpack.c.l.b16 %v1443
  %v3136 = vunpack.c.h.b16 %v1443
  %v3137 = vunpack.c.l.b16 %v1444
  %v3138 = vunpack.c.l.b16 %v1445
  %v3139 = vunpack.c.h.b16 %v1445
  %v3140 = vunpack.c.l.b16 %v1446
  %v3141 = vunpack.c.l.b16 %v1447
  %v3142 = vunpack.c.h.b16 %v1447
  %v3143 = vunpack.c.l.b16 %v1448
  %v3144 = vunpack.c.l.b16 %v1449
  %v3145 = vunpack.c.h.b16 %v1449
  %v3146 = vunpack.c.l.b16 %v1450
  %v3147 = vunpack.c.l.b16 %v1451
  %v3148 = vunpack.c.h.b16 %v1451
  %v3149 = vunpack.c.l.b16 %v1452
  %v3150 = vunpack.c.l.b16 %v1453
  %v3151 = vunpack.c.h.b16 %v1453
  %v3152 = vunpack.c.l.b16 %v1454
  %v3153 = vunpack.c.l.b16 %v1455
  %v3154 = vunpack.c.h.b16 %v1455
  %v3155 = vunpack.c.l.b16 %v1456
  %v3156 = vunpack.c.l.b16 %v1457
  %v3157 = vunpack.c.h.b16 %v1457
  %v3158 = vunpack.c.l.b16 %v1458
  %v3159 = vunpack.c.l.b16 %v1459
  %v3160 = vunpack.c.h.b16 %v1459
  %v3161 = vunpack.c.l.b16 %v1460
  %v3162 = vunpack.c.l.b16 %v1461
  %v3163 = vunpack.c.h.b16 %v1461
  %v3164 = vunpack.c.l.b16 %v1462
  %v3165 = vunpack.c.l.b16 %v1463
  %v3166 = vunpack.c.h.b16 %v1463
  %v3167 = vunpack.c.l.b16 %v1464
  %v3168 = vunpack.c.l.b16 %v1465
  %v3169 = vunpack.c.h.b16 %v1465
  %v3170 = vunpack.c.l.b16 %v1466
  %v3171 = vunpack.c.l.b16 %v1467
  %v3172 = vunpack.c.h.b16 %v1467
  %v3173 = vunpack.c.l.b16 %v1468
  %v3174 = vunpack.c.l.b16 %v1469
  %v3175 = vunpack.c.h.b16 %v1469
  %v3176 = vunpack.c.l.b16 %v1470
  %v3177 = vunpack.c.l.b16 %v1471
  %v3178 = vunpack.c.h.b16 %v1471
  %v3179 = vunpack.c.l.b16 %v1472
  %v3180 = vunpack.c.l.b16 %v1473
  %v3181 = vunpack.c.h.b16 %v1473
  %v3182 = vunpack.c.l.b16 %v1474
  %v3183 = vunpack.c.l.b16 %v1475
  %v3184 = vunpack.c.h.b16 %v1475
  %v3185 = vunpack.c.l.b16 %v1476
  %v3186 = vunpack.c.l.b16 %v1477
  %v3187 = vunpack.c.h.b16 %v1477
  %v3188 = vunpack.c.l.b16 %v1478
  %v3189 = vunpack.c.l.b16 %v1479
  %v3190 = vunpack.c.h.b16 %v1479
  %v3191 = vunpack.c.l.b16 %v1480
  %v3192 = vunpack.c.l.b16 %v1481
  %v3193 = vunpack.c.h.b16 %v1481
  %v3194 = vunpack.c.l.b16 %v1482
  %v3195 = vunpack.c.l.b16 %v1483
  %v3196 = vunpack.c.h.b16 %v1483
  %v3197 = vunpack.c.l.b16 %v1484
  %v3198 = vunpack.c.l.b16 %v1485
  %v3199 = vunpack.c.h.b16 %v1485
  %v3200 = vunpack.c.l.b16 %v1486
  %v3201 = vunpack.c.l.b16 %v1487
  %v3202 = vunpack.c.h.b16 %v1487
  %v3203 = vunpack.c.l.b16 %v1488
  %v3204 = vunpack.c.l.b16 %v1489
  %v3205 = vunpack.c.h.b16 %v1489
  %v3206 = vunpack.c.l.b16 %v1490
  %v3207 = vunpack.c.l.b16 %v1491
  %v3208 = vunpack.c.h.b16 %v1491
  %v3209 = vunpack.c.l.b16 %v1492
  %v3210 = vunpack.c.l.b16 %v1493
  %v3211 = vunpack.c.h.b16 %v1493
  %v3212 = vunpack.c.l.b16 %v1494
  %v3213 = vunpack.c.l.b16 %v1495
  %v3214 = vunpack.c.h.b16 %v1495
  %v3215 = vunpack.c.l.b16 %v1496
  %v3216 = vunpack.c.l.b16 %v1497
  %v3217 = vunpack.c.h.b16 %v1497
  %v3218 = vunpack.c.l.b16 %v1498
  %v3219 = vunpack.c.l.b16 %v1499
  %v3220 = vunpack.c.h.b16 %v1499
  %v3221 = vunpack.c.l.b16 %v1500
  %v3222 = vunpack.c.l.b16 %v1501
  %v3223 = vunpack.c.h.b16 %v1501
  %v3224 = vunpack.c.l.b16 %v1502
  %v3225 = vunpack.c.l.b16 %v1503
  %v3226 = vunpack.c.h.b16 %v1503
  %v3227 = vunpack.c.l.b16 %v1504
  %v3228 = vunpack.c.l.b16 %v1505
  %v3229 = vunpack.c.h.b16 %v1505
  %v3230 = vunpack.c.l.b16 %v1506
  %v3231 = vunpack.c.l.b16 %v1507
  %v3232 = vunpack.c.h.b16 %v1507
  %v3233 = vunpack.c.l.b16 %v1508
  %v3234 = vunpack.c.l.b16 %v1509
  %v3235 = vunpack.c.h.b16 %v1509
  %v3236 = vunpack.c.l.b16 %v1510
  %v3237 = vunpack.c.l.b16 %v1511
  %v3238 = vunpack.c.h.b16 %v1511
  %v3239 = vunpack.c.l.b16 %v1512
  %v3240 = vunpack.c.l.b16 %v1513
  %v3241 = vunpack.c.h.b16 %v1513
  %v3242 = vunpack.c.l.b16 %v1514
  %v3243 = vunpack.c.l.b16 %v1515
  %v3244 = vunpack.c.h.b16 %v1515
  %v3245 = vunpack.c.l.b16 %v1516
  %v3246 = vunpack.c.l.b16 %v1517
  %v3247 = vunpack.c.h.b16 %v1517
  %v3248 = vunpack.c.l.b16 %v1518
  %v3249 = vunpack.c.l.b16 %v1519
  %v3250 = vunpack.c.h.b16 %v1519
  %v3251 = vunpack.c.l.b16 %v1520
  %v3252 = vunpack.c.l.b16 %v1521
  %v3253 = vunpack.c.h.b16 %v1521
  %v3254 = vunpack.c.l.b16 %v1522
  %v3255 = vunpack.c.l.b16 %v1523
  %v3256 = vunpack.c.h.b16 %v1523
  %v3257 = vunpack.c.l.b16 %v1524
  %v3258 = vunpack.c.l.b16 %v1525
  %v3259 = vunpack.c.h.b16 %v1525
  %v3260 = vunpack.c.l.b16 %v1526
  %v3261 = vunpack.c.l.b16 %v1527
  %v3262 = vunpack.c.h.b16 %v1527
  %v3263 = vunpack.c.l.b16 %v1528
  %v3264 = vunpack.c.l.b16 %v1529
  %v3265 = vunpack.c.h.b16 %v1529
  %v3266 = vunpack.c.l.b16 %v1530
  %v3267 = vunpack.c.l.b16 %v1531
  %v3268 = vunpack.c.h.b16 %v1531
  %v3269 = vunpack.c.l.b16 %v1532
  %v3270 = vunpack.c.l.b16 %v1533
  %v3271 = vunpack.c.h.b16 %v1533
  %v3272 = vunpack.c.l.b16 %v1534
  %v3273 = vunpack.c.l.b16 %v1535
  %v3274 = vunpack.c.h.b16 %v1535
  %v3275 = vunpack.c.l.b16 %v1536
  %v3276 = vunpack.c.l.b16 %v1537
  %v3277 = vunpack.c.h.b16 %v1537
  %v3278 = vunpack.c.l.b16 %v1538
  %v3279 = vunpack.c.l.b16 %v1539
  %v3280 = vunpack.c.h.b16 %v1539
  %v3281 = vunpack.c.l.b16 %v1540
  %v3282 = vunpack.c.l.b16 %v1541
  %v3283 = vunpack.c.h.b16 %v1541
  %v3284 = vunpack.c.l.b16 %v1542
  %v3285 = vunpack.c.l.b16 %v1543
  %v3286 = vunpack.c.h.b16 %v1543
  %v3287 = vunpack.c.l.b16 %v1544
  %v3288 = vunpack.c.l.b16 %v1545
  %v3289 = vunpack.c.h.b16 %v1545
  %v3290 = vunpack.c.l.b16 %v1546
  %v3291 = vunpack.c.l.b16 %v1547
  %v3292 = vunpack.c.h.b16 %v1547
  %v3293 = vunpack.c.l.b16 %v1548
  %v3294 = vunpack.c.l.b16 %v1549
  %v3295 = vunpack.c.h.b16 %v1549
  %v3296 = vunpack.c.l.b16 %v1550
  %v3297 = vunpack.c.l.b16 %v1551
  %v3298 = vunpack.c.h.b16 %v1551
  %v3299 = vunpack.c.l.b16 %v1552
  %v3300 = vunpack.c.l.b16 %v1553
  %v3301 = vunpack.c.h.b16 %v1553
  %v3302 = vunpack.c.l.b16 %v1554
  %v3303 = vunpack.c.l.b16 %v1555
  %v3304 = vunpack.c.h.b16 %v1555
  %v3305 = vunpack.c.l.b16 %v1556
  %v3306 = vunpack.c.l.b16 %v1557
  %v3307 = vunpack.c.h.b16 %v1557
  %v3308 = vunpack.c.l.b16 %v1558
  %v3309 = vunpack.c.l.b16 %v1559
  %v3310 = vunpack.c.h.b16 %v1559
  %v3311 = vunpack.c.l.b16 %v1560
  %v3312 = vunpack.c.l.b16 %v1561
  %v3313 = vunpack.c.h.b16 %v1561
  %v3314 = vunpack.c.l.b16 %v1562
  %v3315 = vunpack.c.l.b16 %v1563
  %v3316 = vunpack.c.h.b16 %v1563
  %v3317 = vunpack.c.l.b16 %v1564
  %v3318 = vunpack.c.l.b16 %v1565
  %v3319 = vunpack.c.h.b16 %v1565
  %v3320 = vunpack.c.l.b16 %v1566
  %v3321 = vunpack.c.l.b16 %v1567
  %v3322 = vunpack.c.h.b16 %v1567
  %v3323 = vunpack.c.l.b16 %v1568
  %v3324 = vunpack.c.l.b16 %v1569
  %v3325 = vunpack.c.h.b16 %v1569
  %v3326 = vunpack.c.l.b16 %v1570
  %v3327 = vunpack.c.l.b16 %v1571
  %v3328 = vunpack.c.h.b16 %v1571
  %v3329 = vunpack.c.l.b16 %v1572
  %v3330 = vunpack.c.l.b16 %v1573
  %v3331 = vunpack.c.h.b16 %v1573
  %v3332 = vunpack.c.l.b16 %v1574
  %v3333 = vunpack.c.l.b16 %v1575
  %v3334 = vunpack.c.h.b16 %v1575
  %v3335 = vunpack.c.l.b16 %v1576
  %v3336 = vunpack.c.l.b16 %v1577
  %v3337 = vunpack.c.h.b16 %v1577
  %v3338 = vunpack.c.l.b16 %v1578
  %v3339 = vunpack.c.l.b16 %v1579
  %v3340 = vunpack.c.h.b16 %v1579
  %v3341 = vunpack.c.l.b16 %v1580
  %v3342 = vunpack.c.l.b16 %v1581
  %v3343 = vunpack.c.h.b16 %v1581
  %v3344 = vunpack.c.l.b16 %v1582
  %v3345 = vunpack.c.l.b16 %v1583
  %v3346 = vunpack.c.h.b16 %v1583
  %v3347 = vunpack.c.l.b16 %v1584
  %v3348 = vunpack.c.l.b16 %v1585
  %v3349 = vunpack.c.h.b16 %v1585
  %v3350 = vunpack.c.l.b16 %v1586
  %v3351 = vunpack.c.l.b16 %v1587
  %v3352 = vunpack.c.h.b16 %v1587
  %v3353 = vunpack.c.l.b16 %v1588
  %v3354 = vunpack.c.l.b16 %v1589
  %v3355 = vunpack.c.h.b16 %v1589
  %v3356 = vunpack.c.l.b16 %v1590
  %v3357 = vunpack.c.l.b16 %v1591
  %v3358 = vunpack.c.h.b16 %v1591
  %v3359 = vunpack.c.l.b16 %v1592
  %v3360 = vunpack.c.l.b16 %v1593
  %v3361 = vunpack.c.h.b16 %v1593
  %v3362 = vunpack.c.l.b16 %v1594
  %v3363 = vunpack.c.l.b16 %v1595
  %v3364 = vunpack.c.h.b16 %v1595
  %v3365 = vunpack.c.l.b16 %v1596
  %v3366 = vunpack.c.l.b16 %v1597
  %v3367 = vunpack.c.h.b16 %v1597
  %v3368 = vunpack.c.l.b16 %v1598
  %v3369 = vunpack.c.l.b16 %v1599
  %v3370 = vunpack.c.h.b16 %v1599
  %v3371 = vunpack.c.l.b16 %v1600
  %v3372 = vunpack.c.l.b16 %v1601
  %v3373 = vunpack.c.h.b16 %v1601
  %v3374 = vunpack.c.l.b16 %v1602
  %v3375 = vunpack.c.l.b16 %v1603
  %v3376 = vunpack.c.h.b16 %v1603
  %v3377 = vunpack.c.l.b16 %v1604
  %v3378 = vunpack.c.l.b16 %v1605
  %v3379 = vunpack.c.h.b16 %v1605
  %v3380 = vunpack.c.l.b16 %v1606
  %v3381 = vunpack.c.l.b16 %v1607
  %v3382 = vunpack.c.h.b16 %v1607
  %v3383 = vunpack.c.l.b16 %v1608
  %v3384 = vunpack.c.l.b16 %v1609
  %v3385 = vunpack.c.h.b16 %v1609
  %v3386 = vunpack.c.l.b16 %v1610
  %v3387 = vunpack.c.l.b16 %v1611
  %v3388 = vunpack.c.h.b16 %v1611
  %v3389 = vunpack.c.l.b16 %v1612
  %v3390 = vunpack.c.l.b16 %v1613
  %v3391 = vunpack.c.h.b16 %v1613
  %v3392 = vunpack.c.l.b16 %v1614
  %v3393 = vunpack.c.l.b16 %v1615
  %v3394 = vunpack.c.h.b16 %v1615
  %v3395 = vunpack.c.l.b16 %v1616
  %v3396 = vunpack.c.l.b16 %v1617
  %v3397 = vunpack.c.h.b16 %v1617
  %v3398 = vunpack.c.l.b16 %v1618
  %v3399 = vunpack.c.l.b16 %v1619
  %v3400 = vunpack.c.h.b16 %v1619
  %v3401 = vunpack.c.l.b16 %v1620
  %v3402 = vunpack.c.l.b16 %v1621
  %v3403 = vunpack.c.h.b16 %v1621
  %v3404 = vunpack.c.l.b16 %v1622
  %v3405 = vunpack.c.l.b16 %v1623
  %v3406 = vunpack.c.h.b16 %v1623
  %v3407 = vunpack.c.l.b16 %v1624
  %v3408 = vunpack.c.l.b16 %v1625
  %v3409 = vunpack.c.h.b16 %v1625
  %v3410 = vunpack.c.l.b16 %v1626
  %v3411 = vunpack.c.l.b16 %v1627
  %v3412 = vunpack.c.h.b16 %v1627
  %v3413 = vunpack.c.l.b16 %v1628
  %v3414 = vunpack.c.l.b16 %v1629
  %v3415 = vunpack.c.h.b16 %v1629
  %v3416 = vunpack.c.l.b16 %v1630
  %v3417 = vunpack.c.l.b16 %v1631
  %v3418 = vunpack.c.h.b16 %v1631
  %v3419 = vunpack.c.l.b16 %v1632
  %v3420 = vunpack.c.l.b16 %v1633
  %v3421 = vunpack.c.h.b16 %v1633
  %v3422 = vunpack.c.l.b16 %v1634
  %v3423 = vunpack.c.l.b16 %v1635
  %v3424 = vunpack.c.h.b16 %v1635
  %v3425 = vunpack.c.l.b16 %v1636
  %v3426 = vunpack.c.l.b16 %v1637
  %v3427 = vunpack.c.h.b16 %v1637
  %v3428 = vunpack.c.l.b16 %v1638
  %v3429 = vunpack.c.l.b16 %v1639
  %v3430 = vunpack.c.h.b16 %v1639
  %v3431 = vunpack.c.l.b16 %v1640
  %v3432 = vunpack.c.l.b16 %v1641
  %v3433 = vunpack.c.h.b16 %v1641
  %v3434 = vunpack.c.l.b16 %v1642
  %v3435 = vunpack.c.l.b16 %v1643
  %v3436 = vunpack.c.h.b16 %v1643
  %v3437 = vunpack.c.l.b16 %v1644
  %v3438 = vunpack.c.l.b16 %v1645
  %v3439 = vunpack.c.h.b16 %v1645
  %v3440 = vunpack.c.l.b16 %v1646
  %v3441 = vunpack.c.l.b16 %v1647
  %v3442 = vunpack.c.h.b16 %v1647
  %v3443 = vunpack.c.l.b16 %v1648
  %v3444 = vunpack.c.l.b16 %v1649
  %v3445 = vunpack.c.h.b16 %v1649
  %v3446 = vunpack.c.l.b16 %v1650
  %v3447 = vunpack.c.l.b16 %v1651
  %v3448 = vunpack.c.h.b16 %v1651
  %v3449 = vunpack.c.l.b16 %v1652
  %v3450 = vunpack.c.l.b16 %v1653
  %v3451 = vunpack.c.h.b16 %v1653
  %v3452 = vunpack.c.l.b16 %v1654
  %v3453 = vunpack.c.l.b16 %v1655
  %v3454 = vunpack.c.h.b16 %v1655
  %v3455 = vunpack.c.l.b16 %v1656
  %v3456 = vunpack.c.l.b16 %v1657
  %v3457 = vunpack.c.h.b16 %v1657
  %v3458 = vunpack.c.l.b16 %v1658
  %v3459 = vunpack.c.l.b16 %v1659
  %v3460 = vunpack.c.h.b16 %v1659
  %v3461 = vunpack.c.l.b16 %v1660
  %v3462 = vunpack.c.l.b16 %v1661
  %v3463 = vunpack.c.h.b16 %v1661
  %v3464 = vunpack.c.l.b16 %v1662
  %v3465 = vunpack.c.l.b16 %v1663
  %v3466 = vunpack.c.h.b16 %v1663
  %v3467 = vunpack.c.l.b16 %v1664
  %v3468 = vunpack.c.l.b16 %v1665
  %v3469 = vunpack.c.h.b16 %v1665
  %v3470 = vunpack.c.l.b16 %v1666
  %v3471 = vunpack.c.l.b16 %v1667
  %v3472 = vunpack.c.h.b16 %v1667
  %v3473 = vunpack.c.l.b16 %v1668
  %v3474 = vunpack.c.l.b16 %v1669
  %v3475 = vunpack.c.h.b16 %v1669
  %v3476 = vunpack.c.l.b16 %v1670
  %v3477 = vunpack.c.l.b16 %v1671
  %v3478 = vunpack.c.h.b16 %v1671
  %v3479 = vunpack.c.l.b16 %v1672
  %v3480 = vunpack.c.l.b16 %v1673
  %v3481 = vunpack.c.h.b16 %v1673
  %v3482 = vunpack.c.l.b16 %v1674
  %v3483 = vunpack.c.l.b16 %v1675
  %v3484 = vunpack.c.h.b16 %v1675
  %v3485 = vunpack.c.l.b16 %v1676
  %v3486 = vunpack.c.l.b16 %v1677
  %v3487 = vunpack.c.h.b16 %v1677
  %v3488 = vunpack.c.l.b16 %v1678
  %v3489 = vunpack.c.l.b16 %v1679
  %v3490 = vunpack.c.h.b16 %v1679
  %v3491 = vunpack.c.l.b16 %v1680
  %v3492 = vunpack.c.l.b16 %v1681
  %v3493 = vunpack.c.h.b16 %v1681
  %v3494 = vunpack.c.l.b16 %v1682
  %v3495 = vunpack.c.l.b16 %v1683
  %v3496 = vunpack.c.h.b16 %v1683
  %v3497 = vunpack.c.l.b16 %v1684
  %v3498 = vunpack.c.l.b16 %v1685
  %v3499 = vunpack.c.h.b16 %v1685
  %v3500 = vunpack.c.l.b16 %v1686
  %v3501 = vunpack.c.l.b16 %v1687
  %v3502 = vunpack.c.h.b16 %v1687
  %v3503 = vunpack.c.l.b16 %v1688
  %v3504 = vunpack.c.l.b16 %v1689
  %v3505 = vunpack.c.h.b16 %v1689
  %v3506 = vunpack.c.l.b16 %v1690
  %v3507 = vunpack.c.l.b16 %v1691
  %v3508 = vunpack.c.h.b16 %v1691
  %v3509 = vunpack.c.l.b16 %v1692
  %v3510 = vunpack.c.l.b16 %v1693
  %v3511 = vunpack.c.h.b16 %v1693
  %v3512 = vunpack.c.l.b16 %v1694
  %v3513 = vunpack.c.l.b16 %v1695
  %v3514 = vunpack.c.h.b16 %v1695
  %v3515 = vunpack.c.l.b16 %v1696
  %v3516 = vunpack.c.l.b16 %v1697
  %v3517 = vunpack.c.h.b16 %v1697
  %v3518 = vunpack.c.l.b16 %v1698
  %v3519 = vunpack.c.l.b16 %v1699
  %v3520 = vunpack.c.h.b16 %v1699
  %v3521 = vunpack.c.l.b16 %v1700
  %v3522 = vunpack.c.l.b16 %v1701
  %v3523 = vunpack.c.h.b16 %v1701
  %v3524 = vunpack.c.l.b16 %v1702
  %v3525 = vunpack.c.l.b16 %v1703
  %v3526 = vunpack.c.h.b16 %v1703
  %v3527 = vunpack.c.l.b16 %v1704
  %v3528 = vunpack.c.l.b16 %v1705
  %v3529 = vunpack.c.h.b16 %v1705
  %v3530 = vunpack.c.l.b16 %v1706
  %v3531 = vunpack.c.l.b16 %v1707
  %v3532 = vunpack.c.h.b16 %v1707
  %v3533 = vunpack.c.l.b16 %v1708
  %v3534 = vunpack.c.l.b16 %v1709
  %v3535 = vunpack.c.h.b16 %v1709
  %v3536 = vunpack.c.l.b16 %v1710
  %v3537 = vunpack.c.l.b16 %v1711
  %v3538 = vunpack.c.h.b16 %v1711
  %v3539 = vunpack.c.l.b16 %v1712
  %v3540 = vunpack.c.l.b16 %v1713
  %v3541 = vunpack.c.h.b16 %v1713
  %v3542 = vunpack.c.l.b16 %v1714
  %v3543 = vunpack.c.l.b16 %v1715
  %v3544 = vunpack.c.h.b16 %v1715
  %v3545 = vunpack.c.l.b16 %v1716
  %v3546 = vunpack.c.l.b16 %v1717
  %v3547 = vunpack.c.h.b16 %v1717
  %v3548 = vunpack.c.l.b16 %v1718
  %v3549 = vunpack.c.l.b16 %v1719
  %v3550 = vunpack.c.h.b16 %v1719
  %v3551 = vunpack.c.l.b16 %v1720
  %v3552 = vunpack.c.l.b16 %v1721
  %v3553 = vunpack.c.h.b16 %v1721
  %v3554 = vunpack.c.l.b16 %v1722
  %v3555 = vunpack.c.l.b16 %v1723
  %v3556 = vunpack.c.h.b16 %v1723
  %v3557 = vunpack.c.l.b16 %v1724
  %v3558 = vunpack.c.l.b16 %v1725
  %v3559 = vunpack.c.h.b16 %v1725
  %v3560 = vunpack.c.l.b16 %v1726
  %v3561 = vunpack.c.l.b16 %v1727
  %v3562 = vunpack.c.h.b16 %v1727
  %v3563 = vunpack.c.l.b16 %v1728
  %v3564 = vunpack.c.l.b16 %v1729
  %v3565 = vunpack.c.h.b16 %v1729
  %v3566 = vunpack.c.l.b16 %v1730
  %v3567 = vunpack.c.l.b16 %v1731
  %v3568 = vunpack.c.h.b16 %v1731
  %v3569 = vunpack.c.l.b16 %v1732
  %v3570 = vunpack.c.l.b16 %v1733
  %v3571 = vunpack.c.h.b16 %v1733
  %v3572 = vunpack.c.l.b16 %v1734
  %v3573 = vunpack.c.l.b16 %v1735
  %v3574 = vunpack.c.h.b16 %v1735
  %v3575 = vunpack.c.l.b16 %v1736
  %v3576 = vunpack.c.l.b16 %v1737
  %v3577 = vunpack.c.h.b16 %v1737
  %v3578 = vunpack.c.l.b16 %v1738
  %v3579 = vunpack.c.l.b16 %v1739
  %v3580 = vunpack.c.h.b16 %v1739
  %v3581 = vunpack.c.l.b16 %v1740
  %v3582 = vunpack.c.l.b16 %v1741
  %v3583 = vunpack.c.h.b16 %v1741
  %v3584 = vunpack.c.l.b16 %v1742
  %v3585 = vunpack.c.l.b16 %v1743
  %v3586 = vunpack.c.h.b16 %v1743
  %v3587 = vunpack.c.l.b16 %v1744
  %v3588 = vunpack.c.l.b16 %v1745
  %v3589 = vunpack.c.h.b16 %v1745
  %v3590 = vunpack.c.l.b16 %v1746
  %v3591 = vunpack.c.l.b16 %v1747
  %v3592 = vunpack.c.h.b16 %v1747
  %v3593 = vunpack.c.l.b16 %v1748
  %v3594 = vunpack.c.l.b16 %v1749
  %v3595 = vunpack.c.h.b16 %v1749
  %v3596 = vunpack.c.l.b16 %v1750
  %v3597 = vunpack.c.l.b16 %v1751
  %v3598 = vunpack.c.h.b16 %v1751
  %v3599 = vunpack.c.l.b16 %v1752
  %v3600 = vunpack.c.l.b16 %v1753
  %v3601 = vunpack.c.h.b16 %v1753
  %v3602 = vunpack.c.l.b16 %v1754
  %v3603 = vunpack.c.l.b16 %v1755
  %v3604 = vunpack.c.h.b16 %v1755
  %v3605 = vunpack.c.l.b16 %v1756
  %v3606 = vunpack.c.l.b16 %v1757
  %v3607 = vunpack.c.h.b16 %v1757
  %v3608 = vunpack.c.l.b16 %v1758
  %v3609 = vunpack.c.l.b16 %v1759
  %v3610 = vunpack.c.h.b16 %v1759
  %v3611 = vunpack.c.l.b16 %v1760
  %v3612 = vunpack.c.l.b16 %v1761
  %v3613 = vunpack.c.h.b16 %v1761
  %v3614 = vunpack.c.l.b16 %v1762
  %v3615 = vunpack.c.l.b16 %v1763
  %v3616 = vunpack.c.h.b16 %v1763
  %v3617 = vunpack.c.l.b16 %v1764
  %v3618 = vunpack.c.l.b16 %v1765
  %v3619 = vunpack.c.h.b16 %v1765
  %v3620 = vunpack.c.l.b16 %v1766
  %v3621 = vunpack.c.l.b16 %v1767
  %v3622 = vunpack.c.h.b16 %v1767
  %v3623 = vunpack.c.l.b16 %v1768
  %v3624 = vunpack.c.l.b16 %v1769
  %v3625 = vunpack.c.h.b16 %v1769
  %v3626 = vunpack.c.l.b16 %v1770
  %v3627 = vunpack.c.l.b16 %v1771
  %v3628 = vunpack.c.h.b16 %v1771
  %v3629 = vunpack.c.l.b16 %v1772
  %v3630 = vunpack.c.l.b16 %v1773
  %v3631 = vunpack.c.h.b16 %v1773
  %v3632 = vunpack.c.l.b16 %v1774
  %v3633 = vunpack.c.l.b16 %v1775
  %v3634 = vunpack.c.h.b16 %v1775
  %v3635 = vunpack.c.l.b16 %v1776
  %v3636 = vunpack.c.l.b16 %v1777
  %v3637 = vunpack.c.h.b16 %v1777
  %v3638 = vunpack.c.l.b16 %v1778
  %v3639 = vunpack.c.l.b16 %v1779
  %v3640 = vunpack.c.h.b16 %v1779
  %v3641 = vunpack.c.l.b16 %v1780
  %v3642 = vunpack.c.l.b16 %v1781
  %v3643 = vunpack.c.h.b16 %v1781
  %v3644 = vunpack.c.l.b16 %v1782
  %v3645 = vunpack.c.l.b16 %v1783
  %v3646 = vunpack.c.h.b16 %v1783
  %v3647 = vunpack.c.l.b16 %v1784
  %v3648 = vunpack.c.l.b16 %v1785
  %v3649 = vunpack.c.h.b16 %v1785
  %v3650 = vunpack.c.l.b16 %v1786
  %v3651 = vunpack.c.l.b16 %v1787
  %v3652 = vunpack.c.h.b16 %v1787
  %v3653 = vunpack.c.l.b16 %v1788
  %v3654 = vunpack.c.l.b16 %v1789
  %v3655 = vunpack.c.h.b16 %v1789
  %v3656 = vunpack.c.l.b16 %v1790
  %v3657 = vunpack.c.l.b16 %v1791
  %v3658 = vunpack.c.h.b16 %v1791
  %v3659 = vunpack.c.l.b16 %v1792
  %v3660 = vunpack.c.l.b16 %v1793
  %v3661 = vunpack.c.h.b16 %v1793
  %v3662 = vunpack.c.l.b16 %v1794
  %v3663 = vunpack.c.l.b16 %v1795
  %v3664 = vunpack.c.h.b16 %v1795
  %v3665 = vunpack.c.l.b16 %v1796
  %v3666 = vunpack.c.l.b16 %v1797
  %v3667 = vunpack.c.h.b16 %v1797
  %v3668 = vunpack.c.l.b16 %v1798
  %v3669 = vunpack.c.l.b16 %v1799
  %v3670 = vunpack.c.h.b16 %v1799
  %v3671 = vunpack.c.l.b16 %v1800
  %v3672 = vunpack.c.l.b16 %v1801
  %v3673 = vunpack.c.h.b16 %v1801
  %v3674 = vunpack.c.l.b16 %v1802
  %v3675 = vunpack.c.l.b16 %v1803
  %v3676 = vunpack.c.h.b16 %v1803
  %v3677 = vunpack.c.l.b16 %v1804
  %v3678 = vunpack.c.l.b16 %v1805
  %v3679 = vunpack.c.h.b16 %v1805
  %v3680 = vunpack.c.l.b16 %v1806
  %v3681 = vunpack.c.l.b16 %v1807
  %v3682 = vunpack.c.h.b16 %v1807
  %v3683 = vunpack.c.l.b16 %v1808
  %v3684 = vunpack.c.l.b16 %v1809
  %v3685 = vunpack.c.h.b16 %v1809
  %v3686 = vunpack.c.l.b16 %v1810
  %v3687 = vunpack.c.l.b16 %v1811
  %v3688 = vunpack.c.h.b16 %v1811
  %v3689 = vunpack.c.l.b16 %v1812
  %v3690 = vunpack.c.l.b16 %v1813
  %v3691 = vunpack.c.h.b16 %v1813
  %v3692 = vunpack.c.l.b16 %v1814
  %v3693 = vunpack.c.l.b16 %v1815
  %v3694 = vunpack.c.h.b16 %v1815
  %v3695 = vunpack.c.l.b16 %v1816
  %v3696 = vunpack.c.l.b16 %v1817
  %v3697 = vunpack.c.h.b16 %v1817
  %v3698 = vunpack.c.l.b16 %v1818
  %v3699 = vunpack.c.l.b16 %v1819
  %v3700 = vunpack.c.h.b16 %v1819
  %v3701 = vunpack.c.l.b16 %v1820
  %v3702 = vunpack.c.l.b16 %v1821
  %v3703 = vunpack.c.h.b16 %v1821
  %v3704 = vunpack.c.l.b16 %v1822
  %v3705 = vunpack.c.l.b16 %v1823
  %v3706 = vunpack.c.h.b16 %v1823
  %v3707 = vunpack.c.l.b16 %v1824
  %v3708 = vunpack.c.l.b16 %v1825
  %v3709 = vunpack.c.h.b16 %v1825
  %v3710 = vunpack.c.l.b16 %v1826
  %v3711 = vunpack.c.l.b16 %v1827
  %v3712 = vunpack.c.h.b16 %v1827
  %v3713 = vunpack.c.l.b16 %v1828
  %v3714 = vunpack.c.l.b16 %v1829
  %v3715 = vunpack.c.h.b16 %v1829
  %v3716 = vunpack.c.l.b16 %v1830
  %v3717 = vunpack.c.l.b16 %v1831
  %v3718 = vunpack.c.h.b16 %v1831
  %v3719 = vunpack.c.l.b16 %v1832
  %v3720 = vunpack.c.l.b16 %v1833
  %v3721 = vunpack.c.h.b16 %v1833
  %v3722 = vunpack.c.l.b16 %v1834
  %v3723 = vunpack.c.l.b16 %v1835
  %v3724 = vunpack.c.h.b16 %v1835
  %v3725 = vunpack.c.l.b16 %v1836
  %v3726 = vunpack.c.l.b16 %v1837
  %v3727 = vunpack.c.h.b16 %v1837
  %v3728 = vunpack.c.l.b16 %v1838
  %v3729 = vunpack.c.l.b16 %v1839
  %v3730 = vunpack.c.h.b16 %v1839
  %v3731 = vunpack.c.l.b16 %v1840
  %v3732 = vunpack.c.l.b16 %v1841
  %v3733 = vunpack.c.h.b16 %v1841
  %v3734 = vunpack.c.l.b16 %v1842
  %v3735 = vunpack.c.l.b16 %v1843
  %v3736 = vunpack.c.h.b16 %v1843
  %v3737 = vunpack.c.l.b16 %v1844
  %v3738 = vunpack.c.l.b16 %v1845
  %v3739 = vunpack.c.h.b16 %v1845
  %v3740 = vunpack.c.l.b16 %v1846
  %v3741 = vunpack.c.l.b16 %v1847
  %v3742 = vunpack.c.h.b16 %v1847
  %v3743 = vunpack.c.l.b16 %v1848
  %v3744 = vunpack.c.l.b16 %v1849
  %v3745 = vunpack.c.h.b16 %v1849
  %v3746 = vunpack.c.l.b16 %v1850
  %v3747 = vunpack.c.l.b16 %v1851
  %v3748 = vunpack.c.h.b16 %v1851
  %v3749 = vunpack.c.l.b16 %v1852
  %v3750 = vunpack.c.l.b16 %v1853
  %v3751 = vunpack.c.h.b16 %v1853
  %v3752 = vunpack.c.l.b16 %v1854
  %v3753 = vunpack.c.l.b16 %v1855
  %v3754 = vunpack.c.h.b16 %v1855
  %v3755 = vunpack.c.l.b16 %v1856
  %v3756 = vunpack.c.l.b16 %v1857
  %v3757 = vunpack.c.h.b16 %v1857
  %v3758 = vunpack.c.l.b16 %v1858
  %v3759 = vunpack.c.l.b16 %v1859
  %v3760 = vunpack.c.h.b16 %v1859
  %v3761 = vunpack.c.l.b16 %v1860
  %v3762 = vunpack.c.l.b16 %v1861
  %v3763 = vunpack.c.h.b16 %v1861
  %v3764 = vunpack.c.l.b16 %v1862
  %v3765 = vunpack.c.l.b16 %v1863
  %v3766 = vunpack.c.h.b16 %v1863
  %v3767 = vunpack.c.l.b16 %v1864
  %v3768 = vunpack.c.l.b16 %v1865
  %v3769 = vunpack.c.h.b16 %v1865
  %v3770 = vunpack.c.l.b16 %v1866
  %v3771 = vunpack.c.l.b16 %v1867
  %v3772 = vunpack.c.h.b16 %v1867
  %v3773 = vunpack.c.l.b16 %v1868
  %v3774 = vunpack.c.l.b16 %v1869
  %v3775 = vunpack.c.h.b16 %v1869
  %v3776 = vunpack.c.l.b16 %v1870
  %v3777 = vunpack.c.l.b16 %v1871
  %v3778 = vunpack.c.h.b16 %v1871
  %v3779 = vunpack.c.l.b16 %v1872
  %v3780 = vunpack.c.l.b16 %v1873
  %v3781 = vunpack.c.h.b16 %v1873
  %v3782 = vunpack.c.l.b16 %v1874
  %v3783 = vunpack.c.l.b16 %v1875
  %v3784 = vunpack.c.h.b16 %v1875
  %v3785 = vunpack.c.l.b16 %v1876
  %v3786 = vunpack.c.l.b16 %v1877
  %v3787 = vunpack.c.h.b16 %v1877
  %v3788 = vunpack.c.l.b16 %v1878
  %v3789 = vunpack.c.l.b16 %v1879
  %v3790 = vunpack.c.h.b16 %v1879
  %v3791 = vunpack.c.l.b16 %v1880
  %v3792 = vunpack.c.l.b16 %v1881
  %v3793 = vunpack.c.h.b16 %v1881
  %v3794 = vunpack.c.l.b16 %v1882
  %v3795 = vunpack.c.l.b16 %v1883
  %v3796 = vunpack.c.h.b16 %v1883
  %v3797 = vunpack.c.l.b16 %v1884
  %v3798 = vunpack.c.l.b16 %v1885
  %v3799 = vunpack.c.h.b16 %v1885
  %v3800 = vunpack.c.l.b16 %v1886
  %v3801 = vunpack.c.l.b16 %v1887
  %v3802 = vunpack.c.h.b16 %v1887
  %v3803 = vunpack.c.l.b16 %v1888
  %v3804 = vunpack.c.l.b16 %v1889
  %v3805 = vunpack.c.h.b16 %v1889
  %v3806 = vunpack.c.l.b16 %v1890
  %v3807 = vunpack.c.l.b16 %v1891
  %v3808 = vunpack.c.h.b16 %v1891
  %v3809 = vunpack.c.l.b16 %v1892
  %v3810 = vunpack.c.l.b16 %v1893
  %v3811 = vunpack.c.h.b16 %v1893
  %v3812 = vunpack.c.l.b16 %v1894
  %v3813 = vunpack.c.l.b16 %v1895
  %v3814 = vunpack.c.h.b16 %v1895
  %v3815 = vunpack.c.l.b16 %v1896
  %v3816 = vunpack.c.l.b16 %v1897
  %v3817 = vunpack.c.h.b16 %v1897
  %v3818 = vunpack.c.l.b16 %v1898
  %v3819 = vunpack.c.l.b16 %v1899
  %v3820 = vunpack.c.h.b16 %v1899
  %v3821 = vunpack.c.l.b16 %v1900
  %v3822 = vunpack.c.l.b16 %v1901
  %v3823 = vunpack.c.h.b16 %v1901
  %v3824 = vunpack.c.l.b16 %v1902
  %v3825 = vunpack.c.l.b16 %v1903
  %v3826 = vunpack.c.h.b16 %v1903
  %v3827 = vunpack.c.l.b16 %v1904
  %v3828 = vunpack.c.l.b16 %v1905
  %v3829 = vunpack.c.h.b16 %v1905
  %v3830 = vunpack.c.l.b16 %v1906
  %v3831 = vunpack.c.l.b16 %v1907
  %v3832 = vunpack.c.h.b16 %v1907
  %v3833 = vunpack.c.l.b16 %v1908
  %v3834 = vunpack.c.l.b16 %v1909
  %v3835 = vunpack.c.h.b16 %v1909
  %v3836 = vunpack.c.l.b16 %v1910
  %v3837 = vunpack.c.l.b16 %v1911
  %v3838 = vunpack.c.h.b16 %v1911
  %v3839 = vunpack.c.l.b16 %v1912
  %v3840 = vunpack.c.l.b16 %v1913
  %v3841 = vunpack.c.h.b16 %v1913
  %v3842 = vunpack.c.l.b16 %v1914
  %v3843 = vunpack.c.l.b16 %v1915
  %v3844 = vunpack.c.h.b16 %v1915
  %v3845 = vunpack.c.l.b16 %v1916
  %v3846 = vunpack.c.l.b16 %v1917
  %v3847 = vunpack.c.h.b16 %v1917
  %v3848 = vunpack.c.l.b16 %v1918
  %v3849 = vunpack.c.l.b16 %v1919
  %v3850 = vunpack.c.h.b16 %v1919
  %v3851 = vunpack.c.l.b16 %v1920
  %v3852 = vunpack.c.l.b16 %v1921
  %v3853 = vunpack.c.h.b16 %v1921
  %v3854 = vunpack.c.l.b16 %v1922
  %v3855 = vunpack.c.l.b16 %v1923
  %v3856 = vunpack.c.h.b16 %v1923
  %v3857 = vunpack.c.l.b16 %v1924
  %v3858 = vunpack.c.l.b16 %v1925
  %v3859 = vunpack.c.h.b16 %v1925
  %v3860 = vunpack.c.l.b16 %v1926
  %v3861 = vunpack.c.l.b16 %v1927
  %v3862 = vunpack.c.h.b16 %v1927
  %v3863 = vunpack.c.l.b16 %v1928
  %v3864 = vunpack.c.l.b16 %v1929
  %v3865 = vunpack.c.h.b16 %v1929
  %v3866 = vunpack.c.l.b16 %v1930
  %v3867 = vunpack.c.l.b16 %v1931
  %v3868 = vunpack.c.h.b16 %v1931
  %v3869 = vunpack.c.l.b16 %v1932
  %v3870 = vunpack.c.l.b16 %v1933
  %v3871 = vunpack.c.h.b16 %v1933
  %v3872 = vunpack.c.l.b16 %v1934
  %v3873 = vunpack.c.l.b16 %v1935
  %v3874 = vunpack.c.h.b16 %v1935
  %v3875 = vunpack.c.l.b16 %v1936
  %v3876 = vunpack.c.l.b16 %v1937
  %v3877 = vunpack.c.h.b16 %v1937
  %v3878 = vunpack.c.l.b16 %v1938
  %v3879 = vunpack.c.l.b16 %v1939
  %v3880 = vunpack.c.h.b16 %v1939
  %v3881 = vunpack.c.l.b16 %v1940
  %v3882 = vunpack.c.l.b16 %v1941
  %v3883 = vunpack.c.h.b16 %v1941
  %v3884 = vunpack.c.l.b16 %v1942
  %v3885 = vunpack.c.l.b16 %v1943
  %v3886 = vunpack.c.h.b16 %v1943
  %v3887 = vunpack.c.l.b16 %v1944
  %v3888 = vunpack.c.l.b16 %v1945
  %v3889 = vunpack.c.h.b16 %v1945
  %v3890 = vunpack.c.l.b16 %v1946
  %v3891 = vunpack.c.l.b16 %v1947
  %v3892 = vunpack.c.h.b16 %v1947
  %v3893 = vunpack.c.l.b16 %v1948
  %v3894 = vunpack.c.l.b16 %v1949
  %v3895 = vunpack.c.h.b16 %v1949
  %v3896 = vunpack.c.l.b16 %v1950
  %v3897 = vunpack.c.l.b16 %v1951
  %v3898 = vunpack.c.h.b16 %v1951
  %v3899 = vunpack.c.l.b16 %v1952
  %v3900 = vunpack.c.l.b16 %v1953
  %v3901 = vunpack.c.h.b16 %v1953
  %v3902 = vunpack.c.l.b16 %v1954
  %v3903 = vunpack.c.l.b16 %v1955
  %v3904 = vunpack.c.h.b16 %v1955
  %v3905 = vunpack.c.l.b16 %v1956
  %v3906 = vunpack.c.l.b16 %v1957
  %v3907 = vunpack.c.h.b16 %v1957
  %v3908 = vunpack.c.l.b16 %v1958
  %v3909 = vunpack.c.l.b16 %v1959
  %v3910 = vunpack.c.h.b16 %v1959
  %v3911 = vunpack.c.l.b16 %v1960
  %v3912 = vunpack.c.l.b16 %v1961
  %v3913 = vunpack.c.h.b16 %v1961
  %v3914 = vunpack.c.l.b16 %v1962
  %v3915 = vunpack.c.l.b16 %v1963
  %v3916 = vunpack.c.h.b16 %v1963
  %v3917 = vunpack.c.l.b16 %v1964
  %v3918 = vunpack.c.l.b16 %v1965
  %v3919 = vunpack.c.h.b16 %v1965
  %v3920 = vunpack.c.l.b16 %v1966
  %v3921 = vunpack.c.l.b16 %v1967
  %v3922 = vunpack.c.h.b16 %v1967
  %v3923 = vunpack.c.l.b16 %v1968
  %v3924 = vunpack.c.l.b16 %v1969
  %v3925 = vunpack.c.h.b16 %v1969
  %v3926 = vunpack.c.l.b16 %v1970
  %v3927 = vunpack.c.l.b16 %v1971
  %v3928 = vunpack.c.h.b16 %v1971
  %v3929 = vunpack.c.l.b16 %v1972
  %v3930 = vunpack.c.l.b16 %v1973
  %v3931 = vunpack.c.h.b16 %v1973
  %v3932 = vunpack.c.l.b16 %v1974
  %v3933 = vunpack.c.l.b16 %v1975
  %v3934 = vunpack.c.h.b16 %v1975
  %v3935 = vunpack.c.l.b16 %v1976
  %v3936 = vunpack.c.l.b16 %v1977
  %v3937 = vunpack.c.h.b16 %v1977
  %v3938 = vunpack.c.l.b16 %v1978
  %v3939 = vunpack.c.l.b16 %v1979
  %v3940 = vunpack.c.h.b16 %v1979
  %v3941 = vunpack.c.l.b16 %v1980
  %v3942 = vunpack.c.l.b16 %v1981
  %v3943 = vunpack.c.h.b16 %v1981
  %v3944 = vunpack.c.l.b16 %v1982
  %v3945 = vunpack.c.l.b16 %v1983
  %v3946 = vunpack.c.h.b16 %v1983
  %v3947 = vunpack.c.l.b16 %v1984
  %v3948 = vunpack.c.l.b16 %v1985
  %v3949 = vunpack.c.h.b16 %v1985
  %v3950 = vunpack.c.l.b16 %v1986
  %v3951 = vunpack.c.l.b16 %v1987
  %v3952 = vunpack.c.h.b16 %v1987
  %v3953 = vunpack.c.l.b16 %v1988
  %v3954 = vunpack.c.l.b16 %v1989
  %v3955 = vunpack.c.h.b16 %v1989
  %v3956 = vunpack.c.l.b16 %v1990
  %v3957 = vunpack.c.l.b16 %v1991
  %v3958 = vunpack.c.h.b16 %v1991
  %v3959 = vunpack.c.l.b16 %v1992
  %v3960 = vunpack.c.l.b16 %v1993
  %v3961 = vunpack.c.h.b16 %v1993
  %v3962 = vunpack.c.l.b16 %v1994
  %v3963 = vunpack.c.l.b16 %v1995
  %v3964 = vunpack.c.h.b16 %v1995
  %v3965 = vunpack.c.l.b16 %v1996
  %v3966 = vunpack.c.l.b16 %v1997
  %v3967 = vunpack.c.h.b16 %v1997
  %v3968 = vunpack.c.l.b16 %v1998
  %v3969 = vunpack.c.l.b16 %v1999
  %v3970 = vunpack.c.h.b16 %v1999
  %v3971 = vunpack.c.l.b16 %v2000
  %v3972 = vunpack.c.l.b16 %v2001
  %v3973 = vunpack.c.h.b16 %v2001
  %v3974 = vunpack.c.l.b16 %v2002
  %v3975 = vunpack.c.l.b16 %v2003
  %v3976 = vunpack.c.h.b16 %v2003
  %v3977 = vunpack.c.l.b16 %v2004
  %v3978 = vunpack.c.l.b16 %v2005
  %v3979 = vunpack.c.h.b16 %v2005
  %v3980 = vunpack.c.l.b16 %v2006
  %v3981 = vunpack.c.l.b16 %v2007
  %v3982 = vunpack.c.h.b16 %v2007
  %v3983 = vunpack.c.l.b16 %v2008
  %v3984 = vunpack.c.l.b16 %v2009
  %v3985 = vunpack.c.h.b16 %v2009
  %v3986 = vunpack.c.l.b16 %v2010
  %v3987 = vunpack.c.l.b16 %v2011
  %v3988 = vunpack.c.h.b16 %v2011
  %v3989 = vunpack.c.l.b16 %v2012
  %v3990 = vunpack.c.l.b16 %v2013
  %v3991 = vunpack.c.h.b16 %v2013
  %v3992 = vunpack.c.l.b16 %v2014
  %v3993 = vunpack.c.l.b16 %v2015
  %v3994 = vunpack.c.h.b16 %v2015
  %v3995 = vunpack.c.l.b16 %v2016
  %v3996 = vunpack.c.l.b16 %v2017
  %v3997 = vunpack.c.h.b16 %v2017
  %v3998 = vunpack.c.l.b16 %v2018
  %v3999 = vunpack.c.l.b16 %v2019
  %v4000 = vunpack.c.h.b16 %v2019
  %v4001 = vunpack.c.l.b16 %v2020
  %v4002 = vunpack.c.l.b16 %v2021
  %v4003 = vunpack.c.h.b16 %v2021
  %v4004 = vunpack.c.l.b16 %v2022
  %v4005 = vunpack.c.l.b16 %v2023
  %v4006 = vunpack.c.h.b16 %v2023
  %v4007 = vunpack.c.l.b16 %v2024
  %v4008 = vunpack.c.l.b16 %v2025
  %v4009 = vunpack.c.h.b16 %v2025
  %v4010 = vunpack.c.l.b16 %v2026
  %v4011 = vunpack.c.l.b16 %v2027
  %v4012 = vunpack.c.h.b16 %v2027
  %v4013 = vunpack.c.l.b16 %v2028
  %v4014 = vunpack.c.l.b16 %v2029
  %v4015 = vunpack.c.h.b16 %v2029
  %v4016 = vunpack.c.l.b16 %v2030
  %v4017 = vunpack.c.l.b16 %v2031
  %v4018 = vunpack.c.h.b16 %v2031
  %v4019 = vunpack.c.l.b16 %v2032
  %v4020 = vunpack.c.l.b16 %v2033
  %v4021 = vunpack.c.h.b16 %v2033
  %v4022 = vunpack.c.l.b16 %v2034
  %v4023 = vunpack.c.l.b16 %v2035
  %v4024 = vunpack.c.h.b16 %v2035
  %v4025 = vunpack.c.l.b16 %v2036
  %v4026 = vunpack.c.l.b16 %v2037
  %v4027 = vunpack.c.h.b16 %v2037
  %v4028 = vunpack.c.l.b16 %v2038
  %v4029 = vunpack.c.l.b16 %v2039
  %v4030 = vunpack.c.h.b16 %v2039
  %v4031 = vunpack.c.l.b16 %v2040
  %v4032 = vunpack.c.l.b16 %v2041
  %v4033 = vunpack.c.h.b16 %v2041
  %v4034 = vunpack.c.l.b16 %v2042
  %v4035 = vunpack.c.l.b16 %v2043
  %v4036 = vunpack.c.h.b16 %v2043
  %v4037 = vunpack.c.l.b16 %v2044
  %v4038 = vunpack.c.l.b16 %v2045
  %v4039 = vunpack.c.h.b16 %v2045
  %v4040 = vunpack.c.l.b16 %v2046
  %v4041 = vunpack.c.l.b16 %v2047
  %v4042 = vunpack.c.h.b16 %v2047
  %v4043 = vunpack.c.l.b16 %v2048
  %v4044 = vunpack.c.l.b16 %v2049
  %v4045 = vunpack.c.h.b16 %v2049
  %v4046 = vunpack.c.l.b16 %v2050
  %v4047 = vunpack.c.l.b16 %v2051
  %v4048 = vunpack.c.h.b16 %v2051
  %v4049 = vunpack.c.l.b16 %v2052
  %v4050 = vunpack.c.l.b16 %v2053
  %v4051 = vunpack.c.h.b16 %v2053
  %v4052 = vunpack.c.l.b16 %v2054
  %v4053 = vunpack.c.l.b16 %v2055
  %v4054 = vunpack.c.h.b16 %v2055
  %v4055 = vunpack.c.l.b16 %v2056
  %v4056 = vunpack.c.l.b16 %v2057
  %v4057 = vunpack.c.h.b16 %v2057
  %v4058 = vunpack.c.l.b16 %v2058
  %v4059 = vunpack.c.l.b16 %v2059
  %v4060 = vunpack.c.h.b16 %v2059
  %v4061 = vunpack.c.l.b16 %v2060
  %v4062 = vunpack.c.l.b16 %v2061
  %v4063 = vunpack.c.h.b16 %v2061
  %v4064 = vunpack.c.l.b16 %v2062
  %v4065 = vunpack.c.l.b16 %v2063
  %v4066 = vunpack.c.h.b16 %v2063
  %v4067 = vunpack.c.l.b16 %v2064
  %v4068 = vunpack.c.l.b16 %v2065
  %v4069 = vunpack.c.h.b16 %v2065
  %v4070 = vunpack.c.l.b16 %v2066
  %v4071 = vunpack.c.l.b16 %v2067
  %v4072 = vunpack.c.h.b16 %v2067
  %v4073 = vunpack.c.l.b16 %v2068
  %v4074 = vunpack.c.l.b16 %v2069
  %v4075 = vunpack.c.h.b16 %v2069
  %v4076 = vunpack.c.l.b16 %v2070
  %v4077 = vunpack.c.l.b16 %v2071
  %v4078 = vunpack.c.h.b16 %v2071
  %v4079 = vunpack.c.l.b16 %v2072
  %v4080 = vunpack.c.l.b16 %v2073
  %v4081 = vunpack.c.h.b16 %v2073
  %v4082 = vunpack.c.l.b16 %v2074
  %v4083 = vunpack.c.l.b16 %v2075
  %v4084 = vunpack.c.h.b16 %v2075
  %v4085 = vunpack.c.l.b16 %v2076
  %v4086 = vunpack.c.l.b16 %v2077
  %v4087 = vunpack.c.h.b16 %v2077
  %v4088 = vunpack.c.l.b16 %v2078
  %v4089 = vunpack.c.l.b16 %v2079
  %v4090 = vunpack.c.h.b16 %v2079
  %v4091 = vunpack.c.l.b16 %v2080
  %v4092 = vunpack.c.l.b16 %v2081
  %v4093 = vunpack.c.h.b16 %v2081
  %v4094 = vunpack.c.l.b16 %v2082
  %v4095 = vunpack.c.l.b16 %v2083
  %v4096 = vunpack.c.h.b16 %v2083
  %v4097 = vunpack.c.l.b16 %v2084
  %v4098 = vunpack.c.l.b16 %v2085
  %v4099 = vunpack.c.h.b16 %v2085
  %v4100 = vunpack.c.l.b16 %v2086
  %v4101 = vunpack.c.l.b16 %v2087
  %v4102 = vunpack.c.h.b16 %v2087
  %v4103 = vunpack.c.l.b16 %v2088
  %v4104 = vunpack.c.l.b16 %v2089
  %v4105 = vunpack.c.h.b16 %v2089
  %v4106 = vunpack.c.l.b16 %v2090
  %v4107 = vunpack.c.l.b16 %v2091
  %v4108 = vunpack.c.h.b16 %v2091
  %v4109 = vunpack.c.l.b16 %v2092
  %v4110 = vunpack.c.l.b16 %v2093
  %v4111 = vunpack.c.h.b16 %v2093
  %v4112 = vunpack.c.l.b16 %v2094
  %v4113 = vunpack.c.l.b16 %v2095
  %v4114 = vunpack.c.h.b16 %v2095
  %v4115 = vunpack.c.l.b16 %v2096
  %v4116 = vunpack.c.l.b16 %v2097
  %v4117 = vunpack.c.h.b16 %v2097
  %v4118 = vunpack.c.l.b16 %v2098
  %v4119 = vunpack.c.l.b16 %v2099
  %v4120 = vunpack.c.h.b16 %v2099
  %v4121 = vunpack.c.l.b16 %v2100
  %v4122 = vunpack.c.l.b16 %v2101
  %v4123 = vunpack.c.h.b16 %v2101
  %v4124 = vunpack.c.l.b16 %v2102
  %v4125 = vunpack.c.l.b16 %v2103
  %v4126 = vunpack.c.h.b16 %v2103
  %v4127 = vunpack.c.l.b16 %v2104
  %v4128 = vunpack.c.l.b16 %v2105
  %v4129 = vunpack.c.h.b16 %v2105
  %v4130 = vunpack.c.l.b16 %v2106
  %v4131 = vunpack.c.l.b16 %v2107
  %v4132 = vunpack.c.h.b16 %v2107
  %v4133 = vunpack.c.l.b16 %v2108
  %v4134 = vunpack.c.l.b16 %v2109
  %v4135 = vunpack.c.h.b16 %v2109
  %v4136 = vunpack.c.l.b16 %v2110
  %v4137 = vunpack.c.l.b16 %v2111
  %v4138 = vunpack.c.h.b16 %v2111
  %v4139 = vunpack.c.l.b16 %v2112
  %v4140 = vunpack.c.l.b16 %v2113
  %v4141 = vunpack.c.h.b16 %v2113
  %v4142 = vunpack.c.l.b16 %v2114
  %v4143 = vunpack.c.l.b16 %v2115
  %v4144 = vunpack.c.h.b16 %v2115
  %v4145 = vunpack.c.l.b16 %v2116
  %v4146 = vunpack.c.l.b16 %v2117
  %v4147 = vunpack.c.h.b16 %v2117
  %v4148 = vunpack.c.l.b16 %v2118
  %v4149 = vunpack.c.l.b16 %v2119
  %v4150 = vunpack.c.h.b16 %v2119
  %v4151 = vunpack.c.l.b16 %v2120
  %v4152 = vunpack.c.l.b16 %v2121
  %v4153 = vunpack.c.h.b16 %v2121
  %v4154 = vunpack.c.l.b16 %v2122
  %v4155 = vunpack.c.l.b16 %v2123
  %v4156 = vunpack.c.h.b16 %v2123
  %v4157 = vunpack.c.l.b16 %v2124
  %v4158 = vunpack.c.l.b16 %v2125
  %v4159 = vunpack.c.h.b16 %v2125
  %v4160 = vunpack.c.l.b16 %v2126
  %v4161 = vunpack.c.l.b16 %v2127
  %v4162 = vunpack.c.h.b16 %v2127
  %v4163 = vunpack.c.l.b16 %v2128
  %v4164 = vunpack.c.l.b16 %v2129
  %v4165 = vunpack.c.h.b16 %v2129
  %v4166 = vunpack.c.l.b16 %v2130
  %v4167 = vunpack.c.l.b16 %v2131
  %v4168 = vunpack.c.h.b16 %v2131
  %v4169 = vunpack.c.l.b16 %v2132
  %v4170 = vunpack.c.l.b16 %v2133
  %v4171 = vunpack.c.h.b16 %v2133
  %v4172 = vunpack.c.l.b16 %v2134
  %v4173 = vunpack.c.l.b16 %v2135
  %v4174 = vunpack.c.h.b16 %v2135
  %v4175 = vunpack.c.l.b16 %v2136
  %v4176 = vunpack.c.l.b16 %v2137
  %v4177 = vunpack.c.h.b16 %v2137
  %v4178 = vunpack.c.l.b16 %v2138
  %v4179 = vunpack.c.l.b16 %v2139
  %v4180 = vunpack.c.h.b16 %v2139
  %v4181 = vunpack.c.l.b16 %v2140
  %v4182 = vunpack.c.l.b16 %v2141
  %v4183 = vunpack.c.h.b16 %v2141
  %v4184 = vunpack.c.l.b16 %v2142
  %v4185 = vunpack.c.l.b16 %v2143
  %v4186 = vunpack.c.h.b16 %v2143
  %v4187 = vunpack.c.l.b16 %v2144
  %v4188 = vunpack.c.l.b16 %v2145
  %v4189 = vunpack.c.h.b16 %v2145
  %v4190 = vunpack.c.l.b16 %v2146
  %v4191 = vunpack.c.l.b16 %v2147
  %v4192 = vunpack.c.h.b16 %v2147
  %v4193 = vunpack.c.l.b16 %v2148
  %v4194 = vunpack.c.l.b16 %v2149
  %v4195 = vunpack.c.h.b16 %v2149
  %v4196 = vunpack.c.l.b16 %v2150
  %v4197 = vunpack.c.l.b16 %v2151
  %v4198 = vunpack.c.h.b16 %v2151
  %v4199 = vunpack.c.l.b16 %v2152
  %v4200 = vunpack.c.l.b16 %v2153
  %v4201 = vunpack.c.h.b16 %v2153
  %v4202 = vunpack.c.l.b16 %v2154
  %v4203 = vunpack.c.l.b16 %v2155
  %v4204 = vunpack.c.h.b16 %v2155
  %v4205 = vunpack.c.l.b16 %v2156
  %v4206 = vunpack.c.l.b16 %v2157
  %v4207 = vunpack.c.h.b16 %v2157
  %v4208 = vunpack.c.l.b16 %v2158
  %v4209 = vunpack.c.l.b16 %v2159
  %v4210 = vunpack.c.h.b16 %v2159
  %v4211 = vunpack.c.l.b16 %v2160
  %v4212 = vunpack.c.l.b16 %v2161
  %v4213 = vunpack.c.h.b16 %v2161
  %v4214 = vunpack.c.l.b16 %v2162
  %v4215 = vunpack.c.l.b16 %v2163
  %v4216 = vunpack.c.h.b16 %v2163
  %v4217 = vunpack.c.l.b16 %v2164
  %v4218 = vunpack.c.l.b16 %v2165
  %v4219 = vunpack.c.h.b16 %v2165
  %v4220 = vunpack.c.l.b16 %v2166
  %v4221 = vunpack.c.l.b16 %v2167
  %v4222 = vunpack.c.h.b16 %v2167
  %v4223 = vunpack.c.l.b16 %v2168
  %v4224 = vunpack.c.l.b16 %v2169
  %v4225 = vunpack.c.h.b16 %v2169
  %v4226 = vunpack.c.l.b16 %v2170
  %v4227 = vunpack.c.l.b16 %v2171
  %v4228 = vunpack.c.h.b16 %v2171
  %v4229 = vunpack.c.l.b16 %v2172
  %v4230 = vpack.c.b16 %v3009, %v3006
  %v4231 = vpack.c.b16 %v3010, %v3007
  %v4232 = vpack.c.b16 %v3011, %v3008
  %v4233 = vpack.c.b16 %v3015, %v3012
  %v4234 = vpack.c.b16 %v3016, %v3013
  %v4235 = vpack.c.b16 %v3017, %v3014
  %v4236 = vpack.c.b16 %v3021, %v3018
  %v4237 = vpack.c.b16 %v3022, %v3019
  %v4238 = vpack.c.b16 %v3023, %v3020
  %v4239 = vpack.c.b16 %v3027, %v3024
  %v4240 = vpack.c.b16 %v3028, %v3025
  %v4241 = vpack.c.b16 %v3029, %v3026
  %v4242 = vpack.c.b16 %v3033, %v3030
  %v4243 = vpack.c.b16 %v3034, %v3031
  %v4244 = vpack.c.b16 %v3035, %v3032
  %v4245 = vpack.c.b16 %v3039, %v3036
  %v4246 = vpack.c.b16 %v3040, %v3037
  %v4247 = vpack.c.b16 %v3041, %v3038
  %v4248 = vpack.c.b16 %v3045, %v3042
  %v4249 = vpack.c.b16 %v3046, %v3043
  %v4250 = vpack.c.b16 %v3047, %v3044
  %v4251 = vpack.c.b16 %v3051, %v3048
  %v4252 = vpack.c.b16 %v3052, %v3049
  %v4253 = vpack.c.b16 %v3053, %v3050
  %v4254 = vpack.c.b16 %v3057, %v3054
  %v4255 = vpack.c.b16 %v3058, %v3055
  %v4256 = vpack.c.b16 %v3059, %v3056
  %v4257 = vpack.c.b16 %v3063, %v3060
  %v4258 = vpack.c.b16 %v3064, %v3061
  %v4259 = vpack.c.b16 %v3065, %v3062
  %v4260 = vpack.c.b16 %v3069, %v3066
  %v4261 = vpack.c.b16 %v3070, %v3067
  %v4262 = vpack.c.b16 %v3071, %v3068
  %v4263 = vpack.c.b16 %v3075, %v3072
  %v4264 = vpack.c.b16 %v3076, %v3073
  %v4265 = vpack.c.b16 %v3077, %v3074
  %v4266 = vpack.c.b16 %v3081, %v3078
  %v4267 = vpack.c.b16 %v3082, %v3079
  %v4268 = vpack.c.b16 %v3083, %v3080
  %v4269 = vpack.c.b16 %v3087, %v3084
  %v4270 = vpack.c.b16 %v3088, %v3085
  %v4271 = vpack.c.b16 %v3089, %v3086
  %v4272 = vpack.c.b16 %v3093, %v3090
  %v4273 = vpack.c.b16 %v3094, %v3091
  %v4274 = vpack.c.b16 %v3095, %v3092
  %v4275 = vpack.c.b16 %v3099, %v3096
  %v4276 = vpack.c.b16 %v3100, %v3097
  %v4277 = vpack.c.b16 %v3101, %v3098
  %v4278 = vpack.c.b16 %v3105, %v3102
  %v4279 = vpack.c.b16 %v3106, %v3103
  %v4280 = vpack.c.b16 %v3107, %v3104
  %v4281 = vpack.c.b16 %v3111, %v3108
  %v4282 = vpack.c.b16 %v3112, %v3109
  %v4283 = vpack.c.b16 %v3113, %v3110
  %v4284 = vpack.c.b16 %v3117, %v3114
  %v4285 = vpack.c.b16 %v3118, %v3115
  %v4286 = vpack.c.b16 %v3119, %v3116
  %v4287 = vpack.c.b16 %v3123, %v3120
  %v4288 = vpack.c.b16 %v3124, %v3121
  %v4289 = vpack.c.b16 %v3125, %v3122
  %v4290 = vpack.c.b16 %v3129, %v3126
  %v4291 = vpack.c.b16 %v3130, %v3127
  %v4292 = vpack.c.b16 %v3131, %v3128
  %v4293 = vpack.c.b16 %v3135, %v3132
  %v4294 = vpack.c.b16 %v3136, %v3133
  %v4295 = vpack.c.b16 %v3137, %v3134
  %v4296 = vpack.c.b16 %v3141, %v3138
  %v4297 = vpack.c.b16 %v3142, %v3139
  %v4298 = vpack.c.b16 %v3143, %v3140
  %v4299 = vpack.c.b16 %v3147, %v3144
  %v4300 = vpack.c.b16 %v3148, %v3145
  %v4301 = vpack.c.b16 %v3149, %v3146
  %v4302 = vpack.c.b16 %v3153, %v3150
  %v4303 = vpack.c.b16 %v3154, %v3151
  %v4304 = vpack.c.b16 %v3155, %v3152
  %v4305 = vpack.c.b16 %v3159, %v3156
  %v4306 = vpack.c.b16 %v3160, %v3157
  %v4307 = vpack.c.b16 %v3161, %v3158
  %v4308 = vpack.c.b16 %v3165, %v3162
  %v4309 = vpack.c.b16 %v3166, %v3163
  %v4310 = vpack.c.b16 %v3167, %v3164
  %v4311 = vpack.c.b16 %v3171, %v3168
  %v4312 = vpack.c.b16 %v3172, %v3169
  %v4313 = vpack.c.b16 %v3173, %v3170
  %v4314 = vpack.c.b16 %v3177, %v3174
  %v4315 = vpack.c.b16 %v3178, %v3175
  %v4316 = vpack.c.b16 %v3179, %v3176
  %v4317 = vpack.c.b16 %v3183, %v3180
  %v4318 = vpack.c.b16 %v3184, %v3181
  %v4319 = vpack.c.b16 %v3185, %v3182
  %v4320 = vpack.c.b16 %v3189, %v3186
  %v4321 = vpack.c.b16 %v3190, %v3187
  %v4322 = vpack.c.b16 %v3191, %v3188
  %v4323 = vpack.c.b16 %v3195, %v3192
  %v4324 = vpack.c.b16 %v3196, %v3193
  %v4325 = vpack.c.b16 %v3197, %v3194
  %v4326 = vpack.c.b16 %v3201, %v3198
  %v4327 = vpack.c.b16 %v3202, %v3199
  %v4328 = vpack.c.b16 %v3203, %v3200
  %v4329 = vpack.c.b16 %v3207, %v3204
  %v4330 = vpack.c.b16 %v3208, %v3205
  %v4331 = vpack.c.b16 %v3209, %v3206
  %v4332 = vpack.c.b16 %v3213, %v3210
  %v4333 = vpack.c.b16 %v3214, %v3211
  %v4334 = vpack.c.b16 %v3215, %v3212
  %v4335 = vpack.c.b16 %v3219, %v3216
  %v4336 = vpack.c.b16 %v3220, %v3217
  %v4337 = vpack.c.b16 %v3221, %v3218
  %v4338 = vpack.c.b16 %v3225, %v3222
  %v4339 = vpack.c.b16 %v3226, %v3223
  %v4340 = vpack.c.b16 %v3227, %v3224
  %v4341 = vpack.c.b16 %v3231, %v3228
  %v4342 = vpack.c.b16 %v3232, %v3229
  %v4343 = vpack.c.b16 %v3233, %v3230
  %v4344 = vpack.c.b16 %v3237, %v3234
  %v4345 = vpack.c.b16 %v3238, %v3235
  %v4346 = vpack.c.b16 %v3239, %v3236
  %v4347 = vpack.c.b16 %v3243, %v3240
  %v4348 = vpack.c.b16 %v3244, %v3241
  %v4349 = vpack.c.b16 %v3245, %v3242
  %v4350 = vpack.c.b16 %v3249, %v3246
  %v4351 = vpack.c.b16 %v3250, %v3247
  %v4352 = vpack.c.b16 %v3251, %v3248
  %v4353 = vpack.c.b16 %v3255, %v3252
  %v4354 = vpack.c.b16 %v3256, %v3253
  %v4355 = vpack.c.b16 %v3257, %v3254
  %v4356 = vpack.c.b16 %v3261, %v3258
  %v4357 = vpack.c.b16 %v3262, %v3259
  %v4358 = vpack.c.b16 %v3263, %v3260
  %v4359 = vpack.c.b16 %v3267, %v3264
  %v4360 = vpack.c.b16 %v3268, %v3265
  %v4361 = vpack.c.b16 %v3269, %v3266
  %v4362 = vpack.c.b16 %v3273, %v3270
  %v4363 = vpack.c.b16 %v3274, %v3271
  %v4364 = vpack.c.b16 %v3275, %v3272
  %v4365 = vpack.c.b16 %v3279, %v3276
  %v4366 = vpack.c.b16 %v3280, %v3277
  %v4367 = vpack.c.b16 %v3281, %v3278
  %v4368 = vpack.c.b16 %v3285, %v3282
  %v4369 = vpack.c.b16 %v3286, %v3283
  %v4370 = vpack.c.b16 %v3287, %v3284
  %v4371 = vpack.c.b16 %v3291, %v3288
  %v4372 = vpack.c.b16 %v3292, %v3289
  %v4373 = vpack.c.b16 %v3293, %v3290
  %v4374 = vpack.c.b16 %v3297, %v3294
  %v4375 = vpack.c.b16 %v3298, %v3295
  %v4376 = vpack.c.b16 %v3299, %v3296
  %v4377 = vpack.c.b16 %v3303, %v3300
  %v4378 = vpack.c.b16 %v3304, %v3301
  %v4379 = vpack.c.b16 %v3305, %v3302
  %v4380 = vpack.c.b16 %v3309, %v3306
  %v4381 = vpack.c.b16 %v3310, %v3307
  %v4382 = vpack.c.b16 %v3311, %v3308
  %v4383 = vpack.c.b16 %v3315, %v3312
  %v4384 = vpack.c.b16 %v3316, %v3313
  %v4385 = vpack.c.b16 %v3317, %v3314
  %v4386 = vpack.c.b16 %v3321, %v3318
  %v4387 = vpack.c.b16 %v3322, %v3319
  %v4388 = vpack.c.b16 %v3323, %v3320
  %v4389 = vpack.c.b16 %v3327, %v3324
  %v4390 = vpack.c.b16 %v3328, %v3325
  %v4391 = vpack.c.b16 %v3329, %v3326
  %v4392 = vpack.c.b16 %v3333, %v3330
  %v4393 = vpack.c.b16 %v3334, %v3331
  %v4394 = vpack.c.b16 %v3335, %v3332
  %v4395 = vpack.c.b16 %v3339, %v3336
  %v4396 = vpack.c.b16 %v3340, %v3337
  %v4397 = vpack.c.b16 %v3341, %v3338
  %v4398 = vpack.c.b16 %v3345, %v3342
  %v4399 = vpack.c.b16 %v3346, %v3343
  %v4400 = vpack.c.b16 %v3347, %v3344
  %v4401 = vpack.c.b16 %v3351, %v3348
  %v4402 = vpack.c.b16 %v3352, %v3349
  %v4403 = vpack.c.b16 %v3353, %v3350
  %v4404 = vpack.c.b16 %v3357, %v3354
  %v4405 = vpack.c.b16 %v3358, %v3355
  %v4406 = vpack.c.b16 %v3359, %v3356
  %v4407 = vpack.c.b16 %v3363, %v3360
  %v4408 = vpack.c.b16 %v3364, %v3361
  %v4409 = vpack.c.b16 %v3365, %v3362
  %v4410 = vpack.c.b16 %v3369, %v3366
  %v4411 = vpack.c.b16 %v3370, %v3367
  %v4412 = vpack.c.b16 %v3371, %v3368
  %v4413 = vpack.c.b16 %v3375, %v3372
  %v4414 = vpack.c.b16 %v3376, %v3373
  %v4415 = vpack.c.b16 %v3377, %v3374
  %v4416 = vpack.c.b16 %v3381, %v3378
  %v4417 = vpack.c.b16 %v3382, %v3379
  %v4418 = vpack.c.b16 %v3383, %v3380
  %v4419 = vpack.c.b16 %v3387, %v3384
  %v4420 = vpack.c.b16 %v3388, %v3385
  %v4421 = vpack.c.b16 %v3389, %v3386
  %v4422 = vpack.c.b16 %v3393, %v3390
  %v4423 = vpack.c.b16 %v3394, %v3391
  %v4424 = vpack.c.b16 %v3395, %v3392
  %v4425 = vpack.c.b16 %v3399, %v3396
  %v4426 = vpack.c.b16 %v3400, %v3397
  %v4427 = vpack.c.b16 %v3401, %v3398
  %v4428 = vpack.c.b16 %v3405, %v3402
  %v4429 = vpack.c.b16 %v3406, %v3403
  %v4430 = vpack.c.b16 %v3407, %v3404
  %v4431 = vpack.c.b16 %v3411, %v3408
  %v4432 = vpack.c.b16 %v3412, %v3409
  %v4433 = vpack.c.b16 %v3413, %v3410
  %v4434 = vpack.c.b16 %v3417, %v3414
  %v4435 = vpack.c.b16 %v3418, %v3415
  %v4436 = vpack.c.b16 %v3419, %v3416
  %v4437 = vpack.c.b16 %v3423, %v3420
  %v4438 = vpack.c.b16 %v3424, %v3421
  %v4439 = vpack.c.b16 %v3425, %v3422
  %v4440 = vpack.c.b16 %v3429, %v3426
  %v4441 = vpack.c.b16 %v3430, %v3427
  %v4442 = vpack.c.b16 %v3431, %v3428
  %v4443 = vpack.c.b16 %v3435, %v3432
  %v4444 = vpack.c.b16 %v3436, %v3433
  %v4445 = vpack.c.b16 %v3437, %v3434
  %v4446 = vpack.c.b16 %v3441, %v3438
  %v4447 = vpack.c.b16 %v3442, %v3439
  %v4448 = vpack.c.b16 %v3443, %v3440
  %v4449 = vpack.c.b16 %v3447, %v3444
  %v4450 = vpack.c.b16 %v3448, %v3445
  %v4451 = vpack.c.b16 %v3449, %v3446
  %v4452 = vpack.c.b16 %v3453, %v3450
  %v4453 = vpack.c.b16 %v3454, %v3451
  %v4454 = vpack.c.b16 %v3455, %v3452
  %v4455 = vpack.c.b16 %v3459, %v3456
  %v4456 = vpack.c.b16 %v3460, %v3457
  %v4457 = vpack.c.b16 %v3461, %v3458
  %v4458 = vpack.c.b16 %v3465, %v3462
  %v4459 = vpack.c.b16 %v3466, %v3463
  %v4460 = vpack.c.b16 %v3467, %v3464
  %v4461 = vpack.c.b16 %v3471, %v3468
  %v4462 = vpack.c.b16 %v3472, %v3469
  %v4463 = vpack.c.b16 %v3473, %v3470
  %v4464 = vpack.c.b16 %v3477, %v3474
  %v4465 = vpack.c.b16 %v3478, %v3475
  %v4466 = vpack.c.b16 %v3479, %v3476
  %v4467 = vpack.c.b16 %v3483, %v3480
  %v4468 = vpack.c.b16 %v3484, %v3481
  %v4469 = vpack.c.b16 %v3485, %v3482
  %v4470 = vpack.c.b16 %v3489, %v3486
  %v4471 = vpack.c.b16 %v3490, %v3487
  %v4472 = vpack.c.b16 %v3491, %v3488
  %v4473 = vpack.c.b16 %v3495, %v3492
  %v4474 = vpack.c.b16 %v3496, %v3493
  %v4475 = vpack.c.b16 %v3497, %v3494
  %v4476 = vpack.c.b16 %v3501, %v3498
  %v4477 = vpack.c.b16 %v3502, %v3499
  %v4478 = vpack.c.b16 %v3503, %v3500
  %v4479 = vpack.c.b16 %v3507, %v3504
  %v4480 = vpack.c.b16 %v3508, %v3505
  %v4481 = vpack.c.b16 %v3509, %v3506
  %v4482 = vpack.c.b16 %v3513, %v3510
  %v4483 = vpack.c.b16 %v3514, %v3511
  %v4484 = vpack.c.b16 %v3515, %v3512
  %v4485 = vpack.c.b16 %v3519, %v3516
  %v4486 = vpack.c.b16 %v3520, %v3517
  %v4487 = vpack.c.b16 %v3521, %v3518
  %v4488 = vpack.c.b16 %v3525, %v3522
  %v4489 = vpack.c.b16 %v3526, %v3523
  %v4490 = vpack.c.b16 %v3527, %v3524
  %v4491 = vpack.c.b16 %v3531, %v3528
  %v4492 = vpack.c.b16 %v3532, %v3529
  %v4493 = vpack.c.b16 %v3533, %v3530
  %v4494 = vpack.c.b16 %v3537, %v3534
  %v4495 = vpack.c.b16 %v3538, %v3535
  %v4496 = vpack.c.b16 %v3539, %v3536
  %v4497 = vpack.c.b16 %v3543, %v3540
  %v4498 = vpack.c.b16 %v3544, %v3541
  %v4499 = vpack.c.b16 %v3545, %v3542
  %v4500 = vpack.c.b16 %v3549, %v3546
  %v4501 = vpack.c.b16 %v3550, %v3547
  %v4502 = vpack.c.b16 %v3551, %v3548
  %v4503 = vpack.c.b16 %v3555, %v3552
  %v4504 = vpack.c.b16 %v3556, %v3553
  %v4505 = vpack.c.b16 %v3557, %v3554
  %v4506 = vpack.c.b16 %v3561, %v3558
  %v4507 = vpack.c.b16 %v3562, %v3559
  %v4508 = vpack.c.b16 %v3563, %v3560
  %v4509 = vpack.c.b16 %v3567, %v3564
  %v4510 = vpack.c.b16 %v3568, %v3565
  %v4511 = vpack.c.b16 %v3569, %v3566
  %v4512 = vpack.c.b16 %v3573, %v3570
  %v4513 = vpack.c.b16 %v3574, %v3571
  %v4514 = vpack.c.b16 %v3575, %v3572
  %v4515 = vpack.c.b16 %v3579, %v3576
  %v4516 = vpack.c.b16 %v3580, %v3577
  %v4517 = vpack.c.b16 %v3581, %v3578
  %v4518 = vpack.c.b16 %v3585, %v3582
  %v4519 = vpack.c.b16 %v3586, %v3583
  %v4520 = vpack.c.b16 %v3587, %v3584
  %v4521 = vpack.c.b16 %v3591, %v3588
  %v4522 = vpack.c.b16 %v3592, %v3589
  %v4523 = vpack.c.b16 %v3593, %v3590
  %v4524 = vpack.c.b16 %v3597, %v3594
  %v4525 = vpack.c.b16 %v3598, %v3595
  %v4526 = vpack.c.b16 %v3599, %v3596
  %v4527 = vpack.c.b16 %v3603, %v3600
  %v4528 = vpack.c.b16 %v3604, %v3601
  %v4529 = vpack.c.b16 %v3605, %v3602
  %v4530 = vpack.c.b16 %v3609, %v3606
  %v4531 = vpack.c.b16 %v3610, %v3607
  %v4532 = vpack.c.b16 %v3611, %v3608
  %v4533 = vpack.c.b16 %v3615, %v3612
  %v4534 = vpack.c.b16 %v3616, %v3613
  %v4535 = vpack.c.b16 %v3617, %v3614
  %v4536 = vpack.c.b16 %v3621, %v3618
  %v4537 = vpack.c.b16 %v3622, %v3619
  %v4538 = vpack.c.b16 %v3623, %v3620
  %v4539 = vpack.c.b16 %v3627, %v3624
  %v4540 = vpack.c.b16 %v3628, %v3625
  %v4541 = vpack.c.b16 %v3629, %v3626
  %v4542 = vpack.c.b16 %v3633, %v3630
  %v4543 = vpack.c.b16 %v3634, %v3631
  %v4544 = vpack.c.b16 %v3635, %v3632
  %v4545 = vpack.c.b16 %v3639, %v3636
  %v4546 = vpack.c.b16 %v3640, %v3637
  %v4547 = vpack.c.b16 %v3641, %v3638
  %v4548 = vpack.c.b16 %v3645, %v3642
  %v4549 = vpack.c.b16 %v3646, %v3643
  %v4550 = vpack.c.b16 %v3647, %v3644
  %v4551 = vpack.c.b16 %v3651, %v3648
  %v4552 = vpack.c.b16 %v3652, %v3649
  %v4553 = vpack.c.b16 %v3653, %v3650
  %v4554 = vpack.c.b16 %v3657, %v3654
  %v4555 = vpack.c.b16 %v3658, %v3655
  %v4556 = vpack.c.b16 %v3659, %v3656
  %v4557 = vpack.c.b16 %v3663, %v3660
  %v4558 = vpack.c.b16 %v3664, %v3661
  %v4559 = vpack.c.b16 %v3665, %v3662
  %v4560 = vpack.c.b16 %v3669, %v3666
  %v4561 = vpack.c.b16 %v3670, %v3667
  %v4562 = vpack.c.b16 %v3671, %v3668
  %v4563 = vpack.c.b16 %v3675, %v3672
  %v4564 = vpack.c.b16 %v3676, %v3673
  %v4565 = vpack.c.b16 %v3677, %v3674
  %v4566 = vpack.c.b16 %v3681, %v3678
  %v4567 = vpack.c.b16 %v3682, %v3679
  %v4568 = vpack.c.b16 %v3683, %v3680
  %v4569 = vpack.c.b16 %v3687, %v3684
  %v4570 = vpack.c.b16 %v3688, %v3685
  %v4571 = vpack.c.b16 %v3689, %v3686
  %v4572 = vpack.c.b16 %v3693, %v3690
  %v4573 = vpack.c.b16 %v3694, %v3691
  %v4574 = vpack.c.b16 %v3695, %v3692
  %v4575 = vpack.c.b16 %v3699, %v3696
  %v4576 = vpack.c.b16 %v3700, %v3697
  %v4577 = vpack.c.b16 %v3701, %v3698
  %v4578 = vpack.c.b16 %v3705, %v3702
  %v4579 = vpack.c.b16 %v3706, %v3703
  %v4580 = vpack.c.b16 %v3707, %v3704
  %v4581 = vpack.c.b16 %v3711, %v3708
  %v4582 = vpack.c.b16 %v3712, %v3709
  %v4583 = vpack.c.b16 %v3713, %v3710
  %v4584 = vpack.c.b16 %v3717, %v3714
  %v4585 = vpack.c.b16 %v3718, %v3715
  %v4586 = vpack.c.b16 %v3719, %v3716
  %v4587 = vpack.c.b16 %v3723, %v3720
  %v4588 = vpack.c.b16 %v3724, %v3721
  %v4589 = vpack.c.b16 %v3725, %v3722
  %v4590 = vpack.c.b16 %v3729, %v3726
  %v4591 = vpack.c.b16 %v3730, %v3727
  %v4592 = vpack.c.b16 %v3731, %v3728
  %v4593 = vpack.c.b16 %v3735, %v3732
  %v4594 = vpack.c.b16 %v3736, %v3733
  %v4595 = vpack.c.b16 %v3737, %v3734
  %v4596 = vpack.c.b16 %v3741, %v3738
  %v4597 = vpack.c.b16 %v3742, %v3739
  %v4598 = vpack.c.b16 %v3743, %v3740
  %v4599 = vpack.c.b16 %v3747, %v3744
  %v4600 = vpack.c.b16 %v3748, %v3745
  %v4601 = vpack.c.b16 %v3749, %v3746
  %v4602 = vpack.c.b16 %v3753, %v3750
  %v4603 = vpack.c.b16 %v3754, %v3751
  %v4604 = vpack.c.b16 %v3755, %v3752
  %v4605 = vpack.c.b16 %v3759, %v3756
  %v4606 = vpack.c.b16 %v3760, %v3757
  %v4607 = vpack.c.b16 %v3761, %v3758
  %v4608 = vpack.c.b16 %v3765, %v3762
  %v4609 = vpack.c.b16 %v3766, %v3763
  %v4610 = vpack.c.b16 %v3767, %v3764
  %v4611 = vpack.c.b16 %v3771, %v3768
  %v4612 = vpack.c.b16 %v3772, %v3769
  %v4613 = vpack.c.b16 %v3773, %v3770
  %v4614 = vpack.c.b16 %v3777, %v3774
  %v4615 = vpack.c.b16 %v3778, %v3775
  %v4616 = vpack.c.b16 %v3779, %v3776
  %v4617 = vpack.c.b16 %v3783, %v3780
  %v4618 = vpack.c.b16 %v3784, %v3781
  %v4619 = vpack.c.b16 %v3785, %v3782
  %v4620 = vpack.c.b16 %v3789, %v3786
  %v4621 = vpack.c.b16 %v3790, %v3787
  %v4622 = vpack.c.b16 %v3791, %v3788
  %v4623 = vpack.c.b16 %v3795, %v3792
  %v4624 = vpack.c.b16 %v3796, %v3793
  %v4625 = vpack.c.b16 %v3797, %v3794
  %v4626 = vpack.c.b16 %v3801, %v3798
  %v4627 = vpack.c.b16 %v3802, %v3799
  %v4628 = vpack.c.b16 %v3803, %v3800
  %v4629 = vpack.c.b16 %v3807, %v3804
  %v4630 = vpack.c.b16 %v3808, %v3805
  %v4631 = vpack.c.b16 %v3809, %v3806
  %v4632 = vpack.c.b16 %v3813, %v3810
  %v4633 = vpack.c.b16 %v3814, %v3811
  %v4634 = vpack.c.b16 %v3815, %v3812
  %v4635 = vpack.c.b16 %v3819, %v3816
  %v4636 = vpack.c.b16 %v3820, %v3817
  %v4637 = vpack.c.b16 %v3821, %v3818
  %v4638 = vpack.c.b16 %v3825, %v3822
  %v4639 = vpack.c.b16 %v3826, %v3823
  %v4640 = vpack.c.b16 %v3827, %v3824
  %v4641 = vpack.c.b16 %v3831, %v3828
  %v4642 = vpack.c.b16 %v3832, %v3829
  %v4643 = vpack.c.b16 %v3833, %v3830
  %v4644 = vpack.c.b16 %v3837, %v3834
  %v4645 = vpack.c.b16 %v3838, %v3835
  %v4646 = vpack.c.b16 %v3839, %v3836
  %v4647 = vpack.c.b16 %v3843, %v3840
  %v4648 = vpack.c.b16 %v3844, %v3841
  %v4649 = vpack.c.b16 %v3845, %v3842
  %v4650 = vpack.c.b16 %v3849, %v3846
  %v4651 = vpack.c.b16 %v3850, %v3847
  %v4652 = vpack.c.b16 %v3851, %v3848
  %v4653 = vpack.c.b16 %v3855, %v3852
  %v4654 = vpack.c.b16 %v3856, %v3853
  %v4655 = vpack.c.b16 %v3857, %v3854
  %v4656 = vpack.c.b16 %v3861, %v3858
  %v4657 = vpack.c.b16 %v3862, %v3859
  %v4658 = vpack.c.b16 %v3863, %v3860
  %v4659 = vpack.c.b16 %v3867, %v3864
  %v4660 = vpack.c.b16 %v3868, %v3865
  %v4661 = vpack.c.b16 %v3869, %v3866
  %v4662 = vpack.c.b16 %v3873, %v3870
  %v4663 = vpack.c.b16 %v3874, %v3871
  %v4664 = vpack.c.b16 %v3875, %v3872
  %v4665 = vpack.c.b16 %v3879, %v3876
  %v4666 = vpack.c.b16 %v3880, %v3877
  %v4667 = vpack.c.b16 %v3881, %v3878
  %v4668 = vpack.c.b16 %v3885, %v3882
  %v4669 = vpack.c.b16 %v3886, %v3883
  %v4670 = vpack.c.b16 %v3887, %v3884
  %v4671 = vpack.c.b16 %v3891, %v3888
  %v4672 = vpack.c.b16 %v3892, %v3889
  %v4673 = vpack.c.b16 %v3893, %v3890
  %v4674 = vpack.c.b16 %v3897, %v3894
  %v4675 = vpack.c.b16 %v3898, %v3895
  %v4676 = vpack.c.b16 %v3899, %v3896
  %v4677 = vpack.c.b16 %v3903, %v3900
  %v4678 = vpack.c.b16 %v3904, %v3901
  %v4679 = vpack.c.b16 %v3905, %v3902
  %v4680 = vpack.c.b16 %v3909, %v3906
  %v4681 = vpack.c.b16 %v3910, %v3907
  %v4682 = vpack.c.b16 %v3911, %v3908
  %v4683 = vpack.c.b16 %v3915, %v3912
  %v4684 = vpack.c.b16 %v3916, %v3913
  %v4685 = vpack.c.b16 %v3917, %v3914
  %v4686 = vpack.c.b16 %v3921, %v3918
  %v4687 = vpack.c.b16 %v3922, %v3919
  %v4688 = vpack.c.b16 %v3923, %v3920
  %v4689 = vpack.c.b16 %v3927, %v3924
  %v4690 = vpack.c.b16 %v3928, %v3925
  %v4691 = vpack.c.b16 %v3929, %v3926
  %v4692 = vpack.c.b16 %v3933, %v3930
  %v4693 = vpack.c.b16 %v3934, %v3931
  %v4694 = vpack.c.b16 %v3935, %v3932
  %v4695 = vpack.c.b16 %v3939, %v3936
  %v4696 = vpack.c.b16 %v3940, %v3937
  %v4697 = vpack.c.b16 %v3941, %v3938
  %v4698 = vpack.c.b16 %v3945, %v3942
  %v4699 = vpack.c.b16 %v3946, %v3943
  %v4700 = vpack.c.b16 %v3947, %v3944
  %v4701 = vpack.c.b16 %v3951, %v3948
  %v4702 = vpack.c.b16 %v3952, %v3949
  %v4703 = vpack.c.b16 %v3953, %v3950
  %v4704 = vpack.c.b16 %v3957, %v3954
  %v4705 = vpack.c.b16 %v3958, %v3955
  %v4706 = vpack.c.b16 %v3959, %v3956
  %v4707 = vpack.c.b16 %v3963, %v3960
  %v4708 = vpack.c.b16 %v3964, %v3961
  %v4709 = vpack.c.b16 %v3965, %v3962
  %v4710 = vpack.c.b16 %v3969, %v3966
  %v4711 = vpack.c.b16 %v3970, %v3967
  %v4712 = vpack.c.b16 %v3971, %v3968
  %v4713 = vpack.c.b16 %v3975, %v3972
  %v4714 = vpack.c.b16 %v3976, %v3973
  %v4715 = vpack.c.b16 %v3977, %v3974
  %v4716 = vpack.c.b16 %v3981, %v3978
  %v4717 = vpack.c.b16 %v3982, %v3979
  %v4718 = vpack.c.b16 %v3983, %v3980
  %v4719 = vpack.c.b16 %v3987, %v3984
  %v4720 = vpack.c.b16 %v3988, %v3985
  %v4721 = vpack.c.b16 %v3989, %v3986
  %v4722 = vpack.c.b16 %v3993, %v3990
  %v4723 = vpack.c.b16 %v3994, %v3991
  %v4724 = vpack.c.b16 %v3995, %v3992
  %v4725 = vpack.c.b16 %v3999, %v3996
  %v4726 = vpack.c.b16 %v4000, %v3997
  %v4727 = vpack.c.b16 %v4001, %v3998
  %v4728 = vpack.c.b16 %v4005, %v4002
  %v4729 = vpack.c.b16 %v4006, %v4003
  %v4730 = vpack.c.b16 %v4007, %v4004
  %v4731 = vpack.c.b16 %v4011, %v4008
  %v4732 = vpack.c.b16 %v4012, %v4009
  %v4733 = vpack.c.b16 %v4013, %v4010
  %v4734 = vpack.c.b16 %v4017, %v4014
  %v4735 = vpack.c.b16 %v4018, %v4015
  %v4736 = vpack.c.b16 %v4019, %v4016
  %v4737 = vpack.c.b16 %v4023, %v4020
  %v4738 = vpack.c.b16 %v4024, %v4021
  %v4739 = vpack.c.b16 %v4025, %v4022
  %v4740 = vpack.c.b16 %v4029, %v4026
  %v4741 = vpack.c.b16 %v4030, %v4027
  %v4742 = vpack.c.b16 %v4031, %v4028
  %v4743 = vpack.c.b16 %v4035, %v4032
  %v4744 = vpack.c.b16 %v4036, %v4033
  %v4745 = vpack.c.b16 %v4037, %v4034
  %v4746 = vpack.c.b16 %v4041, %v4038
  %v4747 = vpack.c.b16 %v4042, %v4039
  %v4748 = vpack.c.b16 %v4043, %v4040
  %v4749 = vpack.c.b16 %v4047, %v4044
  %v4750 = vpack.c.b16 %v4048, %v4045
  %v4751 = vpack.c.b16 %v4049, %v4046
  %v4752 = vpack.c.b16 %v4053, %v4050
  %v4753 = vpack.c.b16 %v4054, %v4051
  %v4754 = vpack.c.b16 %v4055, %v4052
  %v4755 = vpack.c.b16 %v4059, %v4056
  %v4756 = vpack.c.b16 %v4060, %v4057
  %v4757 = vpack.c.b16 %v4061, %v4058
  %v4758 = vpack.c.b16 %v4065, %v4062
  %v4759 = vpack.c.b16 %v4066, %v4063
  %v4760 = vpack.c.b16 %v4067, %v4064
  %v4761 = vpack.c.b16 %v4071, %v4068
  %v4762 = vpack.c.b16 %v4072, %v4069
  %v4763 = vpack.c.b16 %v4073, %v4070
  %v4764 = vpack.c.b16 %v4077, %v4074
  %v4765 = vpack.c.b16 %v4078, %v4075
  %v4766 = vpack.c.b16 %v4079, %v4076
  %v4767 = vpack.c.b16 %v4083, %v4080
  %v4768 = vpack.c.b16 %v4084, %v4081
  %v4769 = vpack.c.b16 %v4085, %v4082
  %v4770 = vpack.c.b16 %v4089, %v4086
  %v4771 = vpack.c.b16 %v4090, %v4087
  %v4772 = vpack.c.b16 %v4091, %v4088
  %v4773 = vpack.c.b16 %v4095, %v4092
  %v4774 = vpack.c.b16 %v4096, %v4093
  %v4775 = vpack.c.b16 %v4097, %v4094
  %v4776 = vpack.c.b16 %v4101, %v4098
  %v4777 = vpack.c.b16 %v4102, %v4099
  %v4778 = vpack.c.b16 %v4103, %v4100
  %v4779 = vpack.c.b16 %v4107, %v4104
  %v4780 = vpack.c.b16 %v4108, %v4105
  %v4781 = vpack.c.b16 %v4109, %v4106
  %v4782 = vpack.c.b16 %v4113, %v4110
  %v4783 = vpack.c.b16 %v4114, %v4111
  %v4784 = vpack.c.b16 %v4115, %v4112
  %v4785 = vpack.c.b16 %v4119, %v4116
  %v4786 = vpack.c.b16 %v4120, %v4117
  %v4787 = vpack.c.b16 %v4121, %v4118
  %v4788 = vpack.c.b16 %v4125, %v4122
  %v4789 = vpack.c.b16 %v4126, %v4123
  %v4790 = vpack.c.b16 %v4127, %v4124
  %v4791 = vpack.c.b16 %v4131, %v4128
  %v4792 = vpack.c.b16 %v4132, %v4129
  %v4793 = vpack.c.b16 %v4133, %v4130
  %v4794 = vpack.c.b16 %v4137, %v4134
  %v4795 = vpack.c.b16 %v4138, %v4135
  %v4796 = vpack.c.b16 %v4139, %v4136
  %v4797 = vpack.c.b16 %v4143, %v4140
  %v4798 = vpack.c.b16 %v4144, %v4141
  %v4799 = vpack.c.b16 %v4145, %v4142
  %v4800 = vpack.c.b16 %v4149, %v4146
  %v4801 = vpack.c.b16 %v4150, %v4147
  %v4802 = vpack.c.b16 %v4151, %v4148
  %v4803 = vpack.c.b16 %v4155, %v4152
  %v4804 = vpack.c.b16 %v4156, %v4153
  %v4805 = vpack.c.b16 %v4157, %v4154
  %v4806 = vpack.c.b16 %v4161, %v4158
  %v4807 = vpack.c.b16 %v4162, %v4159
  %v4808 = vpack.c.b16 %v4163, %v4160
  %v4809 = vpack.c.b16 %v4167, %v4164
  %v4810 = vpack.c.b16 %v4168, %v4165
  %v4811 = vpack.c.b16 %v4169, %v4166
  %v4812 = vpack.c.b16 %v4173, %v4170
  %v4813 = vpack.c.b16 %v4174, %v4171
  %v4814 = vpack.c.b16 %v4175, %v4172
  %v4815 = vpack.c.b16 %v4179, %v4176
  %v4816 = vpack.c.b16 %v4180, %v4177
  %v4817 = vpack.c.b16 %v4181, %v4178
  %v4818 = vpack.c.b16 %v4185, %v4182
  %v4819 = vpack.c.b16 %v4186, %v4183
  %v4820 = vpack.c.b16 %v4187, %v4184
  %v4821 = vpack.c.b16 %v4191, %v4188
  %v4822 = vpack.c.b16 %v4192, %v4189
  %v4823 = vpack.c.b16 %v4193, %v4190
  %v4824 = vpack.c.b16 %v4197, %v4194
  %v4825 = vpack.c.b16 %v4198, %v4195
  %v4826 = vpack.c.b16 %v4199, %v4196
  %v4827 = vpack.c.b16 %v4203, %v4200
  %v4828 = vpack.c.b16 %v4204, %v4201
  %v4829 = vpack.c.b16 %v4205, %v4202
  %v4830 = vpack.c.b16 %v4209, %v4206
  %v4831 = vpack.c.b16 %v4210, %v4207
  %v4832 = vpack.c.b16 %v4211, %v4208
  %v4833 = vpack.c.b16 %v4215, %v4212
  %v4834 = vpack.c.b16 %v4216, %v4213
  %v4835 = vpack.c.b16 %v4217, %v4214
  %v4836 = vpack.c.b16 %v4221, %v4218
  %v4837 = vpack.c.b16 %v4222, %v4219
  %v4838 = vpack.c.b16 %v4223, %v4220
  %v4839 = vpack.c.b16 %v4227, %v4224
  %v4840 = vpack.c.b16 %v4228, %v4225
  %v4841 = vpack.c.b16 %v4229, %v4226
  %vm5454 = vcmask 523264
  %v5456 = vsel %vm5454, %v1356, 0
  %5458 = vmatprep.subr.bf16.mxu0 %v4231
  %5459 = vmatpush1.bf16.msra.mxu0 %v4230
  %5460 = vmatprep.subr.bf16.mxu0 %v4234
  %5461 = vmatpush1.bf16.msra.mxu0 %v4233
  %5462 = vmatprep.subr.bf16.mxu0 %v4237
  %5463 = vmatpush1.bf16.msra.mxu0 %v4236
  %5464 = vmatprep.subr.bf16.mxu0 %v4240
  %5465 = vmatpush1.bf16.msra.mxu0 %v4239
  %5466 = vmatprep.subr.bf16.mxu0 %v4243
  %5467 = vmatpush1.bf16.msra.mxu0 %v4242
  %5468 = vmatprep.subr.bf16.mxu0 %v4246
  %5469 = vmatpush1.bf16.msra.mxu0 %v4245
  %5470 = vmatprep.subr.bf16.mxu0 %v4249
  %5471 = vmatpush1.bf16.msra.mxu0 %v4248
  %5472 = vmatprep.subr.bf16.mxu0 %v4252
  %5473 = vmatpush1.bf16.msra.mxu0 %v4251
  %5474 = vmatprep.subr.bf16.mxu0 %v4255
  %5475 = vmatpush1.bf16.msra.mxu0 %v4254
  %5476 = vmatprep.subr.bf16.mxu0 %v4258
  %5477 = vmatpush1.bf16.msra.mxu0 %v4257
  %5478 = vmatprep.subr.bf16.mxu0 %v4261
  %5479 = vmatpush1.bf16.msra.mxu0 %v4260
  %5480 = vmatprep.subr.bf16.mxu0 %v4264
  %5481 = vmatpush1.bf16.msra.mxu0 %v4263
  %5482 = vmatprep.subr.bf16.mxu0 %v4267
  %5483 = vmatpush1.bf16.msra.mxu0 %v4266
  %5484 = vmatprep.subr.bf16.mxu0 %v4270
  %5485 = vmatpush1.bf16.msra.mxu0 %v4269
  %5486 = vmatprep.subr.bf16.mxu0 %v4273
  %5487 = vmatpush1.bf16.msra.mxu0 %v4272
  %5488 = vmatprep.subr.bf16.mxu0 %v4276
  %5489 = vmatpush1.bf16.msra.mxu0 %v4275
  %5490 = vmatprep.mubr.bf16.mxu0 %v1332
  %5491 = vmatmul.mubr.bf16.gmra.mrb[0].mxu0 %v1331
  %v5492 = vpop.f32.mrb[0].mxu0
  %v5493 = vadd.f32 %v2178, %v5492
  %v5494 = vpop.f32.mrb[0].mxu0
  %v5495 = vadd.f32 %v2182, %v5494
  %v5496 = vpop.f32.mrb[0].mxu0
  %v5497 = vpop.f32.mrb[0].mxu0
  %5498 = vdwg.mxu0
  %5499 = vmatprep.subr.bf16.mxu0 %v4279
  %5500 = vmatpush1.bf16.msra.mxu0 %v4278
  %5501 = vmatprep.subr.bf16.mxu0 %v4282
  %5502 = vmatpush1.bf16.msra.mxu0 %v4281
  %5503 = vmatprep.subr.bf16.mxu0 %v4285
  %5504 = vmatpush1.bf16.msra.mxu0 %v4284
  %5505 = vmatprep.subr.bf16.mxu0 %v4288
  %5506 = vmatpush1.bf16.msra.mxu0 %v4287
  %5507 = vmatprep.subr.bf16.mxu0 %v4291
  %5508 = vmatpush1.bf16.msra.mxu0 %v4290
  %5509 = vmatprep.subr.bf16.mxu0 %v4294
  %5510 = vmatpush1.bf16.msra.mxu0 %v4293
  %5511 = vmatprep.subr.bf16.mxu0 %v4297
  %5512 = vmatpush1.bf16.msra.mxu0 %v4296
  %5513 = vmatprep.subr.bf16.mxu0 %v4300
  %5514 = vmatpush1.bf16.msra.mxu0 %v4299
  %5515 = vmatprep.subr.bf16.mxu0 %v4303
  %5516 = vmatpush1.bf16.msra.mxu0 %v4302
  %5517 = vmatprep.subr.bf16.mxu0 %v4306
  %5518 = vmatpush1.bf16.msra.mxu0 %v4305
  %5519 = vmatprep.subr.bf16.mxu0 %v4309
  %5520 = vmatpush1.bf16.msra.mxu0 %v4308
  %5521 = vmatprep.subr.bf16.mxu0 %v4312
  %5522 = vmatpush1.bf16.msra.mxu0 %v4311
  %5523 = vmatprep.subr.bf16.mxu0 %v4315
  %5524 = vmatpush1.bf16.msra.mxu0 %v4314
  %5525 = vmatprep.subr.bf16.mxu0 %v4318
  %5526 = vmatpush1.bf16.msra.mxu0 %v4317
  %5527 = vmatprep.subr.bf16.mxu0 %v4321
  %5528 = vmatpush1.bf16.msra.mxu0 %v4320
  %5529 = vmatprep.subr.bf16.mxu0 %v4324
  %5530 = vmatpush1.bf16.msra.mxu0 %v4323
  %5531 = vmatprep.mubr.bf16.mxu0 %v1334
  %5532 = vmatmul.mubr.bf16.gmra.mrb[0].mxu0 %v1333
  %v5533 = vpop.f32.mrb[0].mxu0
  %v5534 = vadd.f32 %v5493, %v5533
  %v5535 = vpop.f32.mrb[0].mxu0
  %v5536 = vadd.f32 %v5495, %v5535
  %v5537 = vpop.f32.mrb[0].mxu0
  %v5538 = vpop.f32.mrb[0].mxu0
  %5539 = vdwg.mxu0
  %5540 = vmatprep.subr.bf16.mxu0 %v4327
  %5541 = vmatpush1.bf16.msra.mxu0 %v4326
  %5542 = vmatprep.subr.bf16.mxu0 %v4330
  %5543 = vmatpush1.bf16.msra.mxu0 %v4329
  %5544 = vmatprep.subr.bf16.mxu0 %v4333
  %5545 = vmatpush1.bf16.msra.mxu0 %v4332
  %5546 = vmatprep.subr.bf16.mxu0 %v4336
  %5547 = vmatpush1.bf16.msra.mxu0 %v4335
  %5548 = vmatprep.subr.bf16.mxu0 %v4339
  %5549 = vmatpush1.bf16.msra.mxu0 %v4338
  %5550 = vmatprep.subr.bf16.mxu0 %v4342
  %5551 = vmatpush1.bf16.msra.mxu0 %v4341
  %5552 = vmatprep.subr.bf16.mxu0 %v4345
  %5553 = vmatpush1.bf16.msra.mxu0 %v4344
  %5554 = vmatprep.subr.bf16.mxu0 %v4348
  %5555 = vmatpush1.bf16.msra.mxu0 %v4347
  %5556 = vmatprep.subr.bf16.mxu0 %v4351
  %5557 = vmatpush1.bf16.msra.mxu0 %v4350
  %5558 = vmatprep.subr.bf16.mxu0 %v4354
  %5559 = vmatpush1.bf16.msra.mxu0 %v4353
  %5560 = vmatprep.subr.bf16.mxu0 %v4357
  %5561 = vmatpush1.bf16.msra.mxu0 %v4356
  %5562 = vmatprep.subr.bf16.mxu0 %v4360
  %5563 = vmatpush1.bf16.msra.mxu0 %v4359
  %5564 = vmatprep.subr.bf16.mxu0 %v4363
  %5565 = vmatpush1.bf16.msra.mxu0 %v4362
  %5566 = vmatprep.subr.bf16.mxu0 %v4366
  %5567 = vmatpush1.bf16.msra.mxu0 %v4365
  %5568 = vmatprep.subr.bf16.mxu0 %v4369
  %5569 = vmatpush1.bf16.msra.mxu0 %v4368
  %5570 = vmatprep.subr.bf16.mxu0 %v4372
  %5571 = vmatpush1.bf16.msra.mxu0 %v4371
  %5572 = vmatprep.mubr.bf16.mxu0 %v1336
  %5573 = vmatmul.mubr.bf16.gmra.mrb[0].mxu0 %v1335
  %v5574 = vpop.f32.mrb[0].mxu0
  %v5575 = vadd.f32 %v5534, %v5574
  %v5576 = vpop.f32.mrb[0].mxu0
  %v5577 = vadd.f32 %v5536, %v5576
  %v5578 = vpop.f32.mrb[0].mxu0
  %v5579 = vpop.f32.mrb[0].mxu0
  %5580 = vdwg.mxu0
  %5581 = vmatprep.subr.bf16.mxu0 %v4375
  %5582 = vmatpush1.bf16.msra.mxu0 %v4374
  %5583 = vmatprep.subr.bf16.mxu0 %v4378
  %5584 = vmatpush1.bf16.msra.mxu0 %v4377
  %5585 = vmatprep.subr.bf16.mxu0 %v4381
  %5586 = vmatpush1.bf16.msra.mxu0 %v4380
  %5587 = vmatprep.subr.bf16.mxu0 %v4384
  %5588 = vmatpush1.bf16.msra.mxu0 %v4383
  %5589 = vmatprep.subr.bf16.mxu0 %v4387
  %5590 = vmatpush1.bf16.msra.mxu0 %v4386
  %5591 = vmatprep.subr.bf16.mxu0 %v4390
  %5592 = vmatpush1.bf16.msra.mxu0 %v4389
  %5593 = vmatprep.subr.bf16.mxu0 %v4393
  %5594 = vmatpush1.bf16.msra.mxu0 %v4392
  %5595 = vmatprep.subr.bf16.mxu0 %v4396
  %5596 = vmatpush1.bf16.msra.mxu0 %v4395
  %5597 = vmatprep.subr.bf16.mxu0 %v4399
  %5598 = vmatpush1.bf16.msra.mxu0 %v4398
  %5599 = vmatprep.subr.bf16.mxu0 %v4402
  %5600 = vmatpush1.bf16.msra.mxu0 %v4401
  %5601 = vmatprep.subr.bf16.mxu0 %v4405
  %5602 = vmatpush1.bf16.msra.mxu0 %v4404
  %5603 = vmatprep.subr.bf16.mxu0 %v4408
  %5604 = vmatpush1.bf16.msra.mxu0 %v4407
  %5605 = vmatprep.subr.bf16.mxu0 %v4411
  %5606 = vmatpush1.bf16.msra.mxu0 %v4410
  %5607 = vmatprep.subr.bf16.mxu0 %v4414
  %5608 = vmatpush1.bf16.msra.mxu0 %v4413
  %5609 = vmatprep.subr.bf16.mxu0 %v4417
  %5610 = vmatpush1.bf16.msra.mxu0 %v4416
  %5611 = vmatprep.subr.bf16.mxu0 %v4420
  %5612 = vmatpush1.bf16.msra.mxu0 %v4419
  %5613 = vmatprep.mubr.bf16.mxu0 %v1338
  %5614 = vmatmul.mubr.bf16.gmra.mrb[0].mxu0 %v1337
  %v5615 = vpop.f32.mrb[0].mxu0
  %v5616 = vadd.f32 %v5575, %v5615
  %v5617 = vpop.f32.mrb[0].mxu0
  %v5618 = vadd.f32 %v5577, %v5617
  %v5619 = vpop.f32.mrb[0].mxu0
  %v5620 = vpop.f32.mrb[0].mxu0
  %5621 = vdwg.mxu0
  %5622 = vmatprep.subr.bf16.mxu0 %v4423
  %5623 = vmatpush1.bf16.msra.mxu0 %v4422
  %5624 = vmatprep.subr.bf16.mxu0 %v4426
  %5625 = vmatpush1.bf16.msra.mxu0 %v4425
  %5626 = vmatprep.subr.bf16.mxu0 %v4429
  %5627 = vmatpush1.bf16.msra.mxu0 %v4428
  %5628 = vmatprep.subr.bf16.mxu0 %v4432
  %5629 = vmatpush1.bf16.msra.mxu0 %v4431
  %5630 = vmatprep.subr.bf16.mxu0 %v4435
  %5631 = vmatpush1.bf16.msra.mxu0 %v4434
  %5632 = vmatprep.subr.bf16.mxu0 %v4438
  %5633 = vmatpush1.bf16.msra.mxu0 %v4437
  %5634 = vmatprep.subr.bf16.mxu0 %v4441
  %5635 = vmatpush1.bf16.msra.mxu0 %v4440
  %5636 = vmatprep.subr.bf16.mxu0 %v4444
  %5637 = vmatpush1.bf16.msra.mxu0 %v4443
  %5638 = vmatprep.subr.bf16.mxu0 %v4447
  %5639 = vmatpush1.bf16.msra.mxu0 %v4446
  %5640 = vmatprep.subr.bf16.mxu0 %v4450
  %5641 = vmatpush1.bf16.msra.mxu0 %v4449
  %5642 = vmatprep.subr.bf16.mxu0 %v4453
  %5643 = vmatpush1.bf16.msra.mxu0 %v4452
  %5644 = vmatprep.subr.bf16.mxu0 %v4456
  %5645 = vmatpush1.bf16.msra.mxu0 %v4455
  %5646 = vmatprep.subr.bf16.mxu0 %v4459
  %5647 = vmatpush1.bf16.msra.mxu0 %v4458
  %5648 = vmatprep.subr.bf16.mxu0 %v4462
  %5649 = vmatpush1.bf16.msra.mxu0 %v4461
  %5650 = vmatprep.subr.bf16.mxu0 %v4465
  %5651 = vmatpush1.bf16.msra.mxu0 %v4464
  %5652 = vmatprep.subr.bf16.mxu0 %v4468
  %5653 = vmatpush1.bf16.msra.mxu0 %v4467
  %5654 = vmatprep.mubr.bf16.mxu0 %v1340
  %5655 = vmatmul.mubr.bf16.gmra.mrb[0].mxu0 %v1339
  %v5656 = vpop.f32.mrb[0].mxu0
  %v5657 = vadd.f32 %v5616, %v5656
  %v5658 = vpop.f32.mrb[0].mxu0
  %v5659 = vadd.f32 %v5618, %v5658
  %v5660 = vpop.f32.mrb[0].mxu0
  %v5661 = vpop.f32.mrb[0].mxu0
  %5662 = vdwg.mxu0
  %5663 = vmatprep.subr.bf16.mxu0 %v4471
  %5664 = vmatpush1.bf16.msra.mxu0 %v4470
  %5665 = vmatprep.subr.bf16.mxu0 %v4474
  %5666 = vmatpush1.bf16.msra.mxu0 %v4473
  %5667 = vmatprep.subr.bf16.mxu0 %v4477
  %5668 = vmatpush1.bf16.msra.mxu0 %v4476
  %5669 = vmatprep.subr.bf16.mxu0 %v4480
  %5670 = vmatpush1.bf16.msra.mxu0 %v4479
  %5671 = vmatprep.subr.bf16.mxu0 %v4483
  %5672 = vmatpush1.bf16.msra.mxu0 %v4482
  %5673 = vmatprep.subr.bf16.mxu0 %v4486
  %5674 = vmatpush1.bf16.msra.mxu0 %v4485
  %5675 = vmatprep.subr.bf16.mxu0 %v4489
  %5676 = vmatpush1.bf16.msra.mxu0 %v4488
  %5677 = vmatprep.subr.bf16.mxu0 %v4492
  %5678 = vmatpush1.bf16.msra.mxu0 %v4491
  %5679 = vmatprep.subr.bf16.mxu0 %v4495
  %5680 = vmatpush1.bf16.msra.mxu0 %v4494
  %5681 = vmatprep.subr.bf16.mxu0 %v4498
  %5682 = vmatpush1.bf16.msra.mxu0 %v4497
  %5683 = vmatprep.subr.bf16.mxu0 %v4501
  %5684 = vmatpush1.bf16.msra.mxu0 %v4500
  %5685 = vmatprep.subr.bf16.mxu0 %v4504
  %5686 = vmatpush1.bf16.msra.mxu0 %v4503
  %5687 = vmatprep.subr.bf16.mxu0 %v4507
  %5688 = vmatpush1.bf16.msra.mxu0 %v4506
  %5689 = vmatprep.subr.bf16.mxu0 %v4510
  %5690 = vmatpush1.bf16.msra.mxu0 %v4509
  %5691 = vmatprep.subr.bf16.mxu0 %v4513
  %5692 = vmatpush1.bf16.msra.mxu0 %v4512
  %5693 = vmatprep.subr.bf16.mxu0 %v4516
  %5694 = vmatpush1.bf16.msra.mxu0 %v4515
  %5695 = vmatprep.mubr.bf16.mxu0 %v1342
  %5696 = vmatmul.mubr.bf16.gmra.mrb[0].mxu0 %v1341
  %v5697 = vpop.f32.mrb[0].mxu0
  %v5698 = vadd.f32 %v5657, %v5697
  %v5699 = vpop.f32.mrb[0].mxu0
  %v5700 = vadd.f32 %v5659, %v5699
  %v5701 = vpop.f32.mrb[0].mxu0
  %v5702 = vpop.f32.mrb[0].mxu0
  %5703 = vdwg.mxu0
  %5704 = vmatprep.subr.bf16.mxu0 %v4519
  %5705 = vmatpush1.bf16.msra.mxu0 %v4518
  %5706 = vmatprep.subr.bf16.mxu0 %v4522
  %5707 = vmatpush1.bf16.msra.mxu0 %v4521
  %5708 = vmatprep.subr.bf16.mxu0 %v4525
  %5709 = vmatpush1.bf16.msra.mxu0 %v4524
  %5710 = vmatprep.subr.bf16.mxu0 %v4528
  %5711 = vmatpush1.bf16.msra.mxu0 %v4527
  %5712 = vmatprep.subr.bf16.mxu0 %v4531
  %5713 = vmatpush1.bf16.msra.mxu0 %v4530
  %5714 = vmatprep.subr.bf16.mxu0 %v4534
  %5715 = vmatpush1.bf16.msra.mxu0 %v4533
  %5716 = vmatprep.subr.bf16.mxu0 %v4537
  %5717 = vmatpush1.bf16.msra.mxu0 %v4536
  %5718 = vmatprep.subr.bf16.mxu0 %v4540
  %5719 = vmatpush1.bf16.msra.mxu0 %v4539
  %5720 = vmatprep.subr.bf16.mxu0 %v4543
  %5721 = vmatpush1.bf16.msra.mxu0 %v4542
  %5722 = vmatprep.subr.bf16.mxu0 %v4546
  %5723 = vmatpush1.bf16.msra.mxu0 %v4545
  %5724 = vmatprep.subr.bf16.mxu0 %v4549
  %5725 = vmatpush1.bf16.msra.mxu0 %v4548
  %5726 = vmatprep.subr.bf16.mxu0 %v4552
  %5727 = vmatpush1.bf16.msra.mxu0 %v4551
  %5728 = vmatprep.subr.bf16.mxu0 %v4555
  %5729 = vmatpush1.bf16.msra.mxu0 %v4554
  %5730 = vmatprep.subr.bf16.mxu0 %v4558
  %5731 = vmatpush1.bf16.msra.mxu0 %v4557
  %5732 = vmatprep.subr.bf16.mxu0 %v4561
  %5733 = vmatpush1.bf16.msra.mxu0 %v4560
  %5734 = vmatprep.subr.bf16.mxu0 %v4564
  %5735 = vmatpush1.bf16.msra.mxu0 %v4563
  %5736 = vmatprep.mubr.bf16.mxu0 %v1344
  %5737 = vmatmul.mubr.bf16.gmra.mrb[0].mxu0 %v1343
  %v5738 = vpop.f32.mrb[0].mxu0
  %v5739 = vadd.f32 %v5698, %v5738
  %v5740 = vpop.f32.mrb[0].mxu0
  %v5741 = vadd.f32 %v5700, %v5740
  %v5742 = vpop.f32.mrb[0].mxu0
  %v5743 = vpop.f32.mrb[0].mxu0
  %5744 = vdwg.mxu0
  %5745 = vmatprep.subr.bf16.mxu0 %v4567
  %5746 = vmatpush1.bf16.msra.mxu0 %v4566
  %5747 = vmatprep.subr.bf16.mxu0 %v4570
  %5748 = vmatpush1.bf16.msra.mxu0 %v4569
  %5749 = vmatprep.subr.bf16.mxu0 %v4573
  %5750 = vmatpush1.bf16.msra.mxu0 %v4572
  %5751 = vmatprep.subr.bf16.mxu0 %v4576
  %5752 = vmatpush1.bf16.msra.mxu0 %v4575
  %5753 = vmatprep.subr.bf16.mxu0 %v4579
  %5754 = vmatpush1.bf16.msra.mxu0 %v4578
  %5755 = vmatprep.subr.bf16.mxu0 %v4582
  %5756 = vmatpush1.bf16.msra.mxu0 %v4581
  %5757 = vmatprep.subr.bf16.mxu0 %v4585
  %5758 = vmatpush1.bf16.msra.mxu0 %v4584
  %5759 = vmatprep.subr.bf16.mxu0 %v4588
  %5760 = vmatpush1.bf16.msra.mxu0 %v4587
  %5761 = vmatprep.subr.bf16.mxu0 %v4591
  %5762 = vmatpush1.bf16.msra.mxu0 %v4590
  %5763 = vmatprep.subr.bf16.mxu0 %v4594
  %5764 = vmatpush1.bf16.msra.mxu0 %v4593
  %5765 = vmatprep.subr.bf16.mxu0 %v4597
  %5766 = vmatpush1.bf16.msra.mxu0 %v4596
  %5767 = vmatprep.subr.bf16.mxu0 %v4600
  %5768 = vmatpush1.bf16.msra.mxu0 %v4599
  %5769 = vmatprep.subr.bf16.mxu0 %v4603
  %5770 = vmatpush1.bf16.msra.mxu0 %v4602
  %5771 = vmatprep.subr.bf16.mxu0 %v4606
  %5772 = vmatpush1.bf16.msra.mxu0 %v4605
  %5773 = vmatprep.subr.bf16.mxu0 %v4609
  %5774 = vmatpush1.bf16.msra.mxu0 %v4608
  %5775 = vmatprep.subr.bf16.mxu0 %v4612
  %5776 = vmatpush1.bf16.msra.mxu0 %v4611
  %5777 = vmatprep.mubr.bf16.mxu0 %v1346
  %5778 = vmatmul.mubr.bf16.gmra.mrb[0].mxu0 %v1345
  %v5779 = vpop.f32.mrb[0].mxu0
  %v5780 = vadd.f32 %v5739, %v5779
  %v5781 = vpop.f32.mrb[0].mxu0
  %v5782 = vadd.f32 %v5741, %v5781
  %v5783 = vpop.f32.mrb[0].mxu0
  %v5784 = vpop.f32.mrb[0].mxu0
  %5785 = vdwg.mxu0
  %5786 = vmatprep.subr.bf16.mxu0 %v4615
  %5787 = vmatpush1.bf16.msra.mxu0 %v4614
  %5788 = vmatprep.subr.bf16.mxu0 %v4618
  %5789 = vmatpush1.bf16.msra.mxu0 %v4617
  %5790 = vmatprep.subr.bf16.mxu0 %v4621
  %5791 = vmatpush1.bf16.msra.mxu0 %v4620
  %5792 = vmatprep.subr.bf16.mxu0 %v4624
  %5793 = vmatpush1.bf16.msra.mxu0 %v4623
  %5794 = vmatprep.subr.bf16.mxu0 %v4627
  %5795 = vmatpush1.bf16.msra.mxu0 %v4626
  %5796 = vmatprep.subr.bf16.mxu0 %v4630
  %5797 = vmatpush1.bf16.msra.mxu0 %v4629
  %5798 = vmatprep.subr.bf16.mxu0 %v4633
  %5799 = vmatpush1.bf16.msra.mxu0 %v4632
  %5800 = vmatprep.subr.bf16.mxu0 %v4636
  %5801 = vmatpush1.bf16.msra.mxu0 %v4635
  %5802 = vmatprep.subr.bf16.mxu0 %v4639
  %5803 = vmatpush1.bf16.msra.mxu0 %v4638
  %5804 = vmatprep.subr.bf16.mxu0 %v4642
  %5805 = vmatpush1.bf16.msra.mxu0 %v4641
  %5806 = vmatprep.subr.bf16.mxu0 %v4645
  %5807 = vmatpush1.bf16.msra.mxu0 %v4644
  %5808 = vmatprep.subr.bf16.mxu0 %v4648
  %5809 = vmatpush1.bf16.msra.mxu0 %v4647
  %5810 = vmatprep.subr.bf16.mxu0 %v4651
  %5811 = vmatpush1.bf16.msra.mxu0 %v4650
  %5812 = vmatprep.subr.bf16.mxu0 %v4654
  %5813 = vmatpush1.bf16.msra.mxu0 %v4653
  %5814 = vmatprep.subr.bf16.mxu0 %v4657
  %5815 = vmatpush1.bf16.msra.mxu0 %v4656
  %5816 = vmatprep.subr.bf16.mxu0 %v4660
  %5817 = vmatpush1.bf16.msra.mxu0 %v4659
  %5818 = vmatprep.mubr.bf16.mxu0 %v1348
  %5819 = vmatmul.mubr.bf16.gmra.mrb[0].mxu0 %v1347
  %v5820 = vpop.f32.mrb[0].mxu0
  %v5821 = vadd.f32 %v5780, %v5820
  %v5822 = vpop.f32.mrb[0].mxu0
  %v5823 = vadd.f32 %v5782, %v5822
  %v5824 = vpop.f32.mrb[0].mxu0
  %v5825 = vpop.f32.mrb[0].mxu0
  %5826 = vdwg.mxu0
  %5827 = vmatprep.subr.bf16.mxu0 %v4663
  %5828 = vmatpush1.bf16.msra.mxu0 %v4662
  %5829 = vmatprep.subr.bf16.mxu0 %v4666
  %5830 = vmatpush1.bf16.msra.mxu0 %v4665
  %5831 = vmatprep.subr.bf16.mxu0 %v4669
  %5832 = vmatpush1.bf16.msra.mxu0 %v4668
  %5833 = vmatprep.subr.bf16.mxu0 %v4672
  %5834 = vmatpush1.bf16.msra.mxu0 %v4671
  %5835 = vmatprep.subr.bf16.mxu0 %v4675
  %5836 = vmatpush1.bf16.msra.mxu0 %v4674
  %5837 = vmatprep.subr.bf16.mxu0 %v4678
  %5838 = vmatpush1.bf16.msra.mxu0 %v4677
  %5839 = vmatprep.subr.bf16.mxu0 %v4681
  %5840 = vmatpush1.bf16.msra.mxu0 %v4680
  %5841 = vmatprep.subr.bf16.mxu0 %v4684
  %5842 = vmatpush1.bf16.msra.mxu0 %v4683
  %5843 = vmatprep.subr.bf16.mxu0 %v4687
  %5844 = vmatpush1.bf16.msra.mxu0 %v4686
  %5845 = vmatprep.subr.bf16.mxu0 %v4690
  %5846 = vmatpush1.bf16.msra.mxu0 %v4689
  %5847 = vmatprep.subr.bf16.mxu0 %v4693
  %5848 = vmatpush1.bf16.msra.mxu0 %v4692
  %5849 = vmatprep.subr.bf16.mxu0 %v4696
  %5850 = vmatpush1.bf16.msra.mxu0 %v4695
  %5851 = vmatprep.subr.bf16.mxu0 %v4699
  %5852 = vmatpush1.bf16.msra.mxu0 %v4698
  %5853 = vmatprep.subr.bf16.mxu0 %v4702
  %5854 = vmatpush1.bf16.msra.mxu0 %v4701
  %5855 = vmatprep.subr.bf16.mxu0 %v4705
  %5856 = vmatpush1.bf16.msra.mxu0 %v4704
  %5857 = vmatprep.subr.bf16.mxu0 %v4708
  %5858 = vmatpush1.bf16.msra.mxu0 %v4707
  %5859 = vmatprep.mubr.bf16.mxu0 %v1350
  %5860 = vmatmul.mubr.bf16.gmra.mrb[0].mxu0 %v1349
  %v5861 = vpop.f32.mrb[0].mxu0
  %v5862 = vadd.f32 %v5821, %v5861
  %v5863 = vpop.f32.mrb[0].mxu0
  %v5864 = vadd.f32 %v5823, %v5863
  %v5865 = vpop.f32.mrb[0].mxu0
  %v5866 = vpop.f32.mrb[0].mxu0
  %5867 = vdwg.mxu0
  %5868 = vmatprep.subr.bf16.mxu0 %v4711
  %5869 = vmatpush1.bf16.msra.mxu0 %v4710
  %5870 = vmatprep.subr.bf16.mxu0 %v4714
  %5871 = vmatpush1.bf16.msra.mxu0 %v4713
  %5872 = vmatprep.subr.bf16.mxu0 %v4717
  %5873 = vmatpush1.bf16.msra.mxu0 %v4716
  %5874 = vmatprep.subr.bf16.mxu0 %v4720
  %5875 = vmatpush1.bf16.msra.mxu0 %v4719
  %5876 = vmatprep.subr.bf16.mxu0 %v4723
  %5877 = vmatpush1.bf16.msra.mxu0 %v4722
  %5878 = vmatprep.subr.bf16.mxu0 %v4726
  %5879 = vmatpush1.bf16.msra.mxu0 %v4725
  %5880 = vmatprep.subr.bf16.mxu0 %v4729
  %5881 = vmatpush1.bf16.msra.mxu0 %v4728
  %5882 = vmatprep.subr.bf16.mxu0 %v4732
  %5883 = vmatpush1.bf16.msra.mxu0 %v4731
  %5884 = vmatprep.subr.bf16.mxu0 %v4735
  %5885 = vmatpush1.bf16.msra.mxu0 %v4734
  %5886 = vmatprep.subr.bf16.mxu0 %v4738
  %5887 = vmatpush1.bf16.msra.mxu0 %v4737
  %5888 = vmatprep.subr.bf16.mxu0 %v4741
  %5889 = vmatpush1.bf16.msra.mxu0 %v4740
  %5890 = vmatprep.subr.bf16.mxu0 %v4744
  %5891 = vmatpush1.bf16.msra.mxu0 %v4743
  %5892 = vmatprep.subr.bf16.mxu0 %v4747
  %5893 = vmatpush1.bf16.msra.mxu0 %v4746
  %5894 = vmatprep.subr.bf16.mxu0 %v4750
  %5895 = vmatpush1.bf16.msra.mxu0 %v4749
  %5896 = vmatprep.subr.bf16.mxu0 %v4753
  %5897 = vmatpush1.bf16.msra.mxu0 %v4752
  %5898 = vmatprep.subr.bf16.mxu0 %v4756
  %5899 = vmatpush1.bf16.msra.mxu0 %v4755
  %5900 = vmatprep.mubr.bf16.mxu0 %v1352
  %5901 = vmatmul.mubr.bf16.gmra.mrb[0].mxu0 %v1351
  %v5902 = vpop.f32.mrb[0].mxu0
  %v5903 = vadd.f32 %v5862, %v5902
  %v5904 = vpop.f32.mrb[0].mxu0
  %v5905 = vadd.f32 %v5864, %v5904
  %v5906 = vpop.f32.mrb[0].mxu0
  %v5907 = vpop.f32.mrb[0].mxu0
  %5908 = vdwg.mxu0
  %5909 = vmatprep.subr.bf16.mxu0 %v4759
  %5910 = vmatpush1.bf16.msra.mxu0 %v4758
  %5911 = vmatprep.subr.bf16.mxu0 %v4762
  %5912 = vmatpush1.bf16.msra.mxu0 %v4761
  %5913 = vmatprep.subr.bf16.mxu0 %v4765
  %5914 = vmatpush1.bf16.msra.mxu0 %v4764
  %5915 = vmatprep.subr.bf16.mxu0 %v4768
  %5916 = vmatpush1.bf16.msra.mxu0 %v4767
  %5917 = vmatprep.subr.bf16.mxu0 %v4771
  %5918 = vmatpush1.bf16.msra.mxu0 %v4770
  %5919 = vmatprep.subr.bf16.mxu0 %v4774
  %5920 = vmatpush1.bf16.msra.mxu0 %v4773
  %5921 = vmatprep.subr.bf16.mxu0 %v4777
  %5922 = vmatpush1.bf16.msra.mxu0 %v4776
  %5923 = vmatprep.subr.bf16.mxu0 %v4780
  %5924 = vmatpush1.bf16.msra.mxu0 %v4779
  %5925 = vmatprep.subr.bf16.mxu0 %v4783
  %5926 = vmatpush1.bf16.msra.mxu0 %v4782
  %5927 = vmatprep.subr.bf16.mxu0 %v4786
  %5928 = vmatpush1.bf16.msra.mxu0 %v4785
  %5929 = vmatprep.subr.bf16.mxu0 %v4789
  %5930 = vmatpush1.bf16.msra.mxu0 %v4788
  %5931 = vmatprep.subr.bf16.mxu0 %v4792
  %5932 = vmatpush1.bf16.msra.mxu0 %v4791
  %5933 = vmatprep.subr.bf16.mxu0 %v4795
  %5934 = vmatpush1.bf16.msra.mxu0 %v4794
  %5935 = vmatprep.subr.bf16.mxu0 %v4798
  %5936 = vmatpush1.bf16.msra.mxu0 %v4797
  %5937 = vmatprep.subr.bf16.mxu0 %v4801
  %5938 = vmatpush1.bf16.msra.mxu0 %v4800
  %5939 = vmatprep.subr.bf16.mxu0 %v4804
  %5940 = vmatpush1.bf16.msra.mxu0 %v4803
  %5941 = vmatprep.mubr.bf16.mxu0 %v1354
  %5942 = vmatmul.mubr.bf16.gmra.mrb[0].mxu0 %v1353
  %v5943 = vpop.f32.mrb[0].mxu0
  %v5944 = vadd.f32 %v5903, %v5943
  %v5945 = vpop.f32.mrb[0].mxu0
  %v5946 = vadd.f32 %v5905, %v5945
  %v5947 = vpop.f32.mrb[0].mxu0
  %v5948 = vpop.f32.mrb[0].mxu0
  %5949 = vdwg.mxu0
  %5950 = vmatprep.subr.bf16.mxu0 %v4807
  %5951 = vmatpush1.bf16.msra.mxu0 %v4806
  %5952 = vmatprep.subr.bf16.mxu0 %v4810
  %5953 = vmatpush1.bf16.msra.mxu0 %v4809
  %5954 = vmatprep.subr.bf16.mxu0 %v4813
  %5955 = vmatpush1.bf16.msra.mxu0 %v4812
  %5956 = vmatprep.subr.bf16.mxu0 %v4816
  %5957 = vmatpush1.bf16.msra.mxu0 %v4815
  %5958 = vmatprep.subr.bf16.mxu0 %v4819
  %5959 = vmatpush1.bf16.msra.mxu0 %v4818
  %5960 = vmatprep.subr.bf16.mxu0 %v4822
  %5961 = vmatpush1.bf16.msra.mxu0 %v4821
  %5962 = vmatprep.subr.bf16.mxu0 %v4825
  %5963 = vmatpush1.bf16.msra.mxu0 %v4824
  %5964 = vmatprep.subr.bf16.mxu0 %v4828
  %5965 = vmatpush1.bf16.msra.mxu0 %v4827
  %5966 = vmatprep.subr.bf16.mxu0 %v4831
  %5967 = vmatpush1.bf16.msra.mxu0 %v4830
  %5968 = vmatprep.subr.bf16.mxu0 %v4834
  %5969 = vmatpush1.bf16.msra.mxu0 %v4833
  %5970 = vmatprep.subr.bf16.mxu0 %v4837
  %5971 = vmatpush1.bf16.msra.mxu0 %v4836
  %5972 = vmatprep.subr.bf16.mxu0 %v4840
  %5973 = vmatpush1.bf16.msra.mxu0 %v4839
  %5974 = vmatprep.subr.bf16.mxu0 0
  %5975 = vmatpush1.bf16.msra.mxu0 0
  %5976 = vmatprep.subr.bf16.mxu0 0
  %5977 = vmatpush1.bf16.msra.mxu0 0
  %5978 = vmatprep.subr.bf16.mxu0 0
  %5979 = vmatpush1.bf16.msra.mxu0 0
  %5980 = vmatprep.subr.bf16.mxu0 0
  %5981 = vmatpush1.bf16.msra.mxu0 0
  %5982 = vmatprep.mubr.bf16.mxu0 %v5456
  %5983 = vmatmul.mubr.bf16.gmra.mrb[0].mxu0 %v1355
  %v5984 = vpop.f32.mrb[0].mxu0
  %v5985 = vadd.f32 %v5944, %v5984
  %v5986 = vpop.f32.mrb[0].mxu0
  %v5987 = vadd.f32 %v5946, %v5986
  %v5988 = vpop.f32.mrb[0].mxu0
  %v5989 = vpop.f32.mrb[0].mxu0
  %5990 = vdwg.mxu0
  %5991 = vmatprep.subr.bf16.mxu0 0
  %5992 = vmatpush1.bf16.msra.mxu0 %v4232
  %5993 = vmatprep.subr.bf16.mxu0 0
  %5994 = vmatpush1.bf16.msra.mxu0 %v4235
  %5995 = vmatprep.subr.bf16.mxu0 0
  %5996 = vmatpush1.bf16.msra.mxu0 %v4238
  %5997 = vmatprep.subr.bf16.mxu0 0
  %5998 = vmatpush1.bf16.msra.mxu0 %v4241
  %5999 = vmatprep.subr.bf16.mxu0 0
  %6000 = vmatpush1.bf16.msra.mxu0 %v4244
  %6001 = vmatprep.subr.bf16.mxu0 0
  %6002 = vmatpush1.bf16.msra.mxu0 %v4247
  %6003 = vmatprep.subr.bf16.mxu0 0
  %6004 = vmatpush1.bf16.msra.mxu0 %v4250
  %6005 = vmatprep.subr.bf16.mxu0 0
  %6006 = vmatpush1.bf16.msra.mxu0 %v4253
  %6007 = vmatprep.subr.bf16.mxu0 0
  %6008 = vmatpush1.bf16.msra.mxu0 %v4256
  %6009 = vmatprep.subr.bf16.mxu0 0
  %6010 = vmatpush1.bf16.msra.mxu0 %v4259
  %6011 = vmatprep.subr.bf16.mxu0 0
  %6012 = vmatpush1.bf16.msra.mxu0 %v4262
  %6013 = vmatprep.subr.bf16.mxu0 0
  %6014 = vmatpush1.bf16.msra.mxu0 %v4265
  %6015 = vmatprep.subr.bf16.mxu0 0
  %6016 = vmatpush1.bf16.msra.mxu0 %v4268
  %6017 = vmatprep.subr.bf16.mxu0 0
  %6018 = vmatpush1.bf16.msra.mxu0 %v4271
  %6019 = vmatprep.subr.bf16.mxu0 0
  %6020 = vmatpush1.bf16.msra.mxu0 %v4274
  %6021 = vmatprep.subr.bf16.mxu0 0
  %6022 = vmatpush1.bf16.msra.mxu0 %v4277
  %6023 = vmatprep.mubr.bf16.mxu0 %v1332
  %6024 = vmatmul.mubr.bf16.gmra.mrb[0].mxu0 %v1331
  %v6025 = vpop.f32.mrb[0].mxu0
  %v6026 = vadd.f32 %v2186, %v6025
  %v6027 = vpop.f32.mrb[0].mxu0
  %v6028 = vpop.f32.mrb[0].mxu0
  %v6029 = vpop.f32.mrb[0].mxu0
  %6030 = vdwg.mxu0
  %6031 = vmatprep.subr.bf16.mxu0 0
  %6032 = vmatpush1.bf16.msra.mxu0 %v4280
  %6033 = vmatprep.subr.bf16.mxu0 0
  %6034 = vmatpush1.bf16.msra.mxu0 %v4283
  %6035 = vmatprep.subr.bf16.mxu0 0
  %6036 = vmatpush1.bf16.msra.mxu0 %v4286
  %6037 = vmatprep.subr.bf16.mxu0 0
  %6038 = vmatpush1.bf16.msra.mxu0 %v4289
  %6039 = vmatprep.subr.bf16.mxu0 0
  %6040 = vmatpush1.bf16.msra.mxu0 %v4292
  %6041 = vmatprep.subr.bf16.mxu0 0
  %6042 = vmatpush1.bf16.msra.mxu0 %v4295
  %6043 = vmatprep.subr.bf16.mxu0 0
  %6044 = vmatpush1.bf16.msra.mxu0 %v4298
  %6045 = vmatprep.subr.bf16.mxu0 0
  %6046 = vmatpush1.bf16.msra.mxu0 %v4301
  %6047 = vmatprep.subr.bf16.mxu0 0
  %6048 = vmatpush1.bf16.msra.mxu0 %v4304
  %6049 = vmatprep.subr.bf16.mxu0 0
  %6050 = vmatpush1.bf16.msra.mxu0 %v4307
  %6051 = vmatprep.subr.bf16.mxu0 0
  %6052 = vmatpush1.bf16.msra.mxu0 %v4310
  %6053 = vmatprep.subr.bf16.mxu0 0
  %6054 = vmatpush1.bf16.msra.mxu0 %v4313
  %6055 = vmatprep.subr.bf16.mxu0 0
  %6056 = vmatpush1.bf16.msra.mxu0 %v4316
  %6057 = vmatprep.subr.bf16.mxu0 0
  %6058 = vmatpush1.bf16.msra.mxu0 %v4319
  %6059 = vmatprep.subr.bf16.mxu0 0
  %6060 = vmatpush1.bf16.msra.mxu0 %v4322
  %6061 = vmatprep.subr.bf16.mxu0 0
  %6062 = vmatpush1.bf16.msra.mxu0 %v4325
  %6063 = vmatprep.mubr.bf16.mxu0 %v1334
  %6064 = vmatmul.mubr.bf16.gmra.mrb[0].mxu0 %v1333
  %v6065 = vpop.f32.mrb[0].mxu0
  %v6066 = vadd.f32 %v6026, %v6065
  %v6067 = vpop.f32.mrb[0].mxu0
  %v6068 = vpop.f32.mrb[0].mxu0
  %v6069 = vpop.f32.mrb[0].mxu0
  %6070 = vdwg.mxu0
  %6071 = vmatprep.subr.bf16.mxu0 0
  %6072 = vmatpush1.bf16.msra.mxu0 %v4328
  %6073 = vmatprep.subr.bf16.mxu0 0
  %6074 = vmatpush1.bf16.msra.mxu0 %v4331
  %6075 = vmatprep.subr.bf16.mxu0 0
  %6076 = vmatpush1.bf16.msra.mxu0 %v4334
  %6077 = vmatprep.subr.bf16.mxu0 0
  %6078 = vmatpush1.bf16.msra.mxu0 %v4337
  %6079 = vmatprep.subr.bf16.mxu0 0
  %6080 = vmatpush1.bf16.msra.mxu0 %v4340
  %6081 = vmatprep.subr.bf16.mxu0 0
  %6082 = vmatpush1.bf16.msra.mxu0 %v4343
  %6083 = vmatprep.subr.bf16.mxu0 0
  %6084 = vmatpush1.bf16.msra.mxu0 %v4346
  %6085 = vmatprep.subr.bf16.mxu0 0
  %6086 = vmatpush1.bf16.msra.mxu0 %v4349
  %6087 = vmatprep.subr.bf16.mxu0 0
  %6088 = vmatpush1.bf16.msra.mxu0 %v4352
  %6089 = vmatprep.subr.bf16.mxu0 0
  %6090 = vmatpush1.bf16.msra.mxu0 %v4355
  %6091 = vmatprep.subr.bf16.mxu0 0
  %6092 = vmatpush1.bf16.msra.mxu0 %v4358
  %6093 = vmatprep.subr.bf16.mxu0 0
  %6094 = vmatpush1.bf16.msra.mxu0 %v4361
  %6095 = vmatprep.subr.bf16.mxu0 0
  %6096 = vmatpush1.bf16.msra.mxu0 %v4364
  %6097 = vmatprep.subr.bf16.mxu0 0
  %6098 = vmatpush1.bf16.msra.mxu0 %v4367
  %6099 = vmatprep.subr.bf16.mxu0 0
  %6100 = vmatpush1.bf16.msra.mxu0 %v4370
  %6101 = vmatprep.subr.bf16.mxu0 0
  %6102 = vmatpush1.bf16.msra.mxu0 %v4373
  %6103 = vmatprep.mubr.bf16.mxu0 %v1336
  %6104 = vmatmul.mubr.bf16.gmra.mrb[0].mxu0 %v1335
  %v6105 = vpop.f32.mrb[0].mxu0
  %v6106 = vadd.f32 %v6066, %v6105
  %v6107 = vpop.f32.mrb[0].mxu0
  %v6108 = vpop.f32.mrb[0].mxu0
  %v6109 = vpop.f32.mrb[0].mxu0
  %6110 = vdwg.mxu0
  %6111 = vmatprep.subr.bf16.mxu0 0
  %6112 = vmatpush1.bf16.msra.mxu0 %v4376
  %6113 = vmatprep.subr.bf16.mxu0 0
  %6114 = vmatpush1.bf16.msra.mxu0 %v4379
  %6115 = vmatprep.subr.bf16.mxu0 0
  %6116 = vmatpush1.bf16.msra.mxu0 %v4382
  %6117 = vmatprep.subr.bf16.mxu0 0
  %6118 = vmatpush1.bf16.msra.mxu0 %v4385
  %6119 = vmatprep.subr.bf16.mxu0 0
  %6120 = vmatpush1.bf16.msra.mxu0 %v4388
  %6121 = vmatprep.subr.bf16.mxu0 0
  %6122 = vmatpush1.bf16.msra.mxu0 %v4391
  %6123 = vmatprep.subr.bf16.mxu0 0
  %6124 = vmatpush1.bf16.msra.mxu0 %v4394
  %6125 = vmatprep.subr.bf16.mxu0 0
  %6126 = vmatpush1.bf16.msra.mxu0 %v4397
  %6127 = vmatprep.subr.bf16.mxu0 0
  %6128 = vmatpush1.bf16.msra.mxu0 %v4400
  %6129 = vmatprep.subr.bf16.mxu0 0
  %6130 = vmatpush1.bf16.msra.mxu0 %v4403
  %6131 = vmatprep.subr.bf16.mxu0 0
  %6132 = vmatpush1.bf16.msra.mxu0 %v4406
  %6133 = vmatprep.subr.bf16.mxu0 0
  %6134 = vmatpush1.bf16.msra.mxu0 %v4409
  %6135 = vmatprep.subr.bf16.mxu0 0
  %6136 = vmatpush1.bf16.msra.mxu0 %v4412
  %6137 = vmatprep.subr.bf16.mxu0 0
  %6138 = vmatpush1.bf16.msra.mxu0 %v4415
  %6139 = vmatprep.subr.bf16.mxu0 0
  %6140 = vmatpush1.bf16.msra.mxu0 %v4418
  %6141 = vmatprep.subr.bf16.mxu0 0
  %6142 = vmatpush1.bf16.msra.mxu0 %v4421
  %6143 = vmatprep.mubr.bf16.mxu0 %v1338
  %6144 = vmatmul.mubr.bf16.gmra.mrb[0].mxu0 %v1337
  %v6145 = vpop.f32.mrb[0].mxu0
  %v6146 = vadd.f32 %v6106, %v6145
  %v6147 = vpop.f32.mrb[0].mxu0
  %v6148 = vpop.f32.mrb[0].mxu0
  %v6149 = vpop.f32.mrb[0].mxu0
  %6150 = vdwg.mxu0
  %6151 = vmatprep.subr.bf16.mxu0 0
  %6152 = vmatpush1.bf16.msra.mxu0 %v4424
  %6153 = vmatprep.subr.bf16.mxu0 0
  %6154 = vmatpush1.bf16.msra.mxu0 %v4427
  %6155 = vmatprep.subr.bf16.mxu0 0
  %6156 = vmatpush1.bf16.msra.mxu0 %v4430
  %6157 = vmatprep.subr.bf16.mxu0 0
  %6158 = vmatpush1.bf16.msra.mxu0 %v4433
  %6159 = vmatprep.subr.bf16.mxu0 0
  %6160 = vmatpush1.bf16.msra.mxu0 %v4436
  %6161 = vmatprep.subr.bf16.mxu0 0
  %6162 = vmatpush1.bf16.msra.mxu0 %v4439
  %6163 = vmatprep.subr.bf16.mxu0 0
  %6164 = vmatpush1.bf16.msra.mxu0 %v4442
  %6165 = vmatprep.subr.bf16.mxu0 0
  %6166 = vmatpush1.bf16.msra.mxu0 %v4445
  %6167 = vmatprep.subr.bf16.mxu0 0
  %6168 = vmatpush1.bf16.msra.mxu0 %v4448
  %6169 = vmatprep.subr.bf16.mxu0 0
  %6170 = vmatpush1.bf16.msra.mxu0 %v4451
  %6171 = vmatprep.subr.bf16.mxu0 0
  %6172 = vmatpush1.bf16.msra.mxu0 %v4454
  %6173 = vmatprep.subr.bf16.mxu0 0
  %6174 = vmatpush1.bf16.msra.mxu0 %v4457
  %6175 = vmatprep.subr.bf16.mxu0 0
  %6176 = vmatpush1.bf16.msra.mxu0 %v4460
  %6177 = vmatprep.subr.bf16.mxu0 0
  %6178 = vmatpush1.bf16.msra.mxu0 %v4463
  %6179 = vmatprep.subr.bf16.mxu0 0
  %6180 = vmatpush1.bf16.msra.mxu0 %v4466
  %6181 = vmatprep.subr.bf16.mxu0 0
  %6182 = vmatpush1.bf16.msra.mxu0 %v4469
  %6183 = vmatprep.mubr.bf16.mxu0 %v1340
  %6184 = vmatmul.mubr.bf16.gmra.mrb[0].mxu0 %v1339
  %v6185 = vpop.f32.mrb[0].mxu0
  %v6186 = vadd.f32 %v6146, %v6185
  %v6187 = vpop.f32.mrb[0].mxu0
  %v6188 = vpop.f32.mrb[0].mxu0
  %v6189 = vpop.f32.mrb[0].mxu0
  %6190 = vdwg.mxu0
  %6191 = vmatprep.subr.bf16.mxu0 0
  %6192 = vmatpush1.bf16.msra.mxu0 %v4472
  %6193 = vmatprep.subr.bf16.mxu0 0
  %6194 = vmatpush1.bf16.msra.mxu0 %v4475
  %6195 = vmatprep.subr.bf16.mxu0 0
  %6196 = vmatpush1.bf16.msra.mxu0 %v4478
  %6197 = vmatprep.subr.bf16.mxu0 0
  %6198 = vmatpush1.bf16.msra.mxu0 %v4481
  %6199 = vmatprep.subr.bf16.mxu0 0
  %6200 = vmatpush1.bf16.msra.mxu0 %v4484
  %6201 = vmatprep.subr.bf16.mxu0 0
  %6202 = vmatpush1.bf16.msra.mxu0 %v4487
  %6203 = vmatprep.subr.bf16.mxu0 0
  %6204 = vmatpush1.bf16.msra.mxu0 %v4490
  %6205 = vmatprep.subr.bf16.mxu0 0
  %6206 = vmatpush1.bf16.msra.mxu0 %v4493
  %6207 = vmatprep.subr.bf16.mxu0 0
  %6208 = vmatpush1.bf16.msra.mxu0 %v4496
  %6209 = vmatprep.subr.bf16.mxu0 0
  %6210 = vmatpush1.bf16.msra.mxu0 %v4499
  %6211 = vmatprep.subr.bf16.mxu0 0
  %6212 = vmatpush1.bf16.msra.mxu0 %v4502
  %6213 = vmatprep.subr.bf16.mxu0 0
  %6214 = vmatpush1.bf16.msra.mxu0 %v4505
  %6215 = vmatprep.subr.bf16.mxu0 0
  %6216 = vmatpush1.bf16.msra.mxu0 %v4508
  %6217 = vmatprep.subr.bf16.mxu0 0
  %6218 = vmatpush1.bf16.msra.mxu0 %v4511
  %6219 = vmatprep.subr.bf16.mxu0 0
  %6220 = vmatpush1.bf16.msra.mxu0 %v4514
  %6221 = vmatprep.subr.bf16.mxu0 0
  %6222 = vmatpush1.bf16.msra.mxu0 %v4517
  %6223 = vmatprep.mubr.bf16.mxu0 %v1342
  %6224 = vmatmul.mubr.bf16.gmra.mrb[0].mxu0 %v1341
  %v6225 = vpop.f32.mrb[0].mxu0
  %v6226 = vadd.f32 %v6186, %v6225
  %v6227 = vpop.f32.mrb[0].mxu0
  %v6228 = vpop.f32.mrb[0].mxu0
  %v6229 = vpop.f32.mrb[0].mxu0
  %6230 = vdwg.mxu0
  %6231 = vmatprep.subr.bf16.mxu0 0
  %6232 = vmatpush1.bf16.msra.mxu0 %v4520
  %6233 = vmatprep.subr.bf16.mxu0 0
  %6234 = vmatpush1.bf16.msra.mxu0 %v4523
  %6235 = vmatprep.subr.bf16.mxu0 0
  %6236 = vmatpush1.bf16.msra.mxu0 %v4526
  %6237 = vmatprep.subr.bf16.mxu0 0
  %6238 = vmatpush1.bf16.msra.mxu0 %v4529
  %6239 = vmatprep.subr.bf16.mxu0 0
  %6240 = vmatpush1.bf16.msra.mxu0 %v4532
  %6241 = vmatprep.subr.bf16.mxu0 0
  %6242 = vmatpush1.bf16.msra.mxu0 %v4535
  %6243 = vmatprep.subr.bf16.mxu0 0
  %6244 = vmatpush1.bf16.msra.mxu0 %v4538
  %6245 = vmatprep.subr.bf16.mxu0 0
  %6246 = vmatpush1.bf16.msra.mxu0 %v4541
  %6247 = vmatprep.subr.bf16.mxu0 0
  %6248 = vmatpush1.bf16.msra.mxu0 %v4544
  %6249 = vmatprep.subr.bf16.mxu0 0
  %6250 = vmatpush1.bf16.msra.mxu0 %v4547
  %6251 = vmatprep.subr.bf16.mxu0 0
  %6252 = vmatpush1.bf16.msra.mxu0 %v4550
  %6253 = vmatprep.subr.bf16.mxu0 0
  %6254 = vmatpush1.bf16.msra.mxu0 %v4553
  %6255 = vmatprep.subr.bf16.mxu0 0
  %6256 = vmatpush1.bf16.msra.mxu0 %v4556
  %6257 = vmatprep.subr.bf16.mxu0 0
  %6258 = vmatpush1.bf16.msra.mxu0 %v4559
  %6259 = vmatprep.subr.bf16.mxu0 0
  %6260 = vmatpush1.bf16.msra.mxu0 %v4562
  %6261 = vmatprep.subr.bf16.mxu0 0
  %6262 = vmatpush1.bf16.msra.mxu0 %v4565
  %6263 = vmatprep.mubr.bf16.mxu0 %v1344
  %6264 = vmatmul.mubr.bf16.gmra.mrb[0].mxu0 %v1343
  %v6265 = vpop.f32.mrb[0].mxu0
  %v6266 = vadd.f32 %v6226, %v6265
  %v6267 = vpop.f32.mrb[0].mxu0
  %v6268 = vpop.f32.mrb[0].mxu0
  %v6269 = vpop.f32.mrb[0].mxu0
  %6270 = vdwg.mxu0
  %6271 = vmatprep.subr.bf16.mxu0 0
  %6272 = vmatpush1.bf16.msra.mxu0 %v4568
  %6273 = vmatprep.subr.bf16.mxu0 0
  %6274 = vmatpush1.bf16.msra.mxu0 %v4571
  %6275 = vmatprep.subr.bf16.mxu0 0
  %6276 = vmatpush1.bf16.msra.mxu0 %v4574
  %6277 = vmatprep.subr.bf16.mxu0 0
  %6278 = vmatpush1.bf16.msra.mxu0 %v4577
  %6279 = vmatprep.subr.bf16.mxu0 0
  %6280 = vmatpush1.bf16.msra.mxu0 %v4580
  %6281 = vmatprep.subr.bf16.mxu0 0
  %6282 = vmatpush1.bf16.msra.mxu0 %v4583
  %6283 = vmatprep.subr.bf16.mxu0 0
  %6284 = vmatpush1.bf16.msra.mxu0 %v4586
  %6285 = vmatprep.subr.bf16.mxu0 0
  %6286 = vmatpush1.bf16.msra.mxu0 %v4589
  %6287 = vmatprep.subr.bf16.mxu0 0
  %6288 = vmatpush1.bf16.msra.mxu0 %v4592
  %6289 = vmatprep.subr.bf16.mxu0 0
  %6290 = vmatpush1.bf16.msra.mxu0 %v4595
  %6291 = vmatprep.subr.bf16.mxu0 0
  %6292 = vmatpush1.bf16.msra.mxu0 %v4598
  %6293 = vmatprep.subr.bf16.mxu0 0
  %6294 = vmatpush1.bf16.msra.mxu0 %v4601
  %6295 = vmatprep.subr.bf16.mxu0 0
  %6296 = vmatpush1.bf16.msra.mxu0 %v4604
  %6297 = vmatprep.subr.bf16.mxu0 0
  %6298 = vmatpush1.bf16.msra.mxu0 %v4607
  %6299 = vmatprep.subr.bf16.mxu0 0
  %6300 = vmatpush1.bf16.msra.mxu0 %v4610
  %6301 = vmatprep.subr.bf16.mxu0 0
  %6302 = vmatpush1.bf16.msra.mxu0 %v4613
  %6303 = vmatprep.mubr.bf16.mxu0 %v1346
  %6304 = vmatmul.mubr.bf16.gmra.mrb[0].mxu0 %v1345
  %v6305 = vpop.f32.mrb[0].mxu0
  %v6306 = vadd.f32 %v6266, %v6305
  %v6307 = vpop.f32.mrb[0].mxu0
  %v6308 = vpop.f32.mrb[0].mxu0
  %v6309 = vpop.f32.mrb[0].mxu0
  %6310 = vdwg.mxu0
  %6311 = vmatprep.subr.bf16.mxu0 0
  %6312 = vmatpush1.bf16.msra.mxu0 %v4616
  %6313 = vmatprep.subr.bf16.mxu0 0
  %6314 = vmatpush1.bf16.msra.mxu0 %v4619
  %6315 = vmatprep.subr.bf16.mxu0 0
  %6316 = vmatpush1.bf16.msra.mxu0 %v4622
  %6317 = vmatprep.subr.bf16.mxu0 0
  %6318 = vmatpush1.bf16.msra.mxu0 %v4625
  %6319 = vmatprep.subr.bf16.mxu0 0
  %6320 = vmatpush1.bf16.msra.mxu0 %v4628
  %6321 = vmatprep.subr.bf16.mxu0 0
  %6322 = vmatpush1.bf16.msra.mxu0 %v4631
  %6323 = vmatprep.subr.bf16.mxu0 0
  %6324 = vmatpush1.bf16.msra.mxu0 %v4634
  %6325 = vmatprep.subr.bf16.mxu0 0
  %6326 = vmatpush1.bf16.msra.mxu0 %v4637
  %6327 = vmatprep.subr.bf16.mxu0 0
  %6328 = vmatpush1.bf16.msra.mxu0 %v4640
  %6329 = vmatprep.subr.bf16.mxu0 0
  %6330 = vmatpush1.bf16.msra.mxu0 %v4643
  %6331 = vmatprep.subr.bf16.mxu0 0
  %6332 = vmatpush1.bf16.msra.mxu0 %v4646
  %6333 = vmatprep.subr.bf16.mxu0 0
  %6334 = vmatpush1.bf16.msra.mxu0 %v4649
  %6335 = vmatprep.subr.bf16.mxu0 0
  %6336 = vmatpush1.bf16.msra.mxu0 %v4652
  %6337 = vmatprep.subr.bf16.mxu0 0
  %6338 = vmatpush1.bf16.msra.mxu0 %v4655
  %6339 = vmatprep.subr.bf16.mxu0 0
  %6340 = vmatpush1.bf16.msra.mxu0 %v4658
  %6341 = vmatprep.subr.bf16.mxu0 0
  %6342 = vmatpush1.bf16.msra.mxu0 %v4661
  %6343 = vmatprep.mubr.bf16.mxu0 %v1348
  %6344 = vmatmul.mubr.bf16.gmra.mrb[0].mxu0 %v1347
  %v6345 = vpop.f32.mrb[0].mxu0
  %v6346 = vadd.f32 %v6306, %v6345
  %v6347 = vpop.f32.mrb[0].mxu0
  %v6348 = vpop.f32.mrb[0].mxu0
  %v6349 = vpop.f32.mrb[0].mxu0
  %6350 = vdwg.mxu0
  %6351 = vmatprep.subr.bf16.mxu0 0
  %6352 = vmatpush1.bf16.msra.mxu0 %v4664
  %6353 = vmatprep.subr.bf16.mxu0 0
  %6354 = vmatpush1.bf16.msra.mxu0 %v4667
  %6355 = vmatprep.subr.bf16.mxu0 0
  %6356 = vmatpush1.bf16.msra.mxu0 %v4670
  %6357 = vmatprep.subr.bf16.mxu0 0
  %6358 = vmatpush1.bf16.msra.mxu0 %v4673
  %6359 = vmatprep.subr.bf16.mxu0 0
  %6360 = vmatpush1.bf16.msra.mxu0 %v4676
  %6361 = vmatprep.subr.bf16.mxu0 0
  %6362 = vmatpush1.bf16.msra.mxu0 %v4679
  %6363 = vmatprep.subr.bf16.mxu0 0
  %6364 = vmatpush1.bf16.msra.mxu0 %v4682
  %6365 = vmatprep.subr.bf16.mxu0 0
  %6366 = vmatpush1.bf16.msra.mxu0 %v4685
  %6367 = vmatprep.subr.bf16.mxu0 0
  %6368 = vmatpush1.bf16.msra.mxu0 %v4688
  %6369 = vmatprep.subr.bf16.mxu0 0
  %6370 = vmatpush1.bf16.msra.mxu0 %v4691
  %6371 = vmatprep.subr.bf16.mxu0 0
  %6372 = vmatpush1.bf16.msra.mxu0 %v4694
  %6373 = vmatprep.subr.bf16.mxu0 0
  %6374 = vmatpush1.bf16.msra.mxu0 %v4697
  %6375 = vmatprep.subr.bf16.mxu0 0
  %6376 = vmatpush1.bf16.msra.mxu0 %v4700
  %6377 = vmatprep.subr.bf16.mxu0 0
  %6378 = vmatpush1.bf16.msra.mxu0 %v4703
  %6379 = vmatprep.subr.bf16.mxu0 0
  %6380 = vmatpush1.bf16.msra.mxu0 %v4706
  %6381 = vmatprep.subr.bf16.mxu0 0
  %6382 = vmatpush1.bf16.msra.mxu0 %v4709
  %6383 = vmatprep.mubr.bf16.mxu0 %v1350
  %6384 = vmatmul.mubr.bf16.gmra.mrb[0].mxu0 %v1349
  %v6385 = vpop.f32.mrb[0].mxu0
  %v6386 = vadd.f32 %v6346, %v6385
  %v6387 = vpop.f32.mrb[0].mxu0
  %v6388 = vpop.f32.mrb[0].mxu0
  %v6389 = vpop.f32.mrb[0].mxu0
  %6390 = vdwg.mxu0
  %6391 = vmatprep.subr.bf16.mxu0 0
  %6392 = vmatpush1.bf16.msra.mxu0 %v4712
  %6393 = vmatprep.subr.bf16.mxu0 0
  %6394 = vmatpush1.bf16.msra.mxu0 %v4715
  %6395 = vmatprep.subr.bf16.mxu0 0
  %6396 = vmatpush1.bf16.msra.mxu0 %v4718
  %6397 = vmatprep.subr.bf16.mxu0 0
  %6398 = vmatpush1.bf16.msra.mxu0 %v4721
  %6399 = vmatprep.subr.bf16.mxu0 0
  %6400 = vmatpush1.bf16.msra.mxu0 %v4724
  %6401 = vmatprep.subr.bf16.mxu0 0
  %6402 = vmatpush1.bf16.msra.mxu0 %v4727
  %6403 = vmatprep.subr.bf16.mxu0 0
  %6404 = vmatpush1.bf16.msra.mxu0 %v4730
  %6405 = vmatprep.subr.bf16.mxu0 0
  %6406 = vmatpush1.bf16.msra.mxu0 %v4733
  %6407 = vmatprep.subr.bf16.mxu0 0
  %6408 = vmatpush1.bf16.msra.mxu0 %v4736
  %6409 = vmatprep.subr.bf16.mxu0 0
  %6410 = vmatpush1.bf16.msra.mxu0 %v4739
  %6411 = vmatprep.subr.bf16.mxu0 0
  %6412 = vmatpush1.bf16.msra.mxu0 %v4742
  %6413 = vmatprep.subr.bf16.mxu0 0
  %6414 = vmatpush1.bf16.msra.mxu0 %v4745
  %6415 = vmatprep.subr.bf16.mxu0 0
  %6416 = vmatpush1.bf16.msra.mxu0 %v4748
  %6417 = vmatprep.subr.bf16.mxu0 0
  %6418 = vmatpush1.bf16.msra.mxu0 %v4751
  %6419 = vmatprep.subr.bf16.mxu0 0
  %6420 = vmatpush1.bf16.msra.mxu0 %v4754
  %6421 = vmatprep.subr.bf16.mxu0 0
  %6422 = vmatpush1.bf16.msra.mxu0 %v4757
  %6423 = vmatprep.mubr.bf16.mxu0 %v1352
  %6424 = vmatmul.mubr.bf16.gmra.mrb[0].mxu0 %v1351
  %v6425 = vpop.f32.mrb[0].mxu0
  %v6426 = vadd.f32 %v6386, %v6425
  %v6427 = vpop.f32.mrb[0].mxu0
  %v6428 = vpop.f32.mrb[0].mxu0
  %v6429 = vpop.f32.mrb[0].mxu0
  %6430 = vdwg.mxu0
  %6431 = vmatprep.subr.bf16.mxu0 0
  %6432 = vmatpush1.bf16.msra.mxu0 %v4760
  %6433 = vmatprep.subr.bf16.mxu0 0
  %6434 = vmatpush1.bf16.msra.mxu0 %v4763
  %6435 = vmatprep.subr.bf16.mxu0 0
  %6436 = vmatpush1.bf16.msra.mxu0 %v4766
  %6437 = vmatprep.subr.bf16.mxu0 0
  %6438 = vmatpush1.bf16.msra.mxu0 %v4769
  %6439 = vmatprep.subr.bf16.mxu0 0
  %6440 = vmatpush1.bf16.msra.mxu0 %v4772
  %6441 = vmatprep.subr.bf16.mxu0 0
  %6442 = vmatpush1.bf16.msra.mxu0 %v4775
  %6443 = vmatprep.subr.bf16.mxu0 0
  %6444 = vmatpush1.bf16.msra.mxu0 %v4778
  %6445 = vmatprep.subr.bf16.mxu0 0
  %6446 = vmatpush1.bf16.msra.mxu0 %v4781
  %6447 = vmatprep.subr.bf16.mxu0 0
  %6448 = vmatpush1.bf16.msra.mxu0 %v4784
  %6449 = vmatprep.subr.bf16.mxu0 0
  %6450 = vmatpush1.bf16.msra.mxu0 %v4787
  %6451 = vmatprep.subr.bf16.mxu0 0
  %6452 = vmatpush1.bf16.msra.mxu0 %v4790
  %6453 = vmatprep.subr.bf16.mxu0 0
  %6454 = vmatpush1.bf16.msra.mxu0 %v4793
  %6455 = vmatprep.subr.bf16.mxu0 0
  %6456 = vmatpush1.bf16.msra.mxu0 %v4796
  %6457 = vmatprep.subr.bf16.mxu0 0
  %6458 = vmatpush1.bf16.msra.mxu0 %v4799
  %6459 = vmatprep.subr.bf16.mxu0 0
  %6460 = vmatpush1.bf16.msra.mxu0 %v4802
  %6461 = vmatprep.subr.bf16.mxu0 0
  %6462 = vmatpush1.bf16.msra.mxu0 %v4805
  %6463 = vmatprep.mubr.bf16.mxu0 %v1354
  %6464 = vmatmul.mubr.bf16.gmra.mrb[0].mxu0 %v1353
  %v6465 = vpop.f32.mrb[0].mxu0
  %v6466 = vadd.f32 %v6426, %v6465
  %v6467 = vpop.f32.mrb[0].mxu0
  %v6468 = vpop.f32.mrb[0].mxu0
  %v6469 = vpop.f32.mrb[0].mxu0
  %6470 = vdwg.mxu0
  %6471 = vmatprep.subr.bf16.mxu0 0
  %6472 = vmatpush1.bf16.msra.mxu0 %v4808
  %6473 = vmatprep.subr.bf16.mxu0 0
  %6474 = vmatpush1.bf16.msra.mxu0 %v4811
  %6475 = vmatprep.subr.bf16.mxu0 0
  %6476 = vmatpush1.bf16.msra.mxu0 %v4814
  %6477 = vmatprep.subr.bf16.mxu0 0
  %6478 = vmatpush1.bf16.msra.mxu0 %v4817
  %6479 = vmatprep.subr.bf16.mxu0 0
  %6480 = vmatpush1.bf16.msra.mxu0 %v4820
  %6481 = vmatprep.subr.bf16.mxu0 0
  %6482 = vmatpush1.bf16.msra.mxu0 %v4823
  %6483 = vmatprep.subr.bf16.mxu0 0
  %6484 = vmatpush1.bf16.msra.mxu0 %v4826
  %6485 = vmatprep.subr.bf16.mxu0 0
  %6486 = vmatpush1.bf16.msra.mxu0 %v4829
  %6487 = vmatprep.subr.bf16.mxu0 0
  %6488 = vmatpush1.bf16.msra.mxu0 %v4832
  %6489 = vmatprep.subr.bf16.mxu0 0
  %6490 = vmatpush1.bf16.msra.mxu0 %v4835
  %6491 = vmatprep.subr.bf16.mxu0 0
  %6492 = vmatpush1.bf16.msra.mxu0 %v4838
  %6493 = vmatprep.subr.bf16.mxu0 0
  %6494 = vmatpush1.bf16.msra.mxu0 %v4841
  %6495 = vmatprep.subr.bf16.mxu0 0
  %6496 = vmatpush1.bf16.msra.mxu0 0
  %6497 = vmatprep.subr.bf16.mxu0 0
  %6498 = vmatpush1.bf16.msra.mxu0 0
  %6499 = vmatprep.subr.bf16.mxu0 0
  %6500 = vmatpush1.bf16.msra.mxu0 0
  %6501 = vmatprep.subr.bf16.mxu0 0
  %6502 = vmatpush1.bf16.msra.mxu0 0
  %6503 = vmatprep.mubr.bf16.mxu0 %v5456
  %6504 = vmatmul.mubr.bf16.gmra.mrb[0].mxu0 %v1355
  %v6505 = vpop.f32.mrb[0].mxu0
  %v6506 = vadd.f32 %v6466, %v6505
  %v6507 = vpop.f32.mrb[0].mxu0
  %v6508 = vpop.f32.mrb[0].mxu0
  %v6509 = vpop.f32.mrb[0].mxu0
  %6510 = vdwg.mxu0
  %v6511 = vmax.f32 %v5985, 0.0
  %v6512 = vmax.f32 %v5987, 0.0
  %v6513 = vmax.f32 %v6506, 0.0
  %v6514 = vld [vmem:[%s3] sm:$0xff]
  %v6515 = vld [vmem:[%s3 + $0x8] sm:$0xff]
  %v6516 = vld [vmem:[%s3 + $0x10] sm:$0xff]
  %v6517 = vld [vmem:[%s3 + $0x18] sm:$0xff]
  %v6518 = vld [vmem:[%s3 + $0x20] sm:$0xff]
  %v6519 = vld [vmem:[%s3 + $0x28] sm:$0xff]
  %v6520 = vld [vmem:[%s3 + $0x30] sm:$0xff]
  %v6521 = vld [vmem:[%s3 + $0x38] sm:$0xff]
  %v6522 = vld [vmem:[%s3 + $0x40] sm:$0xff]
  %v6523 = vld [vmem:[%s3 + $0x48] sm:$0xff]
  %v6524 = vld [vmem:[%s3 + $0x50] sm:$0xff]
  %v6525 = vld [vmem:[%s3 + $0x58] sm:$0xff]
  %v6526 = vld [vmem:[%s3 + $0x60] sm:$0xff]
  %v6527 = vld [vmem:[%s3 + $0x68] sm:$0xff]
  %v6528 = vld [vmem:[%s3 + $0x70] sm:$0xff]
  %v6529 = vld [vmem:[%s3 + $0x78] sm:$0xff]
  %v6530 = vld [vmem:[%s3 + $0x80] sm:$0xff]
  %v6531 = vld [vmem:[%s3 + $0x88] sm:$0xff]
  %v6532 = vld [vmem:[%s3 + $0x90] sm:$0xff]
  %v6533 = vld [vmem:[%s3 + $0x98] sm:$0xff]
  %v6534 = vld [vmem:[%s3 + $0xa0] sm:$0xff]
  %v6535 = vld [vmem:[%s3 + $0xa8] sm:$0xff]
  %v6536 = vld [vmem:[%s3 + $0xb0] sm:$0xff]
  %v6537 = vld [vmem:[%s3 + $0xb8] sm:$0xff]
  %v6538 = vld [vmem:[%s3 + $0xc0] sm:$0xff]
  %v6539 = vld [vmem:[%s3 + $0xc8] sm:$0xff]
  %v6540 = vld [vmem:[%s3 + $0xd0] sm:$0xff]
  %v6541 = vld [vmem:[%s3 + $0xd8] sm:$0xff]
  %v6542 = vld [vmem:[%s3 + $0xe0] sm:$0xff]
  %v6543 = vld [vmem:[%s3 + $0xe8] sm:$0xff]
  %v6544 = vld [vmem:[%s3 + $0xf0] sm:$0xff]
  %v6545 = vld [vmem:[%s3 + $0xf8] sm:$0xff]
  %v6546 = vld [vmem:[%s3 + $0x100] sm:$0xff]
  %v6547 = vld [vmem:[%s3 + $0x108] sm:$0xff]
  %v6548 = vld [vmem:[%s3 + $0x110] sm:$0xff]
  %v6549 = vld [vmem:[%s3 + $0x118] sm:$0xff]
  %v6550 = vld [vmem:[%s3 + $0x120] sm:$0xff]
  %v6551 = vld [vmem:[%s3 + $0x128] sm:$0xf]
  %v6552 = vld [vmem:[%s4] sm:$0x1]
  %v6554 = vlaneseq
  %v6555 = vshrl.u32 %v6554, 7
  %v6556 = vsub.s32 0, %v6555
  %v6557 = vrot.slane %v6552, %v6556
  %vm6559 = vcmask 359424
  %v6561 = vsel %vm6559, %v6513, 0
  %vm6563 = vcmask 1043456
  %v6565 = vsel %vm6563, %v6551, 0
  %6567 = vmatprep.subr.mxu0 0.0
  %6568 = vmatpush1.msra.mxu0 %v6514
  %6569 = vmatprep.subr.mxu0 0.0
  %6570 = vmatpush1.msra.mxu0 %v6515
  %6571 = vmatprep.subr.mxu0 0.0
  %6572 = vmatpush1.msra.mxu0 %v6516
  %6573 = vmatprep.subr.mxu0 0.0
  %6574 = vmatpush1.msra.mxu0 %v6517
  %6575 = vmatprep.subr.mxu0 0.0
  %6576 = vmatpush1.msra.mxu0 %v6518
  %6577 = vmatprep.subr.mxu0 0.0
  %6578 = vmatpush1.msra.mxu0 %v6519
  %6579 = vmatprep.subr.mxu0 0.0
  %6580 = vmatpush1.msra.mxu0 %v6520
  %6581 = vmatprep.subr.mxu0 0.0
  %6582 = vmatpush1.msra.mxu0 %v6521
  %6583 = vmatprep.subr.mxu0 0.0
  %6584 = vmatpush1.msra.mxu0 %v6522
  %6585 = vmatprep.subr.mxu0 0.0
  %6586 = vmatpush1.msra.mxu0 %v6523
  %6587 = vmatprep.subr.mxu0 0.0
  %6588 = vmatpush1.msra.mxu0 %v6524
  %6589 = vmatprep.subr.mxu0 0.0
  %6590 = vmatpush1.msra.mxu0 %v6525
  %6591 = vmatprep.subr.mxu0 0.0
  %6592 = vmatpush1.msra.mxu0 %v6526
  %6593 = vmatprep.subr.mxu0 0.0
  %6594 = vmatpush1.msra.mxu0 %v6527
  %6595 = vmatprep.subr.mxu0 0.0
  %6596 = vmatpush1.msra.mxu0 %v6528
  %6597 = vmatprep.subr.mxu0 0.0
  %6598 = vmatpush1.msra.mxu0 %v6529
  %6599 = vmatprep.subr.mxu0 0.0
  %6600 = vmatpush1.msra.mxu0 %v6530
  %6601 = vmatprep.subr.mxu0 0.0
  %6602 = vmatpush1.msra.mxu0 %v6531
  %6603 = vmatprep.subr.mxu0 0.0
  %6604 = vmatpush1.msra.mxu0 %v6532
  %6605 = vmatprep.subr.mxu0 0.0
  %6606 = vmatpush1.msra.mxu0 %v6533
  %6607 = vmatprep.subr.mxu0 0.0
  %6608 = vmatpush1.msra.mxu0 %v6534
  %6609 = vmatprep.subr.mxu0 0.0
  %6610 = vmatpush1.msra.mxu0 %v6535
  %6611 = vmatprep.subr.mxu0 0.0
  %6612 = vmatpush1.msra.mxu0 %v6536
  %6613 = vmatprep.subr.mxu0 0.0
  %6614 = vmatpush1.msra.mxu0 %v6537
  %6615 = vmatprep.subr.mxu0 0.0
  %6616 = vmatpush1.msra.mxu0 %v6538
  %6617 = vmatprep.subr.mxu0 0.0
  %6618 = vmatpush1.msra.mxu0 %v6539
  %6619 = vmatprep.subr.mxu0 0.0
  %6620 = vmatpush1.msra.mxu0 %v6540
  %6621 = vmatprep.subr.mxu0 0.0
  %6622 = vmatpush1.msra.mxu0 %v6541
  %6623 = vmatprep.subr.mxu0 0.0
  %6624 = vmatpush1.msra.mxu0 %v6542
  %6625 = vmatprep.subr.mxu0 0.0
  %6626 = vmatpush1.msra.mxu0 %v6543
  %6627 = vmatprep.subr.mxu0 0.0
  %6628 = vmatpush1.msra.mxu0 %v6544
  %6629 = vmatprep.subr.mxu0 0.0
  %6630 = vmatpush1.msra.mxu0 %v6545
  %6631 = vmatprep.mubr.f32.mxu0 %v6512
  %6632 = vmatmul.mubr.f32.gmra.mrb[0].mxu0 %v6511
  %v6633 = vpop.f32.mrb[0].mxu0
  %v6634 = vadd.f32 %v6557, %v6633
  %v6635 = vpop.f32.mrb[0].mxu0
  %6636 = vdwg.mxu0
  %6637 = vmatprep.subr.mxu0 0.0
  %6638 = vmatpush1.msra.mxu0 %v6546
  %6639 = vmatprep.subr.mxu0 0.0
  %6640 = vmatpush1.msra.mxu0 %v6547
  %6641 = vmatprep.subr.mxu0 0.0
  %6642 = vmatpush1.msra.mxu0 %v6548
  %6643 = vmatprep.subr.mxu0 0.0
  %6644 = vmatpush1.msra.mxu0 %v6549
  %6645 = vmatprep.subr.mxu0 0.0
  %6646 = vmatpush1.msra.mxu0 %v6550
  %6647 = vmatprep.subr.mxu0 0.0
  %6648 = vmatpush1.msra.mxu0 %v6565
  %6649 = vmatprep.subr.mxu0 0.0
  %6650 = vmatpush1.msra.mxu0 0.0
  %6651 = vmatprep.subr.mxu0 0.0
  %6652 = vmatpush1.msra.mxu0 0.0
  %6653 = vmatprep.subr.mxu0 0.0
  %6654 = vmatpush1.msra.mxu0 0.0
  %6655 = vmatprep.subr.mxu0 0.0
  %6656 = vmatpush1.msra.mxu0 0.0
  %6657 = vmatprep.subr.mxu0 0.0
  %6658 = vmatpush1.msra.mxu0 0.0
  %6659 = vmatprep.subr.mxu0 0.0
  %6660 = vmatpush1.msra.mxu0 0.0
  %6661 = vmatprep.subr.mxu0 0.0
  %6662 = vmatpush1.msra.mxu0 0.0
  %6663 = vmatprep.subr.mxu0 0.0
  %6664 = vmatpush1.msra.mxu0 0.0
  %6665 = vmatprep.subr.mxu0 0.0
  %6666 = vmatpush1.msra.mxu0 0.0
  %6667 = vmatprep.subr.mxu0 0.0
  %6668 = vmatpush1.msra.mxu0 0.0
  %6669 = vmatprep.subr.mxu0 0.0
  %6670 = vmatpush1.msra.mxu0 0.0
  %6671 = vmatprep.subr.mxu0 0.0
  %6672 = vmatpush1.msra.mxu0 0.0
  %6673 = vmatprep.subr.mxu0 0.0
  %6674 = vmatpush1.msra.mxu0 0.0
  %6675 = vmatprep.subr.mxu0 0.0
  %6676 = vmatpush1.msra.mxu0 0.0
  %6677 = vmatprep.subr.mxu0 0.0
  %6678 = vmatpush1.msra.mxu0 0.0
  %6679 = vmatprep.subr.mxu0 0.0
  %6680 = vmatpush1.msra.mxu0 0.0
  %6681 = vmatprep.subr.mxu0 0.0
  %6682 = vmatpush1.msra.mxu0 0.0
  %6683 = vmatprep.subr.mxu0 0.0
  %6684 = vmatpush1.msra.mxu0 0.0
  %6685 = vmatprep.subr.mxu0 0.0
  %6686 = vmatpush1.msra.mxu0 0.0
  %6687 = vmatprep.subr.mxu0 0.0
  %6688 = vmatpush1.msra.mxu0 0.0
  %6689 = vmatprep.subr.mxu0 0.0
  %6690 = vmatpush1.msra.mxu0 0.0
  %6691 = vmatprep.subr.mxu0 0.0
  %6692 = vmatpush1.msra.mxu0 0.0
  %6693 = vmatprep.subr.mxu0 0.0
  %6694 = vmatpush1.msra.mxu0 0.0
  %6695 = vmatprep.subr.mxu0 0.0
  %6696 = vmatpush1.msra.mxu0 0.0
  %6697 = vmatprep.subr.mxu0 0.0
  %6698 = vmatpush1.msra.mxu0 0.0
  %6699 = vmatprep.subr.mxu0 0.0
  %6700 = vmatpush1.msra.mxu0 0.0
  %6701 = vmatprep.mubr.f32.mxu0 0.0
  %6702 = vmatmul.mubr.f32.gmra.mrb[0].mxu0 %v6561
  %v6703 = vpop.f32.mrb[0].mxu0
  %v6704 = vadd.f32 %v6634, %v6703
  %v6705 = vpop.f32.mrb[0].mxu0
  %6706 = vdwg.mxu0
  %v6707 = vmax.f32 %v6704, 0.0
  %v6708 = vld [vmem:[%s5] sm:$0xff]
  %v6709 = vld [vmem:[%s5 + $0x8] sm:$0xff]
  %v6710 = vld [vmem:[%s5 + $0x10] sm:$0xff]
  %v6711 = vld [vmem:[%s5 + $0x18] sm:$0x3f]
  %v6712 = vld [vmem:[%s6] sm:$0x1]
  %v6714 = vlaneseq
  %v6715 = vshrl.u32 %v6714, 7
  %v6716 = vsub.s32 0, %v6715
  %v6717 = vrot.slane %v6712, %v6716
  %vm6719 = vcmask 244736
  %v6721 = vsel %vm6719, %v6707, 0
  %vm6723 = vcmask 1045504
  %v6725 = vsel %vm6723, %v6711, 0
  %6727 = vmatprep.subr.mxu0 0.0
  %6728 = vmatpush1.msra.mxu0 %v6708
  %6729 = vmatprep.subr.mxu0 0.0
  %6730 = vmatpush1.msra.mxu0 %v6709
  %6731 = vmatprep.subr.mxu0 0.0
  %6732 = vmatpush1.msra.mxu0 %v6710
  %6733 = vmatprep.subr.mxu0 0.0
  %6734 = vmatpush1.msra.mxu0 %v6725
  %6735 = vmatprep.subr.mxu0 0.0
  %6736 = vmatpush1.msra.mxu0 0.0
  %6737 = vmatprep.subr.mxu0 0.0
  %6738 = vmatpush1.msra.mxu0 0.0
  %6739 = vmatprep.subr.mxu0 0.0
  %6740 = vmatpush1.msra.mxu0 0.0
  %6741 = vmatprep.subr.mxu0 0.0
  %6742 = vmatpush1.msra.mxu0 0.0
  %6743 = vmatprep.subr.mxu0 0.0
  %6744 = vmatpush1.msra.mxu0 0.0
  %6745 = vmatprep.subr.mxu0 0.0
  %6746 = vmatpush1.msra.mxu0 0.0
  %6747 = vmatprep.subr.mxu0 0.0
  %6748 = vmatpush1.msra.mxu0 0.0
  %6749 = vmatprep.subr.mxu0 0.0
  %6750 = vmatpush1.msra.mxu0 0.0
  %6751 = vmatprep.subr.mxu0 0.0
  %6752 = vmatpush1.msra.mxu0 0.0
  %6753 = vmatprep.subr.mxu0 0.0
  %6754 = vmatpush1.msra.mxu0 0.0
  %6755 = vmatprep.subr.mxu0 0.0
  %6756 = vmatpush1.msra.mxu0 0.0
  %6757 = vmatprep.subr.mxu0 0.0
  %6758 = vmatpush1.msra.mxu0 0.0
  %6759 = vmatprep.subr.mxu0 0.0
  %6760 = vmatpush1.msra.mxu0 0.0
  %6761 = vmatprep.subr.mxu0 0.0
  %6762 = vmatpush1.msra.mxu0 0.0
  %6763 = vmatprep.subr.mxu0 0.0
  %6764 = vmatpush1.msra.mxu0 0.0
  %6765 = vmatprep.subr.mxu0 0.0
  %6766 = vmatpush1.msra.mxu0 0.0
  %6767 = vmatprep.subr.mxu0 0.0
  %6768 = vmatpush1.msra.mxu0 0.0
  %6769 = vmatprep.subr.mxu0 0.0
  %6770 = vmatpush1.msra.mxu0 0.0
  %6771 = vmatprep.subr.mxu0 0.0
  %6772 = vmatpush1.msra.mxu0 0.0
  %6773 = vmatprep.subr.mxu0 0.0
  %6774 = vmatpush1.msra.mxu0 0.0
  %6775 = vmatprep.subr.mxu0 0.0
  %6776 = vmatpush1.msra.mxu0 0.0
  %6777 = vmatprep.subr.mxu0 0.0
  %6778 = vmatpush1.msra.mxu0 0.0
  %6779 = vmatprep.subr.mxu0 0.0
  %6780 = vmatpush1.msra.mxu0 0.0
  %6781 = vmatprep.subr.mxu0 0.0
  %6782 = vmatpush1.msra.mxu0 0.0
  %6783 = vmatprep.subr.mxu0 0.0
  %6784 = vmatpush1.msra.mxu0 0.0
  %6785 = vmatprep.subr.mxu0 0.0
  %6786 = vmatpush1.msra.mxu0 0.0
  %6787 = vmatprep.subr.mxu0 0.0
  %6788 = vmatpush1.msra.mxu0 0.0
  %6789 = vmatprep.subr.mxu0 0.0
  %6790 = vmatpush1.msra.mxu0 0.0
  %6791 = vmatprep.mubr.f32.mxu0 0.0
  %6792 = vmatmul.mubr.f32.gmra.mrb[0].mxu0 %v6721
  %v6793 = vpop.f32.mrb[0].mxu0
  %v6794 = vadd.f32 %v6717, %v6793
  %v6795 = vpop.f32.mrb[0].mxu0
  %6796 = vdwg.mxu0
  %v6797 = vmax.f32 %v6794, 0.0
  %v6798 = vld [vmem:[%s7] sm:$0xff]
  %v6799 = vld [vmem:[%s7 + $0x8] sm:$0x3]
  %v6800 = vld [vmem:[%s8] sm:$0x1]
  %v6802 = vlaneseq
  %v6803 = vshrl.u32 %v6802, 7
  %v6804 = vsub.s32 0, %v6803
  %v6805 = vrot.slane %v6800, %v6804
  %vm6807 = vcmask 80896
  %v6809 = vsel %vm6807, %v6797, 0
  %vm6811 = vcmask 1041408
  %v6813 = vsel %vm6811, %v6799, 0
  %6815 = vmatprep.subr.mxu0 0.0
  %6816 = vmatpush1.msra.mxu0 %v6798
  %6817 = vmatprep.subr.mxu0 0.0
  %6818 = vmatpush1.msra.mxu0 %v6813
  %6819 = vmatprep.subr.mxu0 0.0
  %6820 = vmatpush1.msra.mxu0 0.0
  %6821 = vmatprep.subr.mxu0 0.0
  %6822 = vmatpush1.msra.mxu0 0.0
  %6823 = vmatprep.subr.mxu0 0.0
  %6824 = vmatpush1.msra.mxu0 0.0
  %6825 = vmatprep.subr.mxu0 0.0
  %6826 = vmatpush1.msra.mxu0 0.0
  %6827 = vmatprep.subr.mxu0 0.0
  %6828 = vmatpush1.msra.mxu0 0.0
  %6829 = vmatprep.subr.mxu0 0.0
  %6830 = vmatpush1.msra.mxu0 0.0
  %6831 = vmatprep.subr.mxu0 0.0
  %6832 = vmatpush1.msra.mxu0 0.0
  %6833 = vmatprep.subr.mxu0 0.0
  %6834 = vmatpush1.msra.mxu0 0.0
  %6835 = vmatprep.subr.mxu0 0.0
  %6836 = vmatpush1.msra.mxu0 0.0
  %6837 = vmatprep.subr.mxu0 0.0
  %6838 = vmatpush1.msra.mxu0 0.0
  %6839 = vmatprep.subr.mxu0 0.0
  %6840 = vmatpush1.msra.mxu0 0.0
  %6841 = vmatprep.subr.mxu0 0.0
  %6842 = vmatpush1.msra.mxu0 0.0
  %6843 = vmatprep.subr.mxu0 0.0
  %6844 = vmatpush1.msra.mxu0 0.0
  %6845 = vmatprep.subr.mxu0 0.0
  %6846 = vmatpush1.msra.mxu0 0.0
  %6847 = vmatprep.subr.mxu0 0.0
  %6848 = vmatpush1.msra.mxu0 0.0
  %6849 = vmatprep.subr.mxu0 0.0
  %6850 = vmatpush1.msra.mxu0 0.0
  %6851 = vmatprep.subr.mxu0 0.0
  %6852 = vmatpush1.msra.mxu0 0.0
  %6853 = vmatprep.subr.mxu0 0.0
  %6854 = vmatpush1.msra.mxu0 0.0
  %6855 = vmatprep.subr.mxu0 0.0
  %6856 = vmatpush1.msra.mxu0 0.0
  %6857 = vmatprep.subr.mxu0 0.0
  %6858 = vmatpush1.msra.mxu0 0.0
  %6859 = vmatprep.subr.mxu0 0.0
  %6860 = vmatpush1.msra.mxu0 0.0
  %6861 = vmatprep.subr.mxu0 0.0
  %6862 = vmatpush1.msra.mxu0 0.0
  %6863 = vmatprep.subr.mxu0 0.0
  %6864 = vmatpush1.msra.mxu0 0.0
  %6865 = vmatprep.subr.mxu0 0.0
  %6866 = vmatpush1.msra.mxu0 0.0
  %6867 = vmatprep.subr.mxu0 0.0
  %6868 = vmatpush1.msra.mxu0 0.0
  %6869 = vmatprep.subr.mxu0 0.0
  %6870 = vmatpush1.msra.mxu0 0.0
  %6871 = vmatprep.subr.mxu0 0.0
  %6872 = vmatpush1.msra.mxu0 0.0
  %6873 = vmatprep.subr.mxu0 0.0
  %6874 = vmatpush1.msra.mxu0 0.0
  %6875 = vmatprep.subr.mxu0 0.0
  %6876 = vmatpush1.msra.mxu0 0.0
  %6877 = vmatprep.subr.mxu0 0.0
  %6878 = vmatpush1.msra.mxu0 0.0
  %6879 = vmatprep.mubr.f32.mxu0 0.0
  %6880 = vmatmul.mubr.f32.gmra.mrb[0].mxu0 %v6809
  %v6881 = vpop.f32.mrb[0].mxu0
  %v6882 = vadd.f32 %v6805, %v6881
  %v6883 = vpop.f32.mrb[0].mxu0
  %6884 = vdwg.mxu0
  %6885 = vst [vmem:[%s9] sm:$0xff] %v6882
  // Predicated region
  $region38: #{net_forward.1} parent=0 // pred_check
    _
  $region39: #{net_forward.1} parent=0 // pred_check_branch
    %6887 = sbr.rel (0) target = $region41
  $region40: #{net_forward.1} parent=0 // pred_region
    _
  $region41: #{net_forward.1} parent=0 // pred_fallthru
    _
  // Predicated region
  $region42: #{net_forward.1} parent=0 // pred_check
    _
  $region43: #{net_forward.1} parent=0 // pred_check_branch
    %6889 = sbr.rel (0) target = $region45
  $region44: #{net_forward.1} parent=0 // pred_region
    _
  $region45: #{net_forward.1} parent=0 // pred_fallthru
    _

</llo_original>
